<compile_context>
chip_gen: v5e
topology: v5e:2x2
jax: 0.10.0
libtpu: 0.0.40
codegen_flags: <defaults>
</compile_context>

<pallas_src>
import numpy as np

import jax
import jax.numpy as jnp
from jax.experimental import pallas as pl
from jax.experimental.pallas import tpu as pltpu

BN_EPS = 1e-5
CP = 8          # conv1 input channels zero-padded to this many (one lane tile: 4*4*8 = 128)
KK = 16         # 4x4 kernel taps


# ------------------------------------------------------------------
# Fused Pallas kernel: conv1+ReLU -> conv2+BN+ReLU -> conv3+BN+ReLU -> conv4
# ------------------------------------------------------------------

def _fused_encoder_kernel(p1_ref, w1_ref, w2_ref, g2_ref, b2_ref,
                          sel3_ref, w3_ref, g3_ref, b3_ref, w4_ref, o_ref):
    f32 = jnp.float32
    m1 = p1_ref.shape[0]          # KK * (8*8*B)   duplicated conv1-patch rows
    m2 = m1 // KK                 # 8*8*B          conv2 output rows
    m3 = sel3_ref.shape[1]        # 4*4*B          conv3 output rows
    bsz = o_ref.shape[0]          # B

    # --- conv1 (4x4 / s2 / p1) + ReLU.  Rows were pre-gathered per conv2 tap, so slab t is
    #     exactly tap t's column block of conv2's im2col patch matrix.
    w1 = w1_ref[...]
    blocks2 = []
    for t in range(KK):
        a = jnp.dot(p1_ref[pl.ds(t * m2, m2), :], w1, preferred_element_type=f32)
        blocks2.append(jnp.maximum(a, 0.0).astype(jnp.bfloat16))
    p2 = jnp.concatenate(blocks2, axis=1)                                  # (m2, 16*ndf)

    # --- conv2 (4x4 / s2 / p1) + BatchNorm (training batch stats, one pass) + ReLU.
    y2 = jnp.dot(p2, w2_ref[...], preferred_element_type=f32)              # (m2, 2ndf) f32
    mean2 = jnp.sum(y2, axis=0, keepdims=True) * (1.0 / m2)
    var2 = jnp.maximum(
        jnp.sum(y2 * y2, axis=0, keepdims=True) * (1.0 / m2) - mean2 * mean2, 0.0)
    scale2 = g2_ref[...] * jax.lax.rsqrt(var2 + BN_EPS)
    y2 = jnp.maximum((y2 - mean2) * scale2 + b2_ref[...], 0.0).astype(jnp.bfloat16)

    # --- conv3 (4x4 / s2 / p1): taps gathered from the VMEM-resident y2 with one-hot selection
    #     matmuls, lane-concat, one GEMM, then BN + ReLU.
    blocks3 = []
    for t in range(KK):
        g = jnp.dot(sel3_ref[t], y2, preferred_element_type=f32)           # (m3, 2ndf)
        blocks3.append(g.astype(jnp.bfloat16))
    p3 = jnp.concatenate(blocks3, axis=1)                                  # (m3, 16*2ndf)
    y3 = jnp.dot(p3, w3_ref[...], preferred_element_type=f32)              # (m3, 4ndf) f32
    mean3 = jnp.sum(y3, axis=0, keepdims=True) * (1.0 / m3)
    var3 = jnp.maximum(
        jnp.sum(y3 * y3, axis=0, keepdims=True) * (1.0 / m3) - mean3 * mean3, 0.0)
    scale3 = g3_ref[...] * jax.lax.rsqrt(var3 + BN_EPS)
    y3 = jnp.maximum((y3 - mean3) * scale3 + b3_ref[...], 0.0).astype(jnp.bfloat16)

    # --- conv4 (4x4 / s1 / p0 over the 4x4 map == full contraction), accumulated over taps.
    acc = jnp.zeros((bsz, o_ref.shape[1]), f32)
    for s in range(KK):
        acc = acc + jnp.dot(y3[s * bsz:(s + 1) * bsz, :], w4_ref[s],
                            preferred_element_type=f32)
    o_ref[...] = acc                                                       # (B, 2*nz) lane-dense


def _fused_forward_pallas(p1d, w1m, w2m, g2, b2, sel3, w3m, g3, b3, w4m, batch, nz):
    m1, k1 = p1d.shape
    ndf = w1m.shape[1]
    oc2 = w2m.shape[1]
    oc3 = w3m.shape[1]
    m2 = m1 // KK
    m3 = sel3.shape[1]

    flops = 2 * (m1 * k1 * ndf                      # conv1 (duplicated rows)
                 + m2 * (KK * ndf) * oc2            # conv2
                 + KK * m3 * m2 * oc2               # conv3 tap gathers
                 + m3 * (KK * oc2) * oc3            # conv3
                 + KK * batch * oc3 * (2 * nz))     # conv4
    bytes_accessed = sum(int(a.size) * a.dtype.itemsize
                         for a in (p1d, w1m, w2m, g2, b2, sel3, w3m, g3, b3, w4m))
    bytes_accessed += batch * 2 * nz * 4

    def full(a):
        return pl.BlockSpec(a.shape, lambda: (0,) * a.ndim)

    return pl.pallas_call(
        _fused_encoder_kernel,
        out_shape=jax.ShapeDtypeStruct((batch, 2 * nz), jnp.float32),
        in_specs=[full(p1d), full(w1m), full(w2m), full(g2), full(b2),
                  full(sel3), full(w3m), full(g3), full(b3), full(w4m)],
        out_specs=pl.BlockSpec((batch, 2 * nz), lambda: (0, 0)),
        compiler_params=pltpu.CompilerParams(vmem_limit_bytes=32 * 1024 * 1024),
        cost_estimate=pl.CostEstimate(flops=flops,
                                      transcendentals=2 * (oc2 + oc3),
                                      bytes_accessed=bytes_accessed),
    )(p1d, w1m, w2m, g2, b2, sel3, w3m, g3, b3, w4m)


# ------------------------------------------------------------------
# JAX glue: input-side patch prep + parameter prep
# ------------------------------------------------------------------

def _conv1_patches_for_conv2(x_nchw):
    """Duplicated conv1 im2col patches, rows ordered (conv2 tap; conv2 output y,x; batch).

    Row (t2=(i2,j2), y2, x2, b) holds the conv1 patch for conv1-output position
    (2*y2 + i2 - 1, 2*x2 + j2 - 1) of sample b (all-zero if that position is conv2 padding),
    so inside the kernel conv2's patch matrix is just 16 contiguous row slabs of relu(p1 @ W1).
    """
    bsz, nc, _, _ = x_nchw.shape
    x = jnp.transpose(x_nchw, (0, 2, 3, 1)).astype(jnp.bfloat16)       # (B, 32, 32, nc)
    x = jnp.pad(x, ((0, 0), (0, 0), (0, 0), (0, CP - nc)))             # channel pad -> CP
    xp = jnp.pad(x, ((0, 0), (1, 1), (1, 1), (0, 0)))                  # conv1 spatial pad
    cols = []
    for i1 in range(4):
        for j1 in range(4):
            cols.append(xp[:, i1:i1 + 32:2, j1:j1 + 32:2, :])          # (B, 16, 16, CP)
    p1 = jnp.stack(cols, axis=3).reshape(bsz, 16, 16, KK * CP)         # rows (b, oy1, ox1)
    p1p = jnp.pad(p1, ((0, 0), (1, 1), (1, 1), (0, 0)))                # conv2 spatial pad
    blocks = []
    for i2 in range(4):
        for j2 in range(4):
            blk = p1p[:, i2:i2 + 16:2, j2:j2 + 16:2, :]                # (B, 8, 8, 16*CP)
            blocks.append(jnp.transpose(blk, (1, 2, 0, 3)))            # (8, 8, B, 16*CP)
    return jnp.stack(blocks, axis=0).reshape(KK * 8 * 8 * bsz, KK * CP)


def _build_sel3(batch):
    """One-hot tap-selection matrices for conv3's stride-2 im2col over the 8x8 conv2 map."""
    m2, m3 = 8 * 8 * batch, 4 * 4 * batch
    sel = np.zeros((KK, m3, m2), np.float32)
    for i3 in range(4):
        for j3 in range(4):
            t = i3 * 4 + j3
            for y3 in range(4):
                for x3 in range(4):
                    sy, sx = 2 * y3 + i3 - 1, 2 * x3 + j3 - 1
                    if 0 <= sy < 8 and 0 <= sx < 8:
                        for b in range(batch):
                            sel[t, (y3 * 4 + x3) * batch + b,
                                (sy * 8 + sx) * batch + b] = 1.0
    return jnp.asarray(sel, dtype=jnp.bfloat16)


def init_raw_params(key, nz, ndf, nc):
    k1, k2, k3, k4 = jax.random.split(key, 4)

    def w(k, oc, ic, ksz=4):
        bound = 1.0 / jnp.sqrt(ic * ksz * ksz)
        return jax.random.uniform(k, (oc, ic, ksz, ksz), jnp.float32, -bound, bound)

    return {
        "w1": w(k1, ndf, nc),
        "w2": w(k2, ndf * 2, ndf),
        "g2": jnp.ones((ndf * 2,), jnp.float32),
        "b2": jnp.zeros((ndf * 2,), jnp.float32),
        "w3": w(k3, ndf * 4, ndf * 2),
        "g3": jnp.ones((ndf * 4,), jnp.float32),
        "b3": jnp.zeros((ndf * 4,), jnp.float32),
        "w4": w(k4, 2 * nz, ndf * 4),
    }


def prepare_params(raw):
    """Hoist weight layout transforms + dtype casts out of the forward pass (GEMM-ready)."""
    def gemm_w(w_oihw, pad_ic_to=None):
        oc, ic, kh, kw = w_oihw.shape
        if pad_ic_to is not None and pad_ic_to > ic:
            w_oihw = jnp.pad(w_oihw, ((0, 0), (0, pad_ic_to - ic), (0, 0), (0, 0)))
            ic = pad_ic_to
        return (jnp.transpose(w_oihw, (2, 3, 1, 0))
                .reshape(kh * kw * ic, oc).astype(jnp.bfloat16))

    w4 = raw["w4"]                                      # (2nz, 4ndf, 4, 4)
    w4m = (jnp.transpose(w4, (2, 3, 1, 0))              # (4, 4, 4ndf, 2nz)
           .reshape(KK, w4.shape[1], w4.shape[0]).astype(jnp.bfloat16))
    return {
        "w1m": gemm_w(raw["w1"], pad_ic_to=CP),         # (16*CP, ndf) = (128, ndf)
        "w2m": gemm_w(raw["w2"]),                       # (16*ndf, 2ndf)
        "w3m": gemm_w(raw["w3"]),                       # (16*2ndf, 4ndf)
        "w4m": w4m,                                     # (16, 4ndf, 2nz)
        "g2": raw["g2"].reshape(1, -1).astype(jnp.float32),
        "b2": raw["b2"].reshape(1, -1).astype(jnp.float32),
        "g3": raw["g3"].reshape(1, -1).astype(jnp.float32),
        "b3": raw["b3"].reshape(1, -1).astype(jnp.float32),
    }


# ------------------------------------------------------------------
# Forward pass (matches _encoder32_VAE.forward)
# ------------------------------------------------------------------

def encoder32_vae_forward(params, x_nchw):
    batch = x_nchw.shape[0]
    nz = params["w4m"].shape[2] // 2
    p1d = _conv1_patches_for_conv2(x_nchw)
    sel3 = _build_sel3(batch)
    res = _fused_forward_pallas(p1d, params["w1m"], params["w2m"], params["g2"], params["b2"],
                                sel3, params["w3m"], params["g3"], params["b3"], params["w4m"],
                                batch, nz)
    # res[:, :nz].view(-1, nz), res[:, nz:].view(-1, nz)  (squeeze(1) is a no-op for nz > 1)
    return res[:, :nz], res[:, nz:]


# ------------------------------------------------------------------
# Pure-JAX reference (f32) for a correctness check
# ------------------------------------------------------------------

def reference_forward(raw, x_nchw, nz):
    def conv(x, w, stride, pad):
        return jax.lax.conv_general_dilated(
            x, w, window_strides=(stride, stride),
            padding=[(pad, pad), (pad, pad)],
            dimension_numbers=("NCHW", "OIHW", "NCHW"))

    def bn(y, g, b):
        mean = jnp.mean(y, axis=(0, 2, 3), keepdims=True)
        var = jnp.var(y, axis=(0, 2, 3), keepdims=True)
        return ((y - mean) * jax.lax.rsqrt(var + BN_EPS)
                * g.reshape(1, -1, 1, 1) + b.reshape(1, -1, 1, 1))

    y = jax.nn.relu(conv(x_nchw, raw["w1"], 2, 1))
    y = jax.nn.relu(bn(conv(y, raw["w2"], 2, 1), raw["g2"], raw["b2"]))
    y = jax.nn.relu(bn(conv(y, raw["w3"], 2, 1), raw["g3"], raw["b3"]))
    res = conv(y, raw["w4"], 1, 0).reshape(x_nchw.shape[0], -1)
    return res[:, :nz], res[:, nz:]


# ------------------------------------------------------------------
# Main
# ------------------------------------------------------------------

if __name__ == "__main__":
    nz, ndf, nc = 16, 8, 3
    batch = 2

    key = jax.random.PRNGKey(0)
    k_param, k_input = jax.random.split(key)

    raw = init_raw_params(k_param, nz, ndf, nc)
    params = prepare_params(raw)
    x = jax.random.normal(k_input, (batch, nc, 32, 32), dtype=jnp.float32)

    fwd = jax.jit(encoder32_vae_forward)
    mu, var = fwd(params, x)
    mu, var = jax.block_until_ready((mu, var))

    assert mu.shape == (batch, nz), mu.shape
    assert var.shape == (batch, nz), var.shape
    assert bool(jnp.all(jnp.isfinite(mu))) and bool(jnp.all(jnp.isfinite(var)))

    # Loose tolerance: kernel path uses bf16 MXU operands with f32 accumulation.
    mu_ref, var_ref = reference_forward(raw, x, nz)
    err = max(float(jnp.max(jnp.abs(mu - mu_ref))),
              float(jnp.max(jnp.abs(var - var_ref))))
    assert err < 0.1, f"mismatch vs reference: max abs err {err}"

    print("KERNEL_OK")
</pallas_src>

<mosaic_0001>
module attributes {stable_mosaic.version = 11 : i64} {
  func.func @_fused_encoder_kernel(%arg0: memref<2048x128xbf16, #tpu.memory_space<vmem>>, %arg1: memref<128x8xbf16, #tpu.memory_space<vmem>>, %arg2: memref<128x16xbf16, #tpu.memory_space<vmem>>, %arg3: memref<1x16xf32, #tpu.memory_space<vmem>>, %arg4: memref<1x16xf32, #tpu.memory_space<vmem>>, %arg5: memref<16x32x128xbf16, #tpu.memory_space<vmem>>, %arg6: memref<256x32xbf16, #tpu.memory_space<vmem>>, %arg7: memref<1x32xf32, #tpu.memory_space<vmem>>, %arg8: memref<1x32xf32, #tpu.memory_space<vmem>>, %arg9: memref<16x32x32xbf16, #tpu.memory_space<vmem>>, %arg10: memref<2x32xf32, #tpu.memory_space<vmem>>) attributes {dimension_semantics = [], scalar_prefetch = 0 : i64, scratch_operands = 0 : i64, tpu.core_type = #tpu.core_type<tc>} {
    %c0 = arith.constant 0 : index
    %c0_0 = arith.constant 0 : index
    %0 = vector.load %arg1[%c0, %c0_0] : memref<128x8xbf16, #tpu.memory_space<vmem>>, vector<128x8xbf16>
    %c0_1 = arith.constant 0 : index
    %c0_2 = arith.constant 0 : index
    %1 = vector.load %arg0[%c0_1, %c0_2] : memref<2048x128xbf16, #tpu.memory_space<vmem>>, vector<128x128xbf16>
    %cst = arith.constant dense<0.000000e+00> : vector<128x8xf32>
    %2 = tpu.matmul %1, %0, %cst {dimension_numbers = #tpu.dot_dimension_numbers<[1], [0], [0], [1], [0, 0, 1, 1], [], []>} : vector<128x128xbf16>, vector<128x8xbf16>, vector<128x8xf32> -> vector<128x8xf32>
    %cst_3 = arith.constant 0.000000e+00 : f32
    %3 = vector.broadcast %cst_3 : f32 to vector<128x8xf32>
    %4 = arith.maximumf %2, %3 : vector<128x8xf32>
    %5 = arith.truncf %4 : vector<128x8xf32> to vector<128x8xbf16>
    %c128 = arith.constant 128 : index
    %c0_4 = arith.constant 0 : index
    %6 = vector.load %arg0[%c128, %c0_4] : memref<2048x128xbf16, #tpu.memory_space<vmem>>, vector<128x128xbf16>
    %cst_5 = arith.constant dense<0.000000e+00> : vector<128x8xf32>
    %7 = tpu.matmul %6, %0, %cst_5 {dimension_numbers = #tpu.dot_dimension_numbers<[1], [0], [0], [1], [0, 0, 1, 1], [], []>} : vector<128x128xbf16>, vector<128x8xbf16>, vector<128x8xf32> -> vector<128x8xf32>
    %cst_6 = arith.constant 0.000000e+00 : f32
    %8 = vector.broadcast %cst_6 : f32 to vector<128x8xf32>
    %9 = arith.maximumf %7, %8 : vector<128x8xf32>
    %10 = arith.truncf %9 : vector<128x8xf32> to vector<128x8xbf16>
    %c256 = arith.constant 256 : index
    %c0_7 = arith.constant 0 : index
    %11 = vector.load %arg0[%c256, %c0_7] : memref<2048x128xbf16, #tpu.memory_space<vmem>>, vector<128x128xbf16>
    %cst_8 = arith.constant dense<0.000000e+00> : vector<128x8xf32>
    %12 = tpu.matmul %11, %0, %cst_8 {dimension_numbers = #tpu.dot_dimension_numbers<[1], [0], [0], [1], [0, 0, 1, 1], [], []>} : vector<128x128xbf16>, vector<128x8xbf16>, vector<128x8xf32> -> vector<128x8xf32>
    %cst_9 = arith.constant 0.000000e+00 : f32
    %13 = vector.broadcast %cst_9 : f32 to vector<128x8xf32>
    %14 = arith.maximumf %12, %13 : vector<128x8xf32>
    %15 = arith.truncf %14 : vector<128x8xf32> to vector<128x8xbf16>
    %c384 = arith.constant 384 : index
    %c0_10 = arith.constant 0 : index
    %16 = vector.load %arg0[%c384, %c0_10] : memref<2048x128xbf16, #tpu.memory_space<vmem>>, vector<128x128xbf16>
    %cst_11 = arith.constant dense<0.000000e+00> : vector<128x8xf32>
    %17 = tpu.matmul %16, %0, %cst_11 {dimension_numbers = #tpu.dot_dimension_numbers<[1], [0], [0], [1], [0, 0, 1, 1], [], []>} : vector<128x128xbf16>, vector<128x8xbf16>, vector<128x8xf32> -> vector<128x8xf32>
    %cst_12 = arith.constant 0.000000e+00 : f32
    %18 = vector.broadcast %cst_12 : f32 to vector<128x8xf32>
    %19 = arith.maximumf %17, %18 : vector<128x8xf32>
    %20 = arith.truncf %19 : vector<128x8xf32> to vector<128x8xbf16>
    %c512 = arith.constant 512 : index
    %c0_13 = arith.constant 0 : index
    %21 = vector.load %arg0[%c512, %c0_13] : memref<2048x128xbf16, #tpu.memory_space<vmem>>, vector<128x128xbf16>
    %cst_14 = arith.constant dense<0.000000e+00> : vector<128x8xf32>
    %22 = tpu.matmul %21, %0, %cst_14 {dimension_numbers = #tpu.dot_dimension_numbers<[1], [0], [0], [1], [0, 0, 1, 1], [], []>} : vector<128x128xbf16>, vector<128x8xbf16>, vector<128x8xf32> -> vector<128x8xf32>
    %cst_15 = arith.constant 0.000000e+00 : f32
    %23 = vector.broadcast %cst_15 : f32 to vector<128x8xf32>
    %24 = arith.maximumf %22, %23 : vector<128x8xf32>
    %25 = arith.truncf %24 : vector<128x8xf32> to vector<128x8xbf16>
    %c640 = arith.constant 640 : index
    %c0_16 = arith.constant 0 : index
    %26 = vector.load %arg0[%c640, %c0_16] : memref<2048x128xbf16, #tpu.memory_space<vmem>>, vector<128x128xbf16>
    %cst_17 = arith.constant dense<0.000000e+00> : vector<128x8xf32>
    %27 = tpu.matmul %26, %0, %cst_17 {dimension_numbers = #tpu.dot_dimension_numbers<[1], [0], [0], [1], [0, 0, 1, 1], [], []>} : vector<128x128xbf16>, vector<128x8xbf16>, vector<128x8xf32> -> vector<128x8xf32>
    %cst_18 = arith.constant 0.000000e+00 : f32
    %28 = vector.broadcast %cst_18 : f32 to vector<128x8xf32>
    %29 = arith.maximumf %27, %28 : vector<128x8xf32>
    %30 = arith.truncf %29 : vector<128x8xf32> to vector<128x8xbf16>
    %c768 = arith.constant 768 : index
    %c0_19 = arith.constant 0 : index
    %31 = vector.load %arg0[%c768, %c0_19] : memref<2048x128xbf16, #tpu.memory_space<vmem>>, vector<128x128xbf16>
    %cst_20 = arith.constant dense<0.000000e+00> : vector<128x8xf32>
    %32 = tpu.matmul %31, %0, %cst_20 {dimension_numbers = #tpu.dot_dimension_numbers<[1], [0], [0], [1], [0, 0, 1, 1], [], []>} : vector<128x128xbf16>, vector<128x8xbf16>, vector<128x8xf32> -> vector<128x8xf32>
    %cst_21 = arith.constant 0.000000e+00 : f32
    %33 = vector.broadcast %cst_21 : f32 to vector<128x8xf32>
    %34 = arith.maximumf %32, %33 : vector<128x8xf32>
    %35 = arith.truncf %34 : vector<128x8xf32> to vector<128x8xbf16>
    %c896 = arith.constant 896 : index
    %c0_22 = arith.constant 0 : index
    %36 = vector.load %arg0[%c896, %c0_22] : memref<2048x128xbf16, #tpu.memory_space<vmem>>, vector<128x128xbf16>
    %cst_23 = arith.constant dense<0.000000e+00> : vector<128x8xf32>
    %37 = tpu.matmul %36, %0, %cst_23 {dimension_numbers = #tpu.dot_dimension_numbers<[1], [0], [0], [1], [0, 0, 1, 1], [], []>} : vector<128x128xbf16>, vector<128x8xbf16>, vector<128x8xf32> -> vector<128x8xf32>
    %cst_24 = arith.constant 0.000000e+00 : f32
    %38 = vector.broadcast %cst_24 : f32 to vector<128x8xf32>
    %39 = arith.maximumf %37, %38 : vector<128x8xf32>
    %40 = arith.truncf %39 : vector<128x8xf32> to vector<128x8xbf16>
    %c1024 = arith.constant 1024 : index
    %c0_25 = arith.constant 0 : index
    %41 = vector.load %arg0[%c1024, %c0_25] : memref<2048x128xbf16, #tpu.memory_space<vmem>>, vector<128x128xbf16>
    %cst_26 = arith.constant dense<0.000000e+00> : vector<128x8xf32>
    %42 = tpu.matmul %41, %0, %cst_26 {dimension_numbers = #tpu.dot_dimension_numbers<[1], [0], [0], [1], [0, 0, 1, 1], [], []>} : vector<128x128xbf16>, vector<128x8xbf16>, vector<128x8xf32> -> vector<128x8xf32>
    %cst_27 = arith.constant 0.000000e+00 : f32
    %43 = vector.broadcast %cst_27 : f32 to vector<128x8xf32>
    %44 = arith.maximumf %42, %43 : vector<128x8xf32>
    %45 = arith.truncf %44 : vector<128x8xf32> to vector<128x8xbf16>
    %c1152 = arith.constant 1152 : index
    %c0_28 = arith.constant 0 : index
    %46 = vector.load %arg0[%c1152, %c0_28] : memref<2048x128xbf16, #tpu.memory_space<vmem>>, vector<128x128xbf16>
    %cst_29 = arith.constant dense<0.000000e+00> : vector<128x8xf32>
    %47 = tpu.matmul %46, %0, %cst_29 {dimension_numbers = #tpu.dot_dimension_numbers<[1], [0], [0], [1], [0, 0, 1, 1], [], []>} : vector<128x128xbf16>, vector<128x8xbf16>, vector<128x8xf32> -> vector<128x8xf32>
    %cst_30 = arith.constant 0.000000e+00 : f32
    %48 = vector.broadcast %cst_30 : f32 to vector<128x8xf32>
    %49 = arith.maximumf %47, %48 : vector<128x8xf32>
    %50 = arith.truncf %49 : vector<128x8xf32> to vector<128x8xbf16>
    %c1280 = arith.constant 1280 : index
    %c0_31 = arith.constant 0 : index
    %51 = vector.load %arg0[%c1280, %c0_31] : memref<2048x128xbf16, #tpu.memory_space<vmem>>, vector<128x128xbf16>
    %cst_32 = arith.constant dense<0.000000e+00> : vector<128x8xf32>
    %52 = tpu.matmul %51, %0, %cst_32 {dimension_numbers = #tpu.dot_dimension_numbers<[1], [0], [0], [1], [0, 0, 1, 1], [], []>} : vector<128x128xbf16>, vector<128x8xbf16>, vector<128x8xf32> -> vector<128x8xf32>
    %cst_33 = arith.constant 0.000000e+00 : f32
    %53 = vector.broadcast %cst_33 : f32 to vector<128x8xf32>
    %54 = arith.maximumf %52, %53 : vector<128x8xf32>
    %55 = arith.truncf %54 : vector<128x8xf32> to vector<128x8xbf16>
    %c1408 = arith.constant 1408 : index
    %c0_34 = arith.constant 0 : index
    %56 = vector.load %arg0[%c1408, %c0_34] : memref<2048x128xbf16, #tpu.memory_space<vmem>>, vector<128x128xbf16>
    %cst_35 = arith.constant dense<0.000000e+00> : vector<128x8xf32>
    %57 = tpu.matmul %56, %0, %cst_35 {dimension_numbers = #tpu.dot_dimension_numbers<[1], [0], [0], [1], [0, 0, 1, 1], [], []>} : vector<128x128xbf16>, vector<128x8xbf16>, vector<128x8xf32> -> vector<128x8xf32>
    %cst_36 = arith.constant 0.000000e+00 : f32
    %58 = vector.broadcast %cst_36 : f32 to vector<128x8xf32>
    %59 = arith.maximumf %57, %58 : vector<128x8xf32>
    %60 = arith.truncf %59 : vector<128x8xf32> to vector<128x8xbf16>
    %c1536 = arith.constant 1536 : index
    %c0_37 = arith.constant 0 : index
    %61 = vector.load %arg0[%c1536, %c0_37] : memref<2048x128xbf16, #tpu.memory_space<vmem>>, vector<128x128xbf16>
    %cst_38 = arith.constant dense<0.000000e+00> : vector<128x8xf32>
    %62 = tpu.matmul %61, %0, %cst_38 {dimension_numbers = #tpu.dot_dimension_numbers<[1], [0], [0], [1], [0, 0, 1, 1], [], []>} : vector<128x128xbf16>, vector<128x8xbf16>, vector<128x8xf32> -> vector<128x8xf32>
    %cst_39 = arith.constant 0.000000e+00 : f32
    %63 = vector.broadcast %cst_39 : f32 to vector<128x8xf32>
    %64 = arith.maximumf %62, %63 : vector<128x8xf32>
    %65 = arith.truncf %64 : vector<128x8xf32> to vector<128x8xbf16>
    %c1664 = arith.constant 1664 : index
    %c0_40 = arith.constant 0 : index
    %66 = vector.load %arg0[%c1664, %c0_40] : memref<2048x128xbf16, #tpu.memory_space<vmem>>, vector<128x128xbf16>
    %cst_41 = arith.constant dense<0.000000e+00> : vector<128x8xf32>
    %67 = tpu.matmul %66, %0, %cst_41 {dimension_numbers = #tpu.dot_dimension_numbers<[1], [0], [0], [1], [0, 0, 1, 1], [], []>} : vector<128x128xbf16>, vector<128x8xbf16>, vector<128x8xf32> -> vector<128x8xf32>
    %cst_42 = arith.constant 0.000000e+00 : f32
    %68 = vector.broadcast %cst_42 : f32 to vector<128x8xf32>
    %69 = arith.maximumf %67, %68 : vector<128x8xf32>
    %70 = arith.truncf %69 : vector<128x8xf32> to vector<128x8xbf16>
    %c1792 = arith.constant 1792 : index
    %c0_43 = arith.constant 0 : index
    %71 = vector.load %arg0[%c1792, %c0_43] : memref<2048x128xbf16, #tpu.memory_space<vmem>>, vector<128x128xbf16>
    %cst_44 = arith.constant dense<0.000000e+00> : vector<128x8xf32>
    %72 = tpu.matmul %71, %0, %cst_44 {dimension_numbers = #tpu.dot_dimension_numbers<[1], [0], [0], [1], [0, 0, 1, 1], [], []>} : vector<128x128xbf16>, vector<128x8xbf16>, vector<128x8xf32> -> vector<128x8xf32>
    %cst_45 = arith.constant 0.000000e+00 : f32
    %73 = vector.broadcast %cst_45 : f32 to vector<128x8xf32>
    %74 = arith.maximumf %72, %73 : vector<128x8xf32>
    %75 = arith.truncf %74 : vector<128x8xf32> to vector<128x8xbf16>
    %c1920 = arith.constant 1920 : index
    %c0_46 = arith.constant 0 : index
    %76 = vector.load %arg0[%c1920, %c0_46] : memref<2048x128xbf16, #tpu.memory_space<vmem>>, vector<128x128xbf16>
    %cst_47 = arith.constant dense<0.000000e+00> : vector<128x8xf32>
    %77 = tpu.matmul %76, %0, %cst_47 {dimension_numbers = #tpu.dot_dimension_numbers<[1], [0], [0], [1], [0, 0, 1, 1], [], []>} : vector<128x128xbf16>, vector<128x8xbf16>, vector<128x8xf32> -> vector<128x8xf32>
    %cst_48 = arith.constant 0.000000e+00 : f32
    %78 = vector.broadcast %cst_48 : f32 to vector<128x8xf32>
    %79 = arith.maximumf %77, %78 : vector<128x8xf32>
    %80 = arith.truncf %79 : vector<128x8xf32> to vector<128x8xbf16>
    %81 = tpu.concatenate %5, %10, %15, %20, %25, %30, %35, %40, %45, %50, %55, %60, %65, %70, %75, %80 in 1 : vector<128x8xbf16>, vector<128x8xbf16>, vector<128x8xbf16>, vector<128x8xbf16>, vector<128x8xbf16>, vector<128x8xbf16>, vector<128x8xbf16>, vector<128x8xbf16>, vector<128x8xbf16>, vector<128x8xbf16>, vector<128x8xbf16>, vector<128x8xbf16>, vector<128x8xbf16>, vector<128x8xbf16>, vector<128x8xbf16>, vector<128x8xbf16> -> vector<128x128xbf16>
    %c0_49 = arith.constant 0 : index
    %c0_50 = arith.constant 0 : index
    %82 = vector.load %arg2[%c0_49, %c0_50] : memref<128x16xbf16, #tpu.memory_space<vmem>>, vector<128x16xbf16>
    %cst_51 = arith.constant dense<0.000000e+00> : vector<128x16xf32>
    %83 = tpu.matmul %81, %82, %cst_51 {dimension_numbers = #tpu.dot_dimension_numbers<[1], [0], [0], [1], [0, 0, 1, 1], [], []>} : vector<128x128xbf16>, vector<128x16xbf16>, vector<128x16xf32> -> vector<128x16xf32>
    %cst_52 = arith.constant dense<0.000000e+00> : vector<16xf32>
    %84 = vector.multi_reduction <add>, %83, %cst_52 [0] : vector<128x16xf32> to vector<16xf32>
    %85 = vector.shape_cast %84 : vector<16xf32> to vector<1x16xf32>
    %cst_53 = arith.constant 7.812500e-03 : f32
    %86 = vector.broadcast %cst_53 : f32 to vector<1x16xf32>
    %87 = arith.mulf %85, %86 : vector<1x16xf32>
    %88 = arith.mulf %83, %83 : vector<128x16xf32>
    %cst_54 = arith.constant dense<0.000000e+00> : vector<16xf32>
    %89 = vector.multi_reduction <add>, %88, %cst_54 [0] : vector<128x16xf32> to vector<16xf32>
    %90 = vector.shape_cast %89 : vector<16xf32> to vector<1x16xf32>
    %cst_55 = arith.constant 7.812500e-03 : f32
    %91 = vector.broadcast %cst_55 : f32 to vector<1x16xf32>
    %92 = arith.mulf %90, %91 : vector<1x16xf32>
    %93 = arith.mulf %87, %87 : vector<1x16xf32>
    %94 = arith.subf %92, %93 : vector<1x16xf32>
    %cst_56 = arith.constant 0.000000e+00 : f32
    %95 = vector.broadcast %cst_56 : f32 to vector<1x16xf32>
    %96 = arith.maximumf %94, %95 : vector<1x16xf32>
    %c0_57 = arith.constant 0 : index
    %c0_58 = arith.constant 0 : index
    %97 = vector.load %arg3[%c0_57, %c0_58] : memref<1x16xf32, #tpu.memory_space<vmem>>, vector<1x16xf32>
    %cst_59 = arith.constant 9.99999974E-6 : f32
    %98 = vector.broadcast %cst_59 : f32 to vector<1x16xf32>
    %99 = arith.addf %96, %98 : vector<1x16xf32>
    %100 = math.rsqrt %99 : vector<1x16xf32>
    %101 = arith.mulf %97, %100 : vector<1x16xf32>
    %102 = vector.broadcast %87 : vector<1x16xf32> to vector<128x16xf32>
    %103 = arith.subf %83, %102 : vector<128x16xf32>
    %104 = vector.broadcast %101 : vector<1x16xf32> to vector<128x16xf32>
    %105 = arith.mulf %103, %104 : vector<128x16xf32>
    %c0_60 = arith.constant 0 : index
    %c0_61 = arith.constant 0 : index
    %106 = vector.load %arg4[%c0_60, %c0_61] : memref<1x16xf32, #tpu.memory_space<vmem>>, vector<1x16xf32>
    %107 = vector.broadcast %106 : vector<1x16xf32> to vector<128x16xf32>
    %108 = arith.addf %105, %107 : vector<128x16xf32>
    %cst_62 = arith.constant 0.000000e+00 : f32
    %109 = vector.broadcast %cst_62 : f32 to vector<128x16xf32>
    %110 = arith.maximumf %108, %109 : vector<128x16xf32>
    %111 = arith.truncf %110 : vector<128x16xf32> to vector<128x16xbf16>
    %c0_63 = arith.constant 0 : index
    %c0_64 = arith.constant 0 : index
    %c0_65 = arith.constant 0 : index
    %112 = vector.load %arg5[%c0_63, %c0_64, %c0_65] : memref<16x32x128xbf16, #tpu.memory_space<vmem>>, vector<1x32x128xbf16>
    %113 = vector.shape_cast %112 : vector<1x32x128xbf16> to vector<32x128xbf16>
    %cst_66 = arith.constant dense<0.000000e+00> : vector<32x16xf32>
    %114 = tpu.matmul %113, %111, %cst_66 {dimension_numbers = #tpu.dot_dimension_numbers<[1], [0], [0], [1], [0, 0, 1, 1], [], []>} : vector<32x128xbf16>, vector<128x16xbf16>, vector<32x16xf32> -> vector<32x16xf32>
    %115 = arith.truncf %114 : vector<32x16xf32> to vector<32x16xbf16>
    %c1 = arith.constant 1 : index
    %c0_67 = arith.constant 0 : index
    %c0_68 = arith.constant 0 : index
    %116 = vector.load %arg5[%c1, %c0_67, %c0_68] : memref<16x32x128xbf16, #tpu.memory_space<vmem>>, vector<1x32x128xbf16>
    %117 = vector.shape_cast %116 : vector<1x32x128xbf16> to vector<32x128xbf16>
    %cst_69 = arith.constant dense<0.000000e+00> : vector<32x16xf32>
    %118 = tpu.matmul %117, %111, %cst_69 {dimension_numbers = #tpu.dot_dimension_numbers<[1], [0], [0], [1], [0, 0, 1, 1], [], []>} : vector<32x128xbf16>, vector<128x16xbf16>, vector<32x16xf32> -> vector<32x16xf32>
    %119 = arith.truncf %118 : vector<32x16xf32> to vector<32x16xbf16>
    %c2 = arith.constant 2 : index
    %c0_70 = arith.constant 0 : index
    %c0_71 = arith.constant 0 : index
    %120 = vector.load %arg5[%c2, %c0_70, %c0_71] : memref<16x32x128xbf16, #tpu.memory_space<vmem>>, vector<1x32x128xbf16>
    %121 = vector.shape_cast %120 : vector<1x32x128xbf16> to vector<32x128xbf16>
    %cst_72 = arith.constant dense<0.000000e+00> : vector<32x16xf32>
    %122 = tpu.matmul %121, %111, %cst_72 {dimension_numbers = #tpu.dot_dimension_numbers<[1], [0], [0], [1], [0, 0, 1, 1], [], []>} : vector<32x128xbf16>, vector<128x16xbf16>, vector<32x16xf32> -> vector<32x16xf32>
    %123 = arith.truncf %122 : vector<32x16xf32> to vector<32x16xbf16>
    %c3 = arith.constant 3 : index
    %c0_73 = arith.constant 0 : index
    %c0_74 = arith.constant 0 : index
    %124 = vector.load %arg5[%c3, %c0_73, %c0_74] : memref<16x32x128xbf16, #tpu.memory_space<vmem>>, vector<1x32x128xbf16>
    %125 = vector.shape_cast %124 : vector<1x32x128xbf16> to vector<32x128xbf16>
    %cst_75 = arith.constant dense<0.000000e+00> : vector<32x16xf32>
    %126 = tpu.matmul %125, %111, %cst_75 {dimension_numbers = #tpu.dot_dimension_numbers<[1], [0], [0], [1], [0, 0, 1, 1], [], []>} : vector<32x128xbf16>, vector<128x16xbf16>, vector<32x16xf32> -> vector<32x16xf32>
    %127 = arith.truncf %126 : vector<32x16xf32> to vector<32x16xbf16>
    %c4 = arith.constant 4 : index
    %c0_76 = arith.constant 0 : index
    %c0_77 = arith.constant 0 : index
    %128 = vector.load %arg5[%c4, %c0_76, %c0_77] : memref<16x32x128xbf16, #tpu.memory_space<vmem>>, vector<1x32x128xbf16>
    %129 = vector.shape_cast %128 : vector<1x32x128xbf16> to vector<32x128xbf16>
    %cst_78 = arith.constant dense<0.000000e+00> : vector<32x16xf32>
    %130 = tpu.matmul %129, %111, %cst_78 {dimension_numbers = #tpu.dot_dimension_numbers<[1], [0], [0], [1], [0, 0, 1, 1], [], []>} : vector<32x128xbf16>, vector<128x16xbf16>, vector<32x16xf32> -> vector<32x16xf32>
    %131 = arith.truncf %130 : vector<32x16xf32> to vector<32x16xbf16>
    %c5 = arith.constant 5 : index
    %c0_79 = arith.constant 0 : index
    %c0_80 = arith.constant 0 : index
    %132 = vector.load %arg5[%c5, %c0_79, %c0_80] : memref<16x32x128xbf16, #tpu.memory_space<vmem>>, vector<1x32x128xbf16>
    %133 = vector.shape_cast %132 : vector<1x32x128xbf16> to vector<32x128xbf16>
    %cst_81 = arith.constant dense<0.000000e+00> : vector<32x16xf32>
    %134 = tpu.matmul %133, %111, %cst_81 {dimension_numbers = #tpu.dot_dimension_numbers<[1], [0], [0], [1], [0, 0, 1, 1], [], []>} : vector<32x128xbf16>, vector<128x16xbf16>, vector<32x16xf32> -> vector<32x16xf32>
    %135 = arith.truncf %134 : vector<32x16xf32> to vector<32x16xbf16>
    %c6 = arith.constant 6 : index
    %c0_82 = arith.constant 0 : index
    %c0_83 = arith.constant 0 : index
    %136 = vector.load %arg5[%c6, %c0_82, %c0_83] : memref<16x32x128xbf16, #tpu.memory_space<vmem>>, vector<1x32x128xbf16>
    %137 = vector.shape_cast %136 : vector<1x32x128xbf16> to vector<32x128xbf16>
    %cst_84 = arith.constant dense<0.000000e+00> : vector<32x16xf32>
    %138 = tpu.matmul %137, %111, %cst_84 {dimension_numbers = #tpu.dot_dimension_numbers<[1], [0], [0], [1], [0, 0, 1, 1], [], []>} : vector<32x128xbf16>, vector<128x16xbf16>, vector<32x16xf32> -> vector<32x16xf32>
    %139 = arith.truncf %138 : vector<32x16xf32> to vector<32x16xbf16>
    %c7 = arith.constant 7 : index
    %c0_85 = arith.constant 0 : index
    %c0_86 = arith.constant 0 : index
    %140 = vector.load %arg5[%c7, %c0_85, %c0_86] : memref<16x32x128xbf16, #tpu.memory_space<vmem>>, vector<1x32x128xbf16>
    %141 = vector.shape_cast %140 : vector<1x32x128xbf16> to vector<32x128xbf16>
    %cst_87 = arith.constant dense<0.000000e+00> : vector<32x16xf32>
    %142 = tpu.matmul %141, %111, %cst_87 {dimension_numbers = #tpu.dot_dimension_numbers<[1], [0], [0], [1], [0, 0, 1, 1], [], []>} : vector<32x128xbf16>, vector<128x16xbf16>, vector<32x16xf32> -> vector<32x16xf32>
    %143 = arith.truncf %142 : vector<32x16xf32> to vector<32x16xbf16>
    %c8 = arith.constant 8 : index
    %c0_88 = arith.constant 0 : index
    %c0_89 = arith.constant 0 : index
    %144 = vector.load %arg5[%c8, %c0_88, %c0_89] : memref<16x32x128xbf16, #tpu.memory_space<vmem>>, vector<1x32x128xbf16>
    %145 = vector.shape_cast %144 : vector<1x32x128xbf16> to vector<32x128xbf16>
    %cst_90 = arith.constant dense<0.000000e+00> : vector<32x16xf32>
    %146 = tpu.matmul %145, %111, %cst_90 {dimension_numbers = #tpu.dot_dimension_numbers<[1], [0], [0], [1], [0, 0, 1, 1], [], []>} : vector<32x128xbf16>, vector<128x16xbf16>, vector<32x16xf32> -> vector<32x16xf32>
    %147 = arith.truncf %146 : vector<32x16xf32> to vector<32x16xbf16>
    %c9 = arith.constant 9 : index
    %c0_91 = arith.constant 0 : index
    %c0_92 = arith.constant 0 : index
    %148 = vector.load %arg5[%c9, %c0_91, %c0_92] : memref<16x32x128xbf16, #tpu.memory_space<vmem>>, vector<1x32x128xbf16>
    %149 = vector.shape_cast %148 : vector<1x32x128xbf16> to vector<32x128xbf16>
    %cst_93 = arith.constant dense<0.000000e+00> : vector<32x16xf32>
    %150 = tpu.matmul %149, %111, %cst_93 {dimension_numbers = #tpu.dot_dimension_numbers<[1], [0], [0], [1], [0, 0, 1, 1], [], []>} : vector<32x128xbf16>, vector<128x16xbf16>, vector<32x16xf32> -> vector<32x16xf32>
    %151 = arith.truncf %150 : vector<32x16xf32> to vector<32x16xbf16>
    %c10 = arith.constant 10 : index
    %c0_94 = arith.constant 0 : index
    %c0_95 = arith.constant 0 : index
    %152 = vector.load %arg5[%c10, %c0_94, %c0_95] : memref<16x32x128xbf16, #tpu.memory_space<vmem>>, vector<1x32x128xbf16>
    %153 = vector.shape_cast %152 : vector<1x32x128xbf16> to vector<32x128xbf16>
    %cst_96 = arith.constant dense<0.000000e+00> : vector<32x16xf32>
    %154 = tpu.matmul %153, %111, %cst_96 {dimension_numbers = #tpu.dot_dimension_numbers<[1], [0], [0], [1], [0, 0, 1, 1], [], []>} : vector<32x128xbf16>, vector<128x16xbf16>, vector<32x16xf32> -> vector<32x16xf32>
    %155 = arith.truncf %154 : vector<32x16xf32> to vector<32x16xbf16>
    %c11 = arith.constant 11 : index
    %c0_97 = arith.constant 0 : index
    %c0_98 = arith.constant 0 : index
    %156 = vector.load %arg5[%c11, %c0_97, %c0_98] : memref<16x32x128xbf16, #tpu.memory_space<vmem>>, vector<1x32x128xbf16>
    %157 = vector.shape_cast %156 : vector<1x32x128xbf16> to vector<32x128xbf16>
    %cst_99 = arith.constant dense<0.000000e+00> : vector<32x16xf32>
    %158 = tpu.matmul %157, %111, %cst_99 {dimension_numbers = #tpu.dot_dimension_numbers<[1], [0], [0], [1], [0, 0, 1, 1], [], []>} : vector<32x128xbf16>, vector<128x16xbf16>, vector<32x16xf32> -> vector<32x16xf32>
    %159 = arith.truncf %158 : vector<32x16xf32> to vector<32x16xbf16>
    %c12 = arith.constant 12 : index
    %c0_100 = arith.constant 0 : index
    %c0_101 = arith.constant 0 : index
    %160 = vector.load %arg5[%c12, %c0_100, %c0_101] : memref<16x32x128xbf16, #tpu.memory_space<vmem>>, vector<1x32x128xbf16>
    %161 = vector.shape_cast %160 : vector<1x32x128xbf16> to vector<32x128xbf16>
    %cst_102 = arith.constant dense<0.000000e+00> : vector<32x16xf32>
    %162 = tpu.matmul %161, %111, %cst_102 {dimension_numbers = #tpu.dot_dimension_numbers<[1], [0], [0], [1], [0, 0, 1, 1], [], []>} : vector<32x128xbf16>, vector<128x16xbf16>, vector<32x16xf32> -> vector<32x16xf32>
    %163 = arith.truncf %162 : vector<32x16xf32> to vector<32x16xbf16>
    %c13 = arith.constant 13 : index
    %c0_103 = arith.constant 0 : index
    %c0_104 = arith.constant 0 : index
    %164 = vector.load %arg5[%c13, %c0_103, %c0_104] : memref<16x32x128xbf16, #tpu.memory_space<vmem>>, vector<1x32x128xbf16>
    %165 = vector.shape_cast %164 : vector<1x32x128xbf16> to vector<32x128xbf16>
    %cst_105 = arith.constant dense<0.000000e+00> : vector<32x16xf32>
    %166 = tpu.matmul %165, %111, %cst_105 {dimension_numbers = #tpu.dot_dimension_numbers<[1], [0], [0], [1], [0, 0, 1, 1], [], []>} : vector<32x128xbf16>, vector<128x16xbf16>, vector<32x16xf32> -> vector<32x16xf32>
    %167 = arith.truncf %166 : vector<32x16xf32> to vector<32x16xbf16>
    %c14 = arith.constant 14 : index
    %c0_106 = arith.constant 0 : index
    %c0_107 = arith.constant 0 : index
    %168 = vector.load %arg5[%c14, %c0_106, %c0_107] : memref<16x32x128xbf16, #tpu.memory_space<vmem>>, vector<1x32x128xbf16>
    %169 = vector.shape_cast %168 : vector<1x32x128xbf16> to vector<32x128xbf16>
    %cst_108 = arith.constant dense<0.000000e+00> : vector<32x16xf32>
    %170 = tpu.matmul %169, %111, %cst_108 {dimension_numbers = #tpu.dot_dimension_numbers<[1], [0], [0], [1], [0, 0, 1, 1], [], []>} : vector<32x128xbf16>, vector<128x16xbf16>, vector<32x16xf32> -> vector<32x16xf32>
    %171 = arith.truncf %170 : vector<32x16xf32> to vector<32x16xbf16>
    %c15 = arith.constant 15 : index
    %c0_109 = arith.constant 0 : index
    %c0_110 = arith.constant 0 : index
    %172 = vector.load %arg5[%c15, %c0_109, %c0_110] : memref<16x32x128xbf16, #tpu.memory_space<vmem>>, vector<1x32x128xbf16>
    %173 = vector.shape_cast %172 : vector<1x32x128xbf16> to vector<32x128xbf16>
    %cst_111 = arith.constant dense<0.000000e+00> : vector<32x16xf32>
    %174 = tpu.matmul %173, %111, %cst_111 {dimension_numbers = #tpu.dot_dimension_numbers<[1], [0], [0], [1], [0, 0, 1, 1], [], []>} : vector<32x128xbf16>, vector<128x16xbf16>, vector<32x16xf32> -> vector<32x16xf32>
    %175 = arith.truncf %174 : vector<32x16xf32> to vector<32x16xbf16>
    %176 = tpu.concatenate %115, %119, %123, %127, %131, %135, %139, %143, %147, %151, %155, %159, %163, %167, %171, %175 in 1 : vector<32x16xbf16>, vector<32x16xbf16>, vector<32x16xbf16>, vector<32x16xbf16>, vector<32x16xbf16>, vector<32x16xbf16>, vector<32x16xbf16>, vector<32x16xbf16>, vector<32x16xbf16>, vector<32x16xbf16>, vector<32x16xbf16>, vector<32x16xbf16>, vector<32x16xbf16>, vector<32x16xbf16>, vector<32x16xbf16>, vector<32x16xbf16> -> vector<32x256xbf16>
    %c0_112 = arith.constant 0 : index
    %c0_113 = arith.constant 0 : index
    %177 = vector.load %arg6[%c0_112, %c0_113] : memref<256x32xbf16, #tpu.memory_space<vmem>>, vector<256x32xbf16>
    %cst_114 = arith.constant dense<0.000000e+00> : vector<32x32xf32>
    %178 = tpu.matmul %176, %177, %cst_114 {dimension_numbers = #tpu.dot_dimension_numbers<[1], [0], [0], [1], [0, 0, 1, 1], [], []>} : vector<32x256xbf16>, vector<256x32xbf16>, vector<32x32xf32> -> vector<32x32xf32>
    %cst_115 = arith.constant dense<0.000000e+00> : vector<32xf32>
    %179 = vector.multi_reduction <add>, %178, %cst_115 [0] : vector<32x32xf32> to vector<32xf32>
    %180 = vector.shape_cast %179 : vector<32xf32> to vector<1x32xf32>
    %cst_116 = arith.constant 3.125000e-02 : f32
    %181 = vector.broadcast %cst_116 : f32 to vector<1x32xf32>
    %182 = arith.mulf %180, %181 : vector<1x32xf32>
    %183 = arith.mulf %178, %178 : vector<32x32xf32>
    %cst_117 = arith.constant dense<0.000000e+00> : vector<32xf32>
    %184 = vector.multi_reduction <add>, %183, %cst_117 [0] : vector<32x32xf32> to vector<32xf32>
    %185 = vector.shape_cast %184 : vector<32xf32> to vector<1x32xf32>
    %cst_118 = arith.constant 3.125000e-02 : f32
    %186 = vector.broadcast %cst_118 : f32 to vector<1x32xf32>
    %187 = arith.mulf %185, %186 : vector<1x32xf32>
    %188 = arith.mulf %182, %182 : vector<1x32xf32>
    %189 = arith.subf %187, %188 : vector<1x32xf32>
    %cst_119 = arith.constant 0.000000e+00 : f32
    %190 = vector.broadcast %cst_119 : f32 to vector<1x32xf32>
    %191 = arith.maximumf %189, %190 : vector<1x32xf32>
    %c0_120 = arith.constant 0 : index
    %c0_121 = arith.constant 0 : index
    %192 = vector.load %arg7[%c0_120, %c0_121] : memref<1x32xf32, #tpu.memory_space<vmem>>, vector<1x32xf32>
    %cst_122 = arith.constant 9.99999974E-6 : f32
    %193 = vector.broadcast %cst_122 : f32 to vector<1x32xf32>
    %194 = arith.addf %191, %193 : vector<1x32xf32>
    %195 = math.rsqrt %194 : vector<1x32xf32>
    %196 = arith.mulf %192, %195 : vector<1x32xf32>
    %197 = vector.broadcast %182 : vector<1x32xf32> to vector<32x32xf32>
    %198 = arith.subf %178, %197 : vector<32x32xf32>
    %199 = vector.broadcast %196 : vector<1x32xf32> to vector<32x32xf32>
    %200 = arith.mulf %198, %199 : vector<32x32xf32>
    %c0_123 = arith.constant 0 : index
    %c0_124 = arith.constant 0 : index
    %201 = vector.load %arg8[%c0_123, %c0_124] : memref<1x32xf32, #tpu.memory_space<vmem>>, vector<1x32xf32>
    %202 = vector.broadcast %201 : vector<1x32xf32> to vector<32x32xf32>
    %203 = arith.addf %200, %202 : vector<32x32xf32>
    %cst_125 = arith.constant 0.000000e+00 : f32
    %204 = vector.broadcast %cst_125 : f32 to vector<32x32xf32>
    %205 = arith.maximumf %203, %204 : vector<32x32xf32>
    %206 = arith.truncf %205 : vector<32x32xf32> to vector<32x32xbf16>
    %cst_126 = arith.constant 0.000000e+00 : f32
    %207 = vector.broadcast %cst_126 : f32 to vector<2x32xf32>
    %208 = vector.extract_strided_slice %206 {offsets = [0, 0], sizes = [2, 32], strides = [1, 1]} : vector<32x32xbf16> to vector<2x32xbf16>
    %c0_127 = arith.constant 0 : index
    %c0_128 = arith.constant 0 : index
    %c0_129 = arith.constant 0 : index
    %209 = vector.load %arg9[%c0_127, %c0_128, %c0_129] : memref<16x32x32xbf16, #tpu.memory_space<vmem>>, vector<1x32x32xbf16>
    %210 = vector.shape_cast %209 : vector<1x32x32xbf16> to vector<32x32xbf16>
    %cst_130 = arith.constant dense<0.000000e+00> : vector<2x32xf32>
    %211 = tpu.matmul %208, %210, %cst_130 {dimension_numbers = #tpu.dot_dimension_numbers<[1], [0], [0], [1], [0, 0, 1, 1], [], []>} : vector<2x32xbf16>, vector<32x32xbf16>, vector<2x32xf32> -> vector<2x32xf32>
    %212 = arith.addf %207, %211 : vector<2x32xf32>
    %213 = vector.extract_strided_slice %206 {offsets = [2, 0], sizes = [2, 32], strides = [1, 1]} : vector<32x32xbf16> to vector<2x32xbf16>
    %c1_131 = arith.constant 1 : index
    %c0_132 = arith.constant 0 : index
    %c0_133 = arith.constant 0 : index
    %214 = vector.load %arg9[%c1_131, %c0_132, %c0_133] : memref<16x32x32xbf16, #tpu.memory_space<vmem>>, vector<1x32x32xbf16>
    %215 = vector.shape_cast %214 : vector<1x32x32xbf16> to vector<32x32xbf16>
    %cst_134 = arith.constant dense<0.000000e+00> : vector<2x32xf32>
    %216 = tpu.matmul %213, %215, %cst_134 {dimension_numbers = #tpu.dot_dimension_numbers<[1], [0], [0], [1], [0, 0, 1, 1], [], []>} : vector<2x32xbf16>, vector<32x32xbf16>, vector<2x32xf32> -> vector<2x32xf32>
    %217 = arith.addf %212, %216 : vector<2x32xf32>
    %218 = vector.extract_strided_slice %206 {offsets = [4, 0], sizes = [2, 32], strides = [1, 1]} : vector<32x32xbf16> to vector<2x32xbf16>
    %c2_135 = arith.constant 2 : index
    %c0_136 = arith.constant 0 : index
    %c0_137 = arith.constant 0 : index
    %219 = vector.load %arg9[%c2_135, %c0_136, %c0_137] : memref<16x32x32xbf16, #tpu.memory_space<vmem>>, vector<1x32x32xbf16>
    %220 = vector.shape_cast %219 : vector<1x32x32xbf16> to vector<32x32xbf16>
    %cst_138 = arith.constant dense<0.000000e+00> : vector<2x32xf32>
    %221 = tpu.matmul %218, %220, %cst_138 {dimension_numbers = #tpu.dot_dimension_numbers<[1], [0], [0], [1], [0, 0, 1, 1], [], []>} : vector<2x32xbf16>, vector<32x32xbf16>, vector<2x32xf32> -> vector<2x32xf32>
    %222 = arith.addf %217, %221 : vector<2x32xf32>
    %223 = vector.extract_strided_slice %206 {offsets = [6, 0], sizes = [2, 32], strides = [1, 1]} : vector<32x32xbf16> to vector<2x32xbf16>
    %c3_139 = arith.constant 3 : index
    %c0_140 = arith.constant 0 : index
    %c0_141 = arith.constant 0 : index
    %224 = vector.load %arg9[%c3_139, %c0_140, %c0_141] : memref<16x32x32xbf16, #tpu.memory_space<vmem>>, vector<1x32x32xbf16>
    %225 = vector.shape_cast %224 : vector<1x32x32xbf16> to vector<32x32xbf16>
    %cst_142 = arith.constant dense<0.000000e+00> : vector<2x32xf32>
    %226 = tpu.matmul %223, %225, %cst_142 {dimension_numbers = #tpu.dot_dimension_numbers<[1], [0], [0], [1], [0, 0, 1, 1], [], []>} : vector<2x32xbf16>, vector<32x32xbf16>, vector<2x32xf32> -> vector<2x32xf32>
    %227 = arith.addf %222, %226 : vector<2x32xf32>
    %228 = vector.extract_strided_slice %206 {offsets = [8, 0], sizes = [2, 32], strides = [1, 1]} : vector<32x32xbf16> to vector<2x32xbf16>
    %c4_143 = arith.constant 4 : index
    %c0_144 = arith.constant 0 : index
    %c0_145 = arith.constant 0 : index
    %229 = vector.load %arg9[%c4_143, %c0_144, %c0_145] : memref<16x32x32xbf16, #tpu.memory_space<vmem>>, vector<1x32x32xbf16>
    %230 = vector.shape_cast %229 : vector<1x32x32xbf16> to vector<32x32xbf16>
    %cst_146 = arith.constant dense<0.000000e+00> : vector<2x32xf32>
    %231 = tpu.matmul %228, %230, %cst_146 {dimension_numbers = #tpu.dot_dimension_numbers<[1], [0], [0], [1], [0, 0, 1, 1], [], []>} : vector<2x32xbf16>, vector<32x32xbf16>, vector<2x32xf32> -> vector<2x32xf32>
    %232 = arith.addf %227, %231 : vector<2x32xf32>
    %233 = vector.extract_strided_slice %206 {offsets = [10, 0], sizes = [2, 32], strides = [1, 1]} : vector<32x32xbf16> to vector<2x32xbf16>
    %c5_147 = arith.constant 5 : index
    %c0_148 = arith.constant 0 : index
    %c0_149 = arith.constant 0 : index
    %234 = vector.load %arg9[%c5_147, %c0_148, %c0_149] : memref<16x32x32xbf16, #tpu.memory_space<vmem>>, vector<1x32x32xbf16>
    %235 = vector.shape_cast %234 : vector<1x32x32xbf16> to vector<32x32xbf16>
    %cst_150 = arith.constant dense<0.000000e+00> : vector<2x32xf32>
    %236 = tpu.matmul %233, %235, %cst_150 {dimension_numbers = #tpu.dot_dimension_numbers<[1], [0], [0], [1], [0, 0, 1, 1], [], []>} : vector<2x32xbf16>, vector<32x32xbf16>, vector<2x32xf32> -> vector<2x32xf32>
    %237 = arith.addf %232, %236 : vector<2x32xf32>
    %238 = vector.extract_strided_slice %206 {offsets = [12, 0], sizes = [2, 32], strides = [1, 1]} : vector<32x32xbf16> to vector<2x32xbf16>
    %c6_151 = arith.constant 6 : index
    %c0_152 = arith.constant 0 : index
    %c0_153 = arith.constant 0 : index
    %239 = vector.load %arg9[%c6_151, %c0_152, %c0_153] : memref<16x32x32xbf16, #tpu.memory_space<vmem>>, vector<1x32x32xbf16>
    %240 = vector.shape_cast %239 : vector<1x32x32xbf16> to vector<32x32xbf16>
    %cst_154 = arith.constant dense<0.000000e+00> : vector<2x32xf32>
    %241 = tpu.matmul %238, %240, %cst_154 {dimension_numbers = #tpu.dot_dimension_numbers<[1], [0], [0], [1], [0, 0, 1, 1], [], []>} : vector<2x32xbf16>, vector<32x32xbf16>, vector<2x32xf32> -> vector<2x32xf32>
    %242 = arith.addf %237, %241 : vector<2x32xf32>
    %243 = vector.extract_strided_slice %206 {offsets = [14, 0], sizes = [2, 32], strides = [1, 1]} : vector<32x32xbf16> to vector<2x32xbf16>
    %c7_155 = arith.constant 7 : index
    %c0_156 = arith.constant 0 : index
    %c0_157 = arith.constant 0 : index
    %244 = vector.load %arg9[%c7_155, %c0_156, %c0_157] : memref<16x32x32xbf16, #tpu.memory_space<vmem>>, vector<1x32x32xbf16>
    %245 = vector.shape_cast %244 : vector<1x32x32xbf16> to vector<32x32xbf16>
    %cst_158 = arith.constant dense<0.000000e+00> : vector<2x32xf32>
    %246 = tpu.matmul %243, %245, %cst_158 {dimension_numbers = #tpu.dot_dimension_numbers<[1], [0], [0], [1], [0, 0, 1, 1], [], []>} : vector<2x32xbf16>, vector<32x32xbf16>, vector<2x32xf32> -> vector<2x32xf32>
    %247 = arith.addf %242, %246 : vector<2x32xf32>
    %248 = vector.extract_strided_slice %206 {offsets = [16, 0], sizes = [2, 32], strides = [1, 1]} : vector<32x32xbf16> to vector<2x32xbf16>
    %c8_159 = arith.constant 8 : index
    %c0_160 = arith.constant 0 : index
    %c0_161 = arith.constant 0 : index
    %249 = vector.load %arg9[%c8_159, %c0_160, %c0_161] : memref<16x32x32xbf16, #tpu.memory_space<vmem>>, vector<1x32x32xbf16>
    %250 = vector.shape_cast %249 : vector<1x32x32xbf16> to vector<32x32xbf16>
    %cst_162 = arith.constant dense<0.000000e+00> : vector<2x32xf32>
    %251 = tpu.matmul %248, %250, %cst_162 {dimension_numbers = #tpu.dot_dimension_numbers<[1], [0], [0], [1], [0, 0, 1, 1], [], []>} : vector<2x32xbf16>, vector<32x32xbf16>, vector<2x32xf32> -> vector<2x32xf32>
    %252 = arith.addf %247, %251 : vector<2x32xf32>
    %253 = vector.extract_strided_slice %206 {offsets = [18, 0], sizes = [2, 32], strides = [1, 1]} : vector<32x32xbf16> to vector<2x32xbf16>
    %c9_163 = arith.constant 9 : index
    %c0_164 = arith.constant 0 : index
    %c0_165 = arith.constant 0 : index
    %254 = vector.load %arg9[%c9_163, %c0_164, %c0_165] : memref<16x32x32xbf16, #tpu.memory_space<vmem>>, vector<1x32x32xbf16>
    %255 = vector.shape_cast %254 : vector<1x32x32xbf16> to vector<32x32xbf16>
    %cst_166 = arith.constant dense<0.000000e+00> : vector<2x32xf32>
    %256 = tpu.matmul %253, %255, %cst_166 {dimension_numbers = #tpu.dot_dimension_numbers<[1], [0], [0], [1], [0, 0, 1, 1], [], []>} : vector<2x32xbf16>, vector<32x32xbf16>, vector<2x32xf32> -> vector<2x32xf32>
    %257 = arith.addf %252, %256 : vector<2x32xf32>
    %258 = vector.extract_strided_slice %206 {offsets = [20, 0], sizes = [2, 32], strides = [1, 1]} : vector<32x32xbf16> to vector<2x32xbf16>
    %c10_167 = arith.constant 10 : index
    %c0_168 = arith.constant 0 : index
    %c0_169 = arith.constant 0 : index
    %259 = vector.load %arg9[%c10_167, %c0_168, %c0_169] : memref<16x32x32xbf16, #tpu.memory_space<vmem>>, vector<1x32x32xbf16>
    %260 = vector.shape_cast %259 : vector<1x32x32xbf16> to vector<32x32xbf16>
    %cst_170 = arith.constant dense<0.000000e+00> : vector<2x32xf32>
    %261 = tpu.matmul %258, %260, %cst_170 {dimension_numbers = #tpu.dot_dimension_numbers<[1], [0], [0], [1], [0, 0, 1, 1], [], []>} : vector<2x32xbf16>, vector<32x32xbf16>, vector<2x32xf32> -> vector<2x32xf32>
    %262 = arith.addf %257, %261 : vector<2x32xf32>
    %263 = vector.extract_strided_slice %206 {offsets = [22, 0], sizes = [2, 32], strides = [1, 1]} : vector<32x32xbf16> to vector<2x32xbf16>
    %c11_171 = arith.constant 11 : index
    %c0_172 = arith.constant 0 : index
    %c0_173 = arith.constant 0 : index
    %264 = vector.load %arg9[%c11_171, %c0_172, %c0_173] : memref<16x32x32xbf16, #tpu.memory_space<vmem>>, vector<1x32x32xbf16>
    %265 = vector.shape_cast %264 : vector<1x32x32xbf16> to vector<32x32xbf16>
    %cst_174 = arith.constant dense<0.000000e+00> : vector<2x32xf32>
    %266 = tpu.matmul %263, %265, %cst_174 {dimension_numbers = #tpu.dot_dimension_numbers<[1], [0], [0], [1], [0, 0, 1, 1], [], []>} : vector<2x32xbf16>, vector<32x32xbf16>, vector<2x32xf32> -> vector<2x32xf32>
    %267 = arith.addf %262, %266 : vector<2x32xf32>
    %268 = vector.extract_strided_slice %206 {offsets = [24, 0], sizes = [2, 32], strides = [1, 1]} : vector<32x32xbf16> to vector<2x32xbf16>
    %c12_175 = arith.constant 12 : index
    %c0_176 = arith.constant 0 : index
    %c0_177 = arith.constant 0 : index
    %269 = vector.load %arg9[%c12_175, %c0_176, %c0_177] : memref<16x32x32xbf16, #tpu.memory_space<vmem>>, vector<1x32x32xbf16>
    %270 = vector.shape_cast %269 : vector<1x32x32xbf16> to vector<32x32xbf16>
    %cst_178 = arith.constant dense<0.000000e+00> : vector<2x32xf32>
    %271 = tpu.matmul %268, %270, %cst_178 {dimension_numbers = #tpu.dot_dimension_numbers<[1], [0], [0], [1], [0, 0, 1, 1], [], []>} : vector<2x32xbf16>, vector<32x32xbf16>, vector<2x32xf32> -> vector<2x32xf32>
    %272 = arith.addf %267, %271 : vector<2x32xf32>
    %273 = vector.extract_strided_slice %206 {offsets = [26, 0], sizes = [2, 32], strides = [1, 1]} : vector<32x32xbf16> to vector<2x32xbf16>
    %c13_179 = arith.constant 13 : index
    %c0_180 = arith.constant 0 : index
    %c0_181 = arith.constant 0 : index
    %274 = vector.load %arg9[%c13_179, %c0_180, %c0_181] : memref<16x32x32xbf16, #tpu.memory_space<vmem>>, vector<1x32x32xbf16>
    %275 = vector.shape_cast %274 : vector<1x32x32xbf16> to vector<32x32xbf16>
    %cst_182 = arith.constant dense<0.000000e+00> : vector<2x32xf32>
    %276 = tpu.matmul %273, %275, %cst_182 {dimension_numbers = #tpu.dot_dimension_numbers<[1], [0], [0], [1], [0, 0, 1, 1], [], []>} : vector<2x32xbf16>, vector<32x32xbf16>, vector<2x32xf32> -> vector<2x32xf32>
    %277 = arith.addf %272, %276 : vector<2x32xf32>
    %278 = vector.extract_strided_slice %206 {offsets = [28, 0], sizes = [2, 32], strides = [1, 1]} : vector<32x32xbf16> to vector<2x32xbf16>
    %c14_183 = arith.constant 14 : index
    %c0_184 = arith.constant 0 : index
    %c0_185 = arith.constant 0 : index
    %279 = vector.load %arg9[%c14_183, %c0_184, %c0_185] : memref<16x32x32xbf16, #tpu.memory_space<vmem>>, vector<1x32x32xbf16>
    %280 = vector.shape_cast %279 : vector<1x32x32xbf16> to vector<32x32xbf16>
    %cst_186 = arith.constant dense<0.000000e+00> : vector<2x32xf32>
    %281 = tpu.matmul %278, %280, %cst_186 {dimension_numbers = #tpu.dot_dimension_numbers<[1], [0], [0], [1], [0, 0, 1, 1], [], []>} : vector<2x32xbf16>, vector<32x32xbf16>, vector<2x32xf32> -> vector<2x32xf32>
    %282 = arith.addf %277, %281 : vector<2x32xf32>
    %283 = vector.extract_strided_slice %206 {offsets = [30, 0], sizes = [2, 32], strides = [1, 1]} : vector<32x32xbf16> to vector<2x32xbf16>
    %c15_187 = arith.constant 15 : index
    %c0_188 = arith.constant 0 : index
    %c0_189 = arith.constant 0 : index
    %284 = vector.load %arg9[%c15_187, %c0_188, %c0_189] : memref<16x32x32xbf16, #tpu.memory_space<vmem>>, vector<1x32x32xbf16>
    %285 = vector.shape_cast %284 : vector<1x32x32xbf16> to vector<32x32xbf16>
    %cst_190 = arith.constant dense<0.000000e+00> : vector<2x32xf32>
    %286 = tpu.matmul %283, %285, %cst_190 {dimension_numbers = #tpu.dot_dimension_numbers<[1], [0], [0], [1], [0, 0, 1, 1], [], []>} : vector<2x32xbf16>, vector<32x32xbf16>, vector<2x32xf32> -> vector<2x32xf32>
    %287 = arith.addf %282, %286 : vector<2x32xf32>
    %c0_191 = arith.constant 0 : index
    %c0_192 = arith.constant 0 : index
    %288 = vector.load %arg10[%c0_191, %c0_192] : memref<2x32xf32, #tpu.memory_space<vmem>>, vector<2x32xf32>
    tpu.vector_store %arg10[%c0_191, %c0_192], %287 {strides = array<i32>} : memref<2x32xf32, #tpu.memory_space<vmem>>, vector<2x32xf32>,
    return
  }
}

</mosaic_0001>

<llo_original>
// kernel: encoder32_vae_forward.1
$region0: #{encoder32_vae_forward.1}
  #allocation0 [shape = 'u32[]', space=smem, size = 0x4, offset = 0x4, fixed_abs, tag = 'smem constant byte address 0x4 - core index']
  #allocation1 [shape = 'u32[72,128]{1,0:T(1,128)}', space=vmem, size = 0x9000, scoped, tag = 'internal scratch']
  %s0 = inlined_call_operand.vmem [shape: bf16[2048,128], index: 0, kind: input, shape index: {}]
  %s1 = inlined_call_operand.vmem [shape: bf16[128,8], index: 1, kind: input, shape index: {}]
  %s2 = inlined_call_operand.vmem [shape: bf16[128,16], index: 2, kind: input, shape index: {}]
  %s3 = inlined_call_operand.vmem [shape: f32[1,16], index: 3, kind: input, shape index: {}]
  %s4 = inlined_call_operand.vmem [shape: f32[1,16], index: 4, kind: input, shape index: {}]
  %s5 = inlined_call_operand.vmem [shape: bf16[16,32,128], index: 5, kind: input, shape index: {}]
  %s6 = inlined_call_operand.vmem [shape: bf16[256,32], index: 6, kind: input, shape index: {}]
  %s7 = inlined_call_operand.vmem [shape: f32[1,32], index: 7, kind: input, shape index: {}]
  %s8 = inlined_call_operand.vmem [shape: f32[1,32], index: 8, kind: input, shape index: {}]
  %s9 = inlined_call_operand.vmem [shape: bf16[16,32,32], index: 9, kind: input, shape index: {}]
  %s10 = inlined_call_operand.vmem [shape: f32[2,32], index: 10, kind: output, shape index: {}]
  %s11 = sld [smem:[#allocation0]]
  $region50: #{encoder32_vae_forward.1} parent=0
    _
  %s13 = ssub.s32 1, %s11
  %s14 = scalar_select 0, %s13, %s11
  // Predicated region
  $region2: #{encoder32_vae_forward.1} parent=0 // pred_check
    _
  $region3: #{encoder32_vae_forward.1} parent=0 // pred_check_branch
    %16 = sbr.rel (0) target = $region5
  $region4: #{encoder32_vae_forward.1} parent=0 // pred_region
    _
  $region5: #{encoder32_vae_forward.1} parent=0 // pred_fallthru
    _
  // Predicated region
  $region6: #{encoder32_vae_forward.1} parent=0 // pred_check
    _
  $region7: #{encoder32_vae_forward.1} parent=0 // pred_check_branch
    %18 = sbr.rel (0) target = $region9
  $region8: #{encoder32_vae_forward.1} parent=0 // pred_region
    _
  $region9: #{encoder32_vae_forward.1} parent=0 // pred_fallthru
    _
  // Predicated region
  $region10: #{encoder32_vae_forward.1} parent=0 // pred_check
    _
  $region11: #{encoder32_vae_forward.1} parent=0 // pred_check_branch
    %20 = sbr.rel (0) target = $region13
  $region12: #{encoder32_vae_forward.1} parent=0 // pred_region
    _
  $region13: #{encoder32_vae_forward.1} parent=0 // pred_fallthru
    _
  // Predicated region
  $region14: #{encoder32_vae_forward.1} parent=0 // pred_check
    _
  $region15: #{encoder32_vae_forward.1} parent=0 // pred_check_branch
    %22 = sbr.rel (0) target = $region17
  $region16: #{encoder32_vae_forward.1} parent=0 // pred_region
    _
  $region17: #{encoder32_vae_forward.1} parent=0 // pred_fallthru
    _
  // Predicated region
  $region18: #{encoder32_vae_forward.1} parent=0 // pred_check
    _
  $region19: #{encoder32_vae_forward.1} parent=0 // pred_check_branch
    %24 = sbr.rel (0) target = $region21
  $region20: #{encoder32_vae_forward.1} parent=0 // pred_region
    _
  $region21: #{encoder32_vae_forward.1} parent=0 // pred_fallthru
    _
  // Predicated region
  $region22: #{encoder32_vae_forward.1} parent=0 // pred_check
    _
  $region23: #{encoder32_vae_forward.1} parent=0 // pred_check_branch
    %26 = sbr.rel (0) target = $region25
  $region24: #{encoder32_vae_forward.1} parent=0 // pred_region
    _
  $region25: #{encoder32_vae_forward.1} parent=0 // pred_fallthru
    _
  // Predicated region
  $region26: #{encoder32_vae_forward.1} parent=0 // pred_check
    _
  $region27: #{encoder32_vae_forward.1} parent=0 // pred_check_branch
    %28 = sbr.rel (0) target = $region29
  $region28: #{encoder32_vae_forward.1} parent=0 // pred_region
    _
  $region29: #{encoder32_vae_forward.1} parent=0 // pred_fallthru
    _
  // Predicated region
  $region30: #{encoder32_vae_forward.1} parent=0 // pred_check
    _
  $region31: #{encoder32_vae_forward.1} parent=0 // pred_check_branch
    %30 = sbr.rel (0) target = $region33
  $region32: #{encoder32_vae_forward.1} parent=0 // pred_region
    _
  $region33: #{encoder32_vae_forward.1} parent=0 // pred_fallthru
    _
  // Predicated region
  $region34: #{encoder32_vae_forward.1} parent=0 // pred_check
    _
  $region35: #{encoder32_vae_forward.1} parent=0 // pred_check_branch
    %32 = sbr.rel (0) target = $region37
  $region36: #{encoder32_vae_forward.1} parent=0 // pred_region
    _
  $region37: #{encoder32_vae_forward.1} parent=0 // pred_fallthru
    _
  // Predicated region
  $region38: #{encoder32_vae_forward.1} parent=0 // pred_check
    _
  $region39: #{encoder32_vae_forward.1} parent=0 // pred_check_branch
    %34 = sbr.rel (0) target = $region41
  $region40: #{encoder32_vae_forward.1} parent=0 // pred_region
    _
  $region41: #{encoder32_vae_forward.1} parent=0 // pred_fallthru
    _
  %v36 = vld [vmem:[%s1] sm:$0xf]
  %v37 = vld [vmem:[%s1 + $0x4] sm:$0xf]
  %v38 = vld [vmem:[%s1 + $0x8] sm:$0xf]
  %v39 = vld [vmem:[%s1 + $0xc] sm:$0xf]
  %v40 = vld [vmem:[%s1 + $0x10] sm:$0xf]
  %v41 = vld [vmem:[%s1 + $0x14] sm:$0xf]
  %v42 = vld [vmem:[%s1 + $0x18] sm:$0xf]
  %v43 = vld [vmem:[%s1 + $0x1c] sm:$0xf]
  %v44 = vld [vmem:[%s1 + $0x20] sm:$0xf]
  %v45 = vld [vmem:[%s1 + $0x24] sm:$0xf]
  %v46 = vld [vmem:[%s1 + $0x28] sm:$0xf]
  %v47 = vld [vmem:[%s1 + $0x2c] sm:$0xf]
  %v48 = vld [vmem:[%s1 + $0x30] sm:$0xf]
  %v49 = vld [vmem:[%s1 + $0x34] sm:$0xf]
  %v50 = vld [vmem:[%s1 + $0x38] sm:$0xf]
  %v51 = vld [vmem:[%s1 + $0x3c] sm:$0xf]
  %v52 = vld [vmem:[%s0] sm:$0xf]
  %v53 = vld [vmem:[%s0 + $0x4] sm:$0xf]
  %v54 = vld [vmem:[%s0 + $0x8] sm:$0xf]
  %v55 = vld [vmem:[%s0 + $0xc] sm:$0xf]
  %v56 = vld [vmem:[%s0 + $0x10] sm:$0xf]
  %v57 = vld [vmem:[%s0 + $0x14] sm:$0xf]
  %v58 = vld [vmem:[%s0 + $0x18] sm:$0xf]
  %v59 = vld [vmem:[%s0 + $0x1c] sm:$0xf]
  %v60 = vld [vmem:[%s0 + $0x20] sm:$0xf]
  %v61 = vld [vmem:[%s0 + $0x24] sm:$0xf]
  %v62 = vld [vmem:[%s0 + $0x28] sm:$0xf]
  %v63 = vld [vmem:[%s0 + $0x2c] sm:$0xf]
  %v64 = vld [vmem:[%s0 + $0x30] sm:$0xf]
  %v65 = vld [vmem:[%s0 + $0x34] sm:$0xf]
  %v66 = vld [vmem:[%s0 + $0x38] sm:$0xf]
  %v67 = vld [vmem:[%s0 + $0x3c] sm:$0xf]
  %v84 = vunpack.c.l.b16 %v52
  %v85 = vunpack.c.l.b16 %v53
  %v86 = vunpack.c.l.b16 %v54
  %v87 = vunpack.c.l.b16 %v55
  %v88 = vunpack.c.l.b16 %v56
  %v89 = vunpack.c.l.b16 %v57
  %v90 = vunpack.c.l.b16 %v58
  %v91 = vunpack.c.l.b16 %v59
  %v92 = vunpack.c.l.b16 %v60
  %v93 = vunpack.c.l.b16 %v61
  %v94 = vunpack.c.l.b16 %v62
  %v95 = vunpack.c.l.b16 %v63
  %v96 = vunpack.c.l.b16 %v64
  %v97 = vunpack.c.l.b16 %v65
  %v98 = vunpack.c.l.b16 %v66
  %v99 = vunpack.c.l.b16 %v67
  %v100 = vpack.c.b16 %v85, %v84
  %v101 = vpack.c.b16 %v87, %v86
  %v102 = vpack.c.b16 %v89, %v88
  %v103 = vpack.c.b16 %v91, %v90
  %v104 = vpack.c.b16 %v93, %v92
  %v105 = vpack.c.b16 %v95, %v94
  %v106 = vpack.c.b16 %v97, %v96
  %v107 = vpack.c.b16 %v99, %v98
  %v132 = vunpack.c.l.b16 %v36
  %v133 = vunpack.c.l.b16 %v37
  %v134 = vunpack.c.l.b16 %v38
  %v135 = vunpack.c.l.b16 %v39
  %v136 = vunpack.c.l.b16 %v40
  %v137 = vunpack.c.l.b16 %v41
  %v138 = vunpack.c.l.b16 %v42
  %v139 = vunpack.c.l.b16 %v43
  %v140 = vunpack.c.l.b16 %v44
  %v141 = vunpack.c.l.b16 %v45
  %v142 = vunpack.c.l.b16 %v46
  %v143 = vunpack.c.l.b16 %v47
  %v144 = vunpack.c.l.b16 %v48
  %v145 = vunpack.c.l.b16 %v49
  %v146 = vunpack.c.l.b16 %v50
  %v147 = vunpack.c.l.b16 %v51
  %v148 = vpack.c.b16 %v133, %v132
  %v149 = vpack.c.b16 %v135, %v134
  %v150 = vpack.c.b16 %v137, %v136
  %v151 = vpack.c.b16 %v139, %v138
  %v152 = vpack.c.b16 %v141, %v140
  %v153 = vpack.c.b16 %v143, %v142
  %v154 = vpack.c.b16 %v145, %v144
  %v155 = vpack.c.b16 %v147, %v146
  %164 = vmatpush.bf16.msra.mxu0 %v155
  %165 = vmatpush.bf16.msra.mxu0 %v154
  %166 = vmatpush.bf16.msra.mxu0 %v153
  %167 = vmatpush.bf16.msra.mxu0 %v152
  %168 = vmatpush.bf16.msra.mxu0 %v151
  %169 = vmatpush.bf16.msra.mxu0 %v150
  %170 = vmatpush.bf16.msra.mxu0 %v149
  %171 = vmatpush.bf16.msra.mxu0 %v148
  %172 = vmatmul.bf16.gmra.mxu0 %v100
  %v173 = vpop.f32.mrf.mxu0
  %v174 = vadd.f32 0.0, %v173
  %v175 = vpop.f32.mrf.mxu0
  %v176 = vadd.f32 0.0, %v175
  %177 = vmatmul.bf16.gmra.mxu0 %v101
  %v178 = vpop.f32.mrf.mxu0
  %v179 = vadd.f32 0.0, %v178
  %v180 = vpop.f32.mrf.mxu0
  %v181 = vadd.f32 0.0, %v180
  %182 = vmatmul.bf16.gmra.mxu0 %v102
  %v183 = vpop.f32.mrf.mxu0
  %v184 = vadd.f32 0.0, %v183
  %v185 = vpop.f32.mrf.mxu0
  %v186 = vadd.f32 0.0, %v185
  %187 = vmatmul.bf16.gmra.mxu0 %v103
  %v188 = vpop.f32.mrf.mxu0
  %v189 = vadd.f32 0.0, %v188
  %v190 = vpop.f32.mrf.mxu0
  %v191 = vadd.f32 0.0, %v190
  %192 = vmatmul.bf16.gmra.mxu0 %v104
  %v193 = vpop.f32.mrf.mxu0
  %v194 = vadd.f32 0.0, %v193
  %v195 = vpop.f32.mrf.mxu0
  %v196 = vadd.f32 0.0, %v195
  %197 = vmatmul.bf16.gmra.mxu0 %v105
  %v198 = vpop.f32.mrf.mxu0
  %v199 = vadd.f32 0.0, %v198
  %v200 = vpop.f32.mrf.mxu0
  %v201 = vadd.f32 0.0, %v200
  %202 = vmatmul.bf16.gmra.mxu0 %v106
  %v203 = vpop.f32.mrf.mxu0
  %v204 = vadd.f32 0.0, %v203
  %v205 = vpop.f32.mrf.mxu0
  %v206 = vadd.f32 0.0, %v205
  %207 = vmatmul.bf16.gmra.mxu0 %v107
  %v208 = vpop.f32.mrf.mxu0
  %v209 = vadd.f32 0.0, %v208
  %v210 = vpop.f32.mrf.mxu0
  %v211 = vadd.f32 0.0, %v210
  %212 = vdwg.mxu0
  %v213 = vmax.f32 %v174, 0.0
  %v214 = vmax.f32 %v176, 0.0
  %v215 = vmax.f32 %v179, 0.0
  %v216 = vmax.f32 %v181, 0.0
  %v217 = vmax.f32 %v184, 0.0
  %v218 = vmax.f32 %v186, 0.0
  %v219 = vmax.f32 %v189, 0.0
  %v220 = vmax.f32 %v191, 0.0
  %v221 = vmax.f32 %v194, 0.0
  %v222 = vmax.f32 %v196, 0.0
  %v223 = vmax.f32 %v199, 0.0
  %v224 = vmax.f32 %v201, 0.0
  %v225 = vmax.f32 %v204, 0.0
  %v226 = vmax.f32 %v206, 0.0
  %v227 = vmax.f32 %v209, 0.0
  %v228 = vmax.f32 %v211, 0.0
  %v229 = vpack.c.bf16 %v213, %v213
  %v230 = vpack.c.bf16 %v214, %v214
  %v231 = vpack.c.bf16 %v215, %v215
  %v232 = vpack.c.bf16 %v216, %v216
  %v233 = vpack.c.bf16 %v217, %v217
  %v234 = vpack.c.bf16 %v218, %v218
  %v235 = vpack.c.bf16 %v219, %v219
  %v236 = vpack.c.bf16 %v220, %v220
  %v237 = vpack.c.bf16 %v221, %v221
  %v238 = vpack.c.bf16 %v222, %v222
  %v239 = vpack.c.bf16 %v223, %v223
  %v240 = vpack.c.bf16 %v224, %v224
  %v241 = vpack.c.bf16 %v225, %v225
  %v242 = vpack.c.bf16 %v226, %v226
  %v243 = vpack.c.bf16 %v227, %v227
  %v244 = vpack.c.bf16 %v228, %v228
  %v245 = vld [vmem:[%s0 + $0x40] sm:$0xf]
  %v246 = vld [vmem:[%s0 + $0x44] sm:$0xf]
  %v247 = vld [vmem:[%s0 + $0x48] sm:$0xf]
  %v248 = vld [vmem:[%s0 + $0x4c] sm:$0xf]
  %v249 = vld [vmem:[%s0 + $0x50] sm:$0xf]
  %v250 = vld [vmem:[%s0 + $0x54] sm:$0xf]
  %v251 = vld [vmem:[%s0 + $0x58] sm:$0xf]
  %v252 = vld [vmem:[%s0 + $0x5c] sm:$0xf]
  %v253 = vld [vmem:[%s0 + $0x60] sm:$0xf]
  %v254 = vld [vmem:[%s0 + $0x64] sm:$0xf]
  %v255 = vld [vmem:[%s0 + $0x68] sm:$0xf]
  %v256 = vld [vmem:[%s0 + $0x6c] sm:$0xf]
  %v257 = vld [vmem:[%s0 + $0x70] sm:$0xf]
  %v258 = vld [vmem:[%s0 + $0x74] sm:$0xf]
  %v259 = vld [vmem:[%s0 + $0x78] sm:$0xf]
  %v260 = vld [vmem:[%s0 + $0x7c] sm:$0xf]
  %v277 = vunpack.c.l.b16 %v245
  %v278 = vunpack.c.l.b16 %v246
  %v279 = vunpack.c.l.b16 %v247
  %v280 = vunpack.c.l.b16 %v248
  %v281 = vunpack.c.l.b16 %v249
  %v282 = vunpack.c.l.b16 %v250
  %v283 = vunpack.c.l.b16 %v251
  %v284 = vunpack.c.l.b16 %v252
  %v285 = vunpack.c.l.b16 %v253
  %v286 = vunpack.c.l.b16 %v254
  %v287 = vunpack.c.l.b16 %v255
  %v288 = vunpack.c.l.b16 %v256
  %v289 = vunpack.c.l.b16 %v257
  %v290 = vunpack.c.l.b16 %v258
  %v291 = vunpack.c.l.b16 %v259
  %v292 = vunpack.c.l.b16 %v260
  %v293 = vpack.c.b16 %v278, %v277
  %v294 = vpack.c.b16 %v280, %v279
  %v295 = vpack.c.b16 %v282, %v281
  %v296 = vpack.c.b16 %v284, %v283
  %v297 = vpack.c.b16 %v286, %v285
  %v298 = vpack.c.b16 %v288, %v287
  %v299 = vpack.c.b16 %v290, %v289
  %v300 = vpack.c.b16 %v292, %v291
  %309 = vmatpush.bf16.msra.mxu0 %v155
  %310 = vmatpush.bf16.msra.mxu0 %v154
  %311 = vmatpush.bf16.msra.mxu0 %v153
  %312 = vmatpush.bf16.msra.mxu0 %v152
  %313 = vmatpush.bf16.msra.mxu0 %v151
  %314 = vmatpush.bf16.msra.mxu0 %v150
  %315 = vmatpush.bf16.msra.mxu0 %v149
  %316 = vmatpush.bf16.msra.mxu0 %v148
  %317 = vmatmul.bf16.gmra.mxu0 %v293
  %v318 = vpop.f32.mrf.mxu0
  %v319 = vadd.f32 0.0, %v318
  %v320 = vpop.f32.mrf.mxu0
  %v321 = vadd.f32 0.0, %v320
  %322 = vmatmul.bf16.gmra.mxu0 %v294
  %v323 = vpop.f32.mrf.mxu0
  %v324 = vadd.f32 0.0, %v323
  %v325 = vpop.f32.mrf.mxu0
  %v326 = vadd.f32 0.0, %v325
  %327 = vmatmul.bf16.gmra.mxu0 %v295
  %v328 = vpop.f32.mrf.mxu0
  %v329 = vadd.f32 0.0, %v328
  %v330 = vpop.f32.mrf.mxu0
  %v331 = vadd.f32 0.0, %v330
  %332 = vmatmul.bf16.gmra.mxu0 %v296
  %v333 = vpop.f32.mrf.mxu0
  %v334 = vadd.f32 0.0, %v333
  %v335 = vpop.f32.mrf.mxu0
  %v336 = vadd.f32 0.0, %v335
  %337 = vmatmul.bf16.gmra.mxu0 %v297
  %v338 = vpop.f32.mrf.mxu0
  %v339 = vadd.f32 0.0, %v338
  %v340 = vpop.f32.mrf.mxu0
  %v341 = vadd.f32 0.0, %v340
  %342 = vmatmul.bf16.gmra.mxu0 %v298
  %v343 = vpop.f32.mrf.mxu0
  %v344 = vadd.f32 0.0, %v343
  %v345 = vpop.f32.mrf.mxu0
  %v346 = vadd.f32 0.0, %v345
  %347 = vmatmul.bf16.gmra.mxu0 %v299
  %v348 = vpop.f32.mrf.mxu0
  %v349 = vadd.f32 0.0, %v348
  %v350 = vpop.f32.mrf.mxu0
  %v351 = vadd.f32 0.0, %v350
  %352 = vmatmul.bf16.gmra.mxu0 %v300
  %v353 = vpop.f32.mrf.mxu0
  %v354 = vadd.f32 0.0, %v353
  %v355 = vpop.f32.mrf.mxu0
  %v356 = vadd.f32 0.0, %v355
  %357 = vdwg.mxu0
  %v358 = vmax.f32 %v319, 0.0
  %v359 = vmax.f32 %v321, 0.0
  %v360 = vmax.f32 %v324, 0.0
  %v361 = vmax.f32 %v326, 0.0
  %v362 = vmax.f32 %v329, 0.0
  %v363 = vmax.f32 %v331, 0.0
  %v364 = vmax.f32 %v334, 0.0
  %v365 = vmax.f32 %v336, 0.0
  %v366 = vmax.f32 %v339, 0.0
  %v367 = vmax.f32 %v341, 0.0
  %v368 = vmax.f32 %v344, 0.0
  %v369 = vmax.f32 %v346, 0.0
  %v370 = vmax.f32 %v349, 0.0
  %v371 = vmax.f32 %v351, 0.0
  %v372 = vmax.f32 %v354, 0.0
  %v373 = vmax.f32 %v356, 0.0
  %v374 = vpack.c.bf16 %v358, %v358
  %v375 = vpack.c.bf16 %v359, %v359
  %v376 = vpack.c.bf16 %v360, %v360
  %v377 = vpack.c.bf16 %v361, %v361
  %v378 = vpack.c.bf16 %v362, %v362
  %v379 = vpack.c.bf16 %v363, %v363
  %v380 = vpack.c.bf16 %v364, %v364
  %v381 = vpack.c.bf16 %v365, %v365
  %v382 = vpack.c.bf16 %v366, %v366
  %v383 = vpack.c.bf16 %v367, %v367
  %v384 = vpack.c.bf16 %v368, %v368
  %v385 = vpack.c.bf16 %v369, %v369
  %v386 = vpack.c.bf16 %v370, %v370
  %v387 = vpack.c.bf16 %v371, %v371
  %v388 = vpack.c.bf16 %v372, %v372
  %v389 = vpack.c.bf16 %v373, %v373
  %v390 = vld [vmem:[%s0 + $0x80] sm:$0xf]
  %v391 = vld [vmem:[%s0 + $0x84] sm:$0xf]
  %v392 = vld [vmem:[%s0 + $0x88] sm:$0xf]
  %v393 = vld [vmem:[%s0 + $0x8c] sm:$0xf]
  %v394 = vld [vmem:[%s0 + $0x90] sm:$0xf]
  %v395 = vld [vmem:[%s0 + $0x94] sm:$0xf]
  %v396 = vld [vmem:[%s0 + $0x98] sm:$0xf]
  %v397 = vld [vmem:[%s0 + $0x9c] sm:$0xf]
  %v398 = vld [vmem:[%s0 + $0xa0] sm:$0xf]
  %v399 = vld [vmem:[%s0 + $0xa4] sm:$0xf]
  %v400 = vld [vmem:[%s0 + $0xa8] sm:$0xf]
  %v401 = vld [vmem:[%s0 + $0xac] sm:$0xf]
  %v402 = vld [vmem:[%s0 + $0xb0] sm:$0xf]
  %v403 = vld [vmem:[%s0 + $0xb4] sm:$0xf]
  %v404 = vld [vmem:[%s0 + $0xb8] sm:$0xf]
  %v405 = vld [vmem:[%s0 + $0xbc] sm:$0xf]
  %v422 = vunpack.c.l.b16 %v390
  %v423 = vunpack.c.l.b16 %v391
  %v424 = vunpack.c.l.b16 %v392
  %v425 = vunpack.c.l.b16 %v393
  %v426 = vunpack.c.l.b16 %v394
  %v427 = vunpack.c.l.b16 %v395
  %v428 = vunpack.c.l.b16 %v396
  %v429 = vunpack.c.l.b16 %v397
  %v430 = vunpack.c.l.b16 %v398
  %v431 = vunpack.c.l.b16 %v399
  %v432 = vunpack.c.l.b16 %v400
  %v433 = vunpack.c.l.b16 %v401
  %v434 = vunpack.c.l.b16 %v402
  %v435 = vunpack.c.l.b16 %v403
  %v436 = vunpack.c.l.b16 %v404
  %v437 = vunpack.c.l.b16 %v405
  %v438 = vpack.c.b16 %v423, %v422
  %v439 = vpack.c.b16 %v425, %v424
  %v440 = vpack.c.b16 %v427, %v426
  %v441 = vpack.c.b16 %v429, %v428
  %v442 = vpack.c.b16 %v431, %v430
  %v443 = vpack.c.b16 %v433, %v432
  %v444 = vpack.c.b16 %v435, %v434
  %v445 = vpack.c.b16 %v437, %v436
  %454 = vmatpush.bf16.msra.mxu0 %v155
  %455 = vmatpush.bf16.msra.mxu0 %v154
  %456 = vmatpush.bf16.msra.mxu0 %v153
  %457 = vmatpush.bf16.msra.mxu0 %v152
  %458 = vmatpush.bf16.msra.mxu0 %v151
  %459 = vmatpush.bf16.msra.mxu0 %v150
  %460 = vmatpush.bf16.msra.mxu0 %v149
  %461 = vmatpush.bf16.msra.mxu0 %v148
  %462 = vmatmul.bf16.gmra.mxu0 %v438
  %v463 = vpop.f32.mrf.mxu0
  %v464 = vadd.f32 0.0, %v463
  %v465 = vpop.f32.mrf.mxu0
  %v466 = vadd.f32 0.0, %v465
  %467 = vmatmul.bf16.gmra.mxu0 %v439
  %v468 = vpop.f32.mrf.mxu0
  %v469 = vadd.f32 0.0, %v468
  %v470 = vpop.f32.mrf.mxu0
  %v471 = vadd.f32 0.0, %v470
  %472 = vmatmul.bf16.gmra.mxu0 %v440
  %v473 = vpop.f32.mrf.mxu0
  %v474 = vadd.f32 0.0, %v473
  %v475 = vpop.f32.mrf.mxu0
  %v476 = vadd.f32 0.0, %v475
  %477 = vmatmul.bf16.gmra.mxu0 %v441
  %v478 = vpop.f32.mrf.mxu0
  %v479 = vadd.f32 0.0, %v478
  %v480 = vpop.f32.mrf.mxu0
  %v481 = vadd.f32 0.0, %v480
  %482 = vmatmul.bf16.gmra.mxu0 %v442
  %v483 = vpop.f32.mrf.mxu0
  %v484 = vadd.f32 0.0, %v483
  %v485 = vpop.f32.mrf.mxu0
  %v486 = vadd.f32 0.0, %v485
  %487 = vmatmul.bf16.gmra.mxu0 %v443
  %v488 = vpop.f32.mrf.mxu0
  %v489 = vadd.f32 0.0, %v488
  %v490 = vpop.f32.mrf.mxu0
  %v491 = vadd.f32 0.0, %v490
  %492 = vmatmul.bf16.gmra.mxu0 %v444
  %v493 = vpop.f32.mrf.mxu0
  %v494 = vadd.f32 0.0, %v493
  %v495 = vpop.f32.mrf.mxu0
  %v496 = vadd.f32 0.0, %v495
  %497 = vmatmul.bf16.gmra.mxu0 %v445
  %v498 = vpop.f32.mrf.mxu0
  %v499 = vadd.f32 0.0, %v498
  %v500 = vpop.f32.mrf.mxu0
  %v501 = vadd.f32 0.0, %v500
  %502 = vdwg.mxu0
  %v503 = vmax.f32 %v464, 0.0
  %v504 = vmax.f32 %v466, 0.0
  %v505 = vmax.f32 %v469, 0.0
  %v506 = vmax.f32 %v471, 0.0
  %v507 = vmax.f32 %v474, 0.0
  %v508 = vmax.f32 %v476, 0.0
  %v509 = vmax.f32 %v479, 0.0
  %v510 = vmax.f32 %v481, 0.0
  %v511 = vmax.f32 %v484, 0.0
  %v512 = vmax.f32 %v486, 0.0
  %v513 = vmax.f32 %v489, 0.0
  %v514 = vmax.f32 %v491, 0.0
  %v515 = vmax.f32 %v494, 0.0
  %v516 = vmax.f32 %v496, 0.0
  %v517 = vmax.f32 %v499, 0.0
  %v518 = vmax.f32 %v501, 0.0
  %v519 = vpack.c.bf16 %v503, %v503
  %v520 = vpack.c.bf16 %v504, %v504
  %v521 = vpack.c.bf16 %v505, %v505
  %v522 = vpack.c.bf16 %v506, %v506
  %v523 = vpack.c.bf16 %v507, %v507
  %v524 = vpack.c.bf16 %v508, %v508
  %v525 = vpack.c.bf16 %v509, %v509
  %v526 = vpack.c.bf16 %v510, %v510
  %v527 = vpack.c.bf16 %v511, %v511
  %v528 = vpack.c.bf16 %v512, %v512
  %v529 = vpack.c.bf16 %v513, %v513
  %v530 = vpack.c.bf16 %v514, %v514
  %v531 = vpack.c.bf16 %v515, %v515
  %v532 = vpack.c.bf16 %v516, %v516
  %v533 = vpack.c.bf16 %v517, %v517
  %v534 = vpack.c.bf16 %v518, %v518
  %v535 = vld [vmem:[%s0 + $0xc0] sm:$0xf]
  %v536 = vld [vmem:[%s0 + $0xc4] sm:$0xf]
  %v537 = vld [vmem:[%s0 + $0xc8] sm:$0xf]
  %v538 = vld [vmem:[%s0 + $0xcc] sm:$0xf]
  %v539 = vld [vmem:[%s0 + $0xd0] sm:$0xf]
  %v540 = vld [vmem:[%s0 + $0xd4] sm:$0xf]
  %v541 = vld [vmem:[%s0 + $0xd8] sm:$0xf]
  %v542 = vld [vmem:[%s0 + $0xdc] sm:$0xf]
  %v543 = vld [vmem:[%s0 + $0xe0] sm:$0xf]
  %v544 = vld [vmem:[%s0 + $0xe4] sm:$0xf]
  %v545 = vld [vmem:[%s0 + $0xe8] sm:$0xf]
  %v546 = vld [vmem:[%s0 + $0xec] sm:$0xf]
  %v547 = vld [vmem:[%s0 + $0xf0] sm:$0xf]
  %v548 = vld [vmem:[%s0 + $0xf4] sm:$0xf]
  %v549 = vld [vmem:[%s0 + $0xf8] sm:$0xf]
  %v550 = vld [vmem:[%s0 + $0xfc] sm:$0xf]
  %v567 = vunpack.c.l.b16 %v535
  %v568 = vunpack.c.l.b16 %v536
  %v569 = vunpack.c.l.b16 %v537
  %v570 = vunpack.c.l.b16 %v538
  %v571 = vunpack.c.l.b16 %v539
  %v572 = vunpack.c.l.b16 %v540
  %v573 = vunpack.c.l.b16 %v541
  %v574 = vunpack.c.l.b16 %v542
  %v575 = vunpack.c.l.b16 %v543
  %v576 = vunpack.c.l.b16 %v544
  %v577 = vunpack.c.l.b16 %v545
  %v578 = vunpack.c.l.b16 %v546
  %v579 = vunpack.c.l.b16 %v547
  %v580 = vunpack.c.l.b16 %v548
  %v581 = vunpack.c.l.b16 %v549
  %v582 = vunpack.c.l.b16 %v550
  %v583 = vpack.c.b16 %v568, %v567
  %v584 = vpack.c.b16 %v570, %v569
  %v585 = vpack.c.b16 %v572, %v571
  %v586 = vpack.c.b16 %v574, %v573
  %v587 = vpack.c.b16 %v576, %v575
  %v588 = vpack.c.b16 %v578, %v577
  %v589 = vpack.c.b16 %v580, %v579
  %v590 = vpack.c.b16 %v582, %v581
  %599 = vmatpush.bf16.msra.mxu0 %v155
  %600 = vmatpush.bf16.msra.mxu0 %v154
  %601 = vmatpush.bf16.msra.mxu0 %v153
  %602 = vmatpush.bf16.msra.mxu0 %v152
  %603 = vmatpush.bf16.msra.mxu0 %v151
  %604 = vmatpush.bf16.msra.mxu0 %v150
  %605 = vmatpush.bf16.msra.mxu0 %v149
  %606 = vmatpush.bf16.msra.mxu0 %v148
  %607 = vmatmul.bf16.gmra.mxu0 %v583
  %v608 = vpop.f32.mrf.mxu0
  %v609 = vadd.f32 0.0, %v608
  %v610 = vpop.f32.mrf.mxu0
  %v611 = vadd.f32 0.0, %v610
  %612 = vmatmul.bf16.gmra.mxu0 %v584
  %v613 = vpop.f32.mrf.mxu0
  %v614 = vadd.f32 0.0, %v613
  %v615 = vpop.f32.mrf.mxu0
  %v616 = vadd.f32 0.0, %v615
  %617 = vmatmul.bf16.gmra.mxu0 %v585
  %v618 = vpop.f32.mrf.mxu0
  %v619 = vadd.f32 0.0, %v618
  %v620 = vpop.f32.mrf.mxu0
  %v621 = vadd.f32 0.0, %v620
  %622 = vmatmul.bf16.gmra.mxu0 %v586
  %v623 = vpop.f32.mrf.mxu0
  %v624 = vadd.f32 0.0, %v623
  %v625 = vpop.f32.mrf.mxu0
  %v626 = vadd.f32 0.0, %v625
  %627 = vmatmul.bf16.gmra.mxu0 %v587
  %v628 = vpop.f32.mrf.mxu0
  %v629 = vadd.f32 0.0, %v628
  %v630 = vpop.f32.mrf.mxu0
  %v631 = vadd.f32 0.0, %v630
  %632 = vmatmul.bf16.gmra.mxu0 %v588
  %v633 = vpop.f32.mrf.mxu0
  %v634 = vadd.f32 0.0, %v633
  %v635 = vpop.f32.mrf.mxu0
  %v636 = vadd.f32 0.0, %v635
  %637 = vmatmul.bf16.gmra.mxu0 %v589
  %v638 = vpop.f32.mrf.mxu0
  %v639 = vadd.f32 0.0, %v638
  %v640 = vpop.f32.mrf.mxu0
  %v641 = vadd.f32 0.0, %v640
  %642 = vmatmul.bf16.gmra.mxu0 %v590
  %v643 = vpop.f32.mrf.mxu0
  %v644 = vadd.f32 0.0, %v643
  %v645 = vpop.f32.mrf.mxu0
  %v646 = vadd.f32 0.0, %v645
  %647 = vdwg.mxu0
  %v648 = vmax.f32 %v609, 0.0
  %v649 = vmax.f32 %v611, 0.0
  %v650 = vmax.f32 %v614, 0.0
  %v651 = vmax.f32 %v616, 0.0
  %v652 = vmax.f32 %v619, 0.0
  %v653 = vmax.f32 %v621, 0.0
  %v654 = vmax.f32 %v624, 0.0
  %v655 = vmax.f32 %v626, 0.0
  %v656 = vmax.f32 %v629, 0.0
  %v657 = vmax.f32 %v631, 0.0
  %v658 = vmax.f32 %v634, 0.0
  %v659 = vmax.f32 %v636, 0.0
  %v660 = vmax.f32 %v639, 0.0
  %v661 = vmax.f32 %v641, 0.0
  %v662 = vmax.f32 %v644, 0.0
  %v663 = vmax.f32 %v646, 0.0
  %v664 = vpack.c.bf16 %v648, %v648
  %v665 = vpack.c.bf16 %v649, %v649
  %v666 = vpack.c.bf16 %v650, %v650
  %v667 = vpack.c.bf16 %v651, %v651
  %v668 = vpack.c.bf16 %v652, %v652
  %v669 = vpack.c.bf16 %v653, %v653
  %v670 = vpack.c.bf16 %v654, %v654
  %v671 = vpack.c.bf16 %v655, %v655
  %v672 = vpack.c.bf16 %v656, %v656
  %v673 = vpack.c.bf16 %v657, %v657
  %v674 = vpack.c.bf16 %v658, %v658
  %v675 = vpack.c.bf16 %v659, %v659
  %v676 = vpack.c.bf16 %v660, %v660
  %v677 = vpack.c.bf16 %v661, %v661
  %v678 = vpack.c.bf16 %v662, %v662
  %v679 = vpack.c.bf16 %v663, %v663
  %v680 = vld [vmem:[%s0 + $0x100] sm:$0xf]
  %v681 = vld [vmem:[%s0 + $0x104] sm:$0xf]
  %v682 = vld [vmem:[%s0 + $0x108] sm:$0xf]
  %v683 = vld [vmem:[%s0 + $0x10c] sm:$0xf]
  %v684 = vld [vmem:[%s0 + $0x110] sm:$0xf]
  %v685 = vld [vmem:[%s0 + $0x114] sm:$0xf]
  %v686 = vld [vmem:[%s0 + $0x118] sm:$0xf]
  %v687 = vld [vmem:[%s0 + $0x11c] sm:$0xf]
  %v688 = vld [vmem:[%s0 + $0x120] sm:$0xf]
  %v689 = vld [vmem:[%s0 + $0x124] sm:$0xf]
  %v690 = vld [vmem:[%s0 + $0x128] sm:$0xf]
  %v691 = vld [vmem:[%s0 + $0x12c] sm:$0xf]
  %v692 = vld [vmem:[%s0 + $0x130] sm:$0xf]
  %v693 = vld [vmem:[%s0 + $0x134] sm:$0xf]
  %v694 = vld [vmem:[%s0 + $0x138] sm:$0xf]
  %v695 = vld [vmem:[%s0 + $0x13c] sm:$0xf]
  %v712 = vunpack.c.l.b16 %v680
  %v713 = vunpack.c.l.b16 %v681
  %v714 = vunpack.c.l.b16 %v682
  %v715 = vunpack.c.l.b16 %v683
  %v716 = vunpack.c.l.b16 %v684
  %v717 = vunpack.c.l.b16 %v685
  %v718 = vunpack.c.l.b16 %v686
  %v719 = vunpack.c.l.b16 %v687
  %v720 = vunpack.c.l.b16 %v688
  %v721 = vunpack.c.l.b16 %v689
  %v722 = vunpack.c.l.b16 %v690
  %v723 = vunpack.c.l.b16 %v691
  %v724 = vunpack.c.l.b16 %v692
  %v725 = vunpack.c.l.b16 %v693
  %v726 = vunpack.c.l.b16 %v694
  %v727 = vunpack.c.l.b16 %v695
  %v728 = vpack.c.b16 %v713, %v712
  %v729 = vpack.c.b16 %v715, %v714
  %v730 = vpack.c.b16 %v717, %v716
  %v731 = vpack.c.b16 %v719, %v718
  %v732 = vpack.c.b16 %v721, %v720
  %v733 = vpack.c.b16 %v723, %v722
  %v734 = vpack.c.b16 %v725, %v724
  %v735 = vpack.c.b16 %v727, %v726
  %744 = vmatpush.bf16.msra.mxu0 %v155
  %745 = vmatpush.bf16.msra.mxu0 %v154
  %746 = vmatpush.bf16.msra.mxu0 %v153
  %747 = vmatpush.bf16.msra.mxu0 %v152
  %748 = vmatpush.bf16.msra.mxu0 %v151
  %749 = vmatpush.bf16.msra.mxu0 %v150
  %750 = vmatpush.bf16.msra.mxu0 %v149
  %751 = vmatpush.bf16.msra.mxu0 %v148
  %752 = vmatmul.bf16.gmra.mxu0 %v728
  %v753 = vpop.f32.mrf.mxu0
  %v754 = vadd.f32 0.0, %v753
  %v755 = vpop.f32.mrf.mxu0
  %v756 = vadd.f32 0.0, %v755
  %757 = vmatmul.bf16.gmra.mxu0 %v729
  %v758 = vpop.f32.mrf.mxu0
  %v759 = vadd.f32 0.0, %v758
  %v760 = vpop.f32.mrf.mxu0
  %v761 = vadd.f32 0.0, %v760
  %762 = vmatmul.bf16.gmra.mxu0 %v730
  %v763 = vpop.f32.mrf.mxu0
  %v764 = vadd.f32 0.0, %v763
  %v765 = vpop.f32.mrf.mxu0
  %v766 = vadd.f32 0.0, %v765
  %767 = vmatmul.bf16.gmra.mxu0 %v731
  %v768 = vpop.f32.mrf.mxu0
  %v769 = vadd.f32 0.0, %v768
  %v770 = vpop.f32.mrf.mxu0
  %v771 = vadd.f32 0.0, %v770
  %772 = vmatmul.bf16.gmra.mxu0 %v732
  %v773 = vpop.f32.mrf.mxu0
  %v774 = vadd.f32 0.0, %v773
  %v775 = vpop.f32.mrf.mxu0
  %v776 = vadd.f32 0.0, %v775
  %777 = vmatmul.bf16.gmra.mxu0 %v733
  %v778 = vpop.f32.mrf.mxu0
  %v779 = vadd.f32 0.0, %v778
  %v780 = vpop.f32.mrf.mxu0
  %v781 = vadd.f32 0.0, %v780
  %782 = vmatmul.bf16.gmra.mxu0 %v734
  %v783 = vpop.f32.mrf.mxu0
  %v784 = vadd.f32 0.0, %v783
  %v785 = vpop.f32.mrf.mxu0
  %v786 = vadd.f32 0.0, %v785
  %787 = vmatmul.bf16.gmra.mxu0 %v735
  %v788 = vpop.f32.mrf.mxu0
  %v789 = vadd.f32 0.0, %v788
  %v790 = vpop.f32.mrf.mxu0
  %v791 = vadd.f32 0.0, %v790
  %792 = vdwg.mxu0
  %v793 = vmax.f32 %v754, 0.0
  %v794 = vmax.f32 %v756, 0.0
  %v795 = vmax.f32 %v759, 0.0
  %v796 = vmax.f32 %v761, 0.0
  %v797 = vmax.f32 %v764, 0.0
  %v798 = vmax.f32 %v766, 0.0
  %v799 = vmax.f32 %v769, 0.0
  %v800 = vmax.f32 %v771, 0.0
  %v801 = vmax.f32 %v774, 0.0
  %v802 = vmax.f32 %v776, 0.0
  %v803 = vmax.f32 %v779, 0.0
  %v804 = vmax.f32 %v781, 0.0
  %v805 = vmax.f32 %v784, 0.0
  %v806 = vmax.f32 %v786, 0.0
  %v807 = vmax.f32 %v789, 0.0
  %v808 = vmax.f32 %v791, 0.0
  %v809 = vpack.c.bf16 %v793, %v793
  %v810 = vpack.c.bf16 %v794, %v794
  %v811 = vpack.c.bf16 %v795, %v795
  %v812 = vpack.c.bf16 %v796, %v796
  %v813 = vpack.c.bf16 %v797, %v797
  %v814 = vpack.c.bf16 %v798, %v798
  %v815 = vpack.c.bf16 %v799, %v799
  %v816 = vpack.c.bf16 %v800, %v800
  %v817 = vpack.c.bf16 %v801, %v801
  %v818 = vpack.c.bf16 %v802, %v802
  %v819 = vpack.c.bf16 %v803, %v803
  %v820 = vpack.c.bf16 %v804, %v804
  %v821 = vpack.c.bf16 %v805, %v805
  %v822 = vpack.c.bf16 %v806, %v806
  %v823 = vpack.c.bf16 %v807, %v807
  %v824 = vpack.c.bf16 %v808, %v808
  %v825 = vld [vmem:[%s0 + $0x140] sm:$0xf]
  %v826 = vld [vmem:[%s0 + $0x144] sm:$0xf]
  %v827 = vld [vmem:[%s0 + $0x148] sm:$0xf]
  %v828 = vld [vmem:[%s0 + $0x14c] sm:$0xf]
  %v829 = vld [vmem:[%s0 + $0x150] sm:$0xf]
  %v830 = vld [vmem:[%s0 + $0x154] sm:$0xf]
  %v831 = vld [vmem:[%s0 + $0x158] sm:$0xf]
  %v832 = vld [vmem:[%s0 + $0x15c] sm:$0xf]
  %v833 = vld [vmem:[%s0 + $0x160] sm:$0xf]
  %v834 = vld [vmem:[%s0 + $0x164] sm:$0xf]
  %v835 = vld [vmem:[%s0 + $0x168] sm:$0xf]
  %v836 = vld [vmem:[%s0 + $0x16c] sm:$0xf]
  %v837 = vld [vmem:[%s0 + $0x170] sm:$0xf]
  %v838 = vld [vmem:[%s0 + $0x174] sm:$0xf]
  %v839 = vld [vmem:[%s0 + $0x178] sm:$0xf]
  %v840 = vld [vmem:[%s0 + $0x17c] sm:$0xf]
  %v857 = vunpack.c.l.b16 %v825
  %v858 = vunpack.c.l.b16 %v826
  %v859 = vunpack.c.l.b16 %v827
  %v860 = vunpack.c.l.b16 %v828
  %v861 = vunpack.c.l.b16 %v829
  %v862 = vunpack.c.l.b16 %v830
  %v863 = vunpack.c.l.b16 %v831
  %v864 = vunpack.c.l.b16 %v832
  %v865 = vunpack.c.l.b16 %v833
  %v866 = vunpack.c.l.b16 %v834
  %v867 = vunpack.c.l.b16 %v835
  %v868 = vunpack.c.l.b16 %v836
  %v869 = vunpack.c.l.b16 %v837
  %v870 = vunpack.c.l.b16 %v838
  %v871 = vunpack.c.l.b16 %v839
  %v872 = vunpack.c.l.b16 %v840
  %v873 = vpack.c.b16 %v858, %v857
  %v874 = vpack.c.b16 %v860, %v859
  %v875 = vpack.c.b16 %v862, %v861
  %v876 = vpack.c.b16 %v864, %v863
  %v877 = vpack.c.b16 %v866, %v865
  %v878 = vpack.c.b16 %v868, %v867
  %v879 = vpack.c.b16 %v870, %v869
  %v880 = vpack.c.b16 %v872, %v871
  %889 = vmatpush.bf16.msra.mxu0 %v155
  %890 = vmatpush.bf16.msra.mxu0 %v154
  %891 = vmatpush.bf16.msra.mxu0 %v153
  %892 = vmatpush.bf16.msra.mxu0 %v152
  %893 = vmatpush.bf16.msra.mxu0 %v151
  %894 = vmatpush.bf16.msra.mxu0 %v150
  %895 = vmatpush.bf16.msra.mxu0 %v149
  %896 = vmatpush.bf16.msra.mxu0 %v148
  %897 = vmatmul.bf16.gmra.mxu0 %v873
  %v898 = vpop.f32.mrf.mxu0
  %v899 = vadd.f32 0.0, %v898
  %v900 = vpop.f32.mrf.mxu0
  %v901 = vadd.f32 0.0, %v900
  %902 = vmatmul.bf16.gmra.mxu0 %v874
  %v903 = vpop.f32.mrf.mxu0
  %v904 = vadd.f32 0.0, %v903
  %v905 = vpop.f32.mrf.mxu0
  %v906 = vadd.f32 0.0, %v905
  %907 = vmatmul.bf16.gmra.mxu0 %v875
  %v908 = vpop.f32.mrf.mxu0
  %v909 = vadd.f32 0.0, %v908
  %v910 = vpop.f32.mrf.mxu0
  %v911 = vadd.f32 0.0, %v910
  %912 = vmatmul.bf16.gmra.mxu0 %v876
  %v913 = vpop.f32.mrf.mxu0
  %v914 = vadd.f32 0.0, %v913
  %v915 = vpop.f32.mrf.mxu0
  %v916 = vadd.f32 0.0, %v915
  %917 = vmatmul.bf16.gmra.mxu0 %v877
  %v918 = vpop.f32.mrf.mxu0
  %v919 = vadd.f32 0.0, %v918
  %v920 = vpop.f32.mrf.mxu0
  %v921 = vadd.f32 0.0, %v920
  %922 = vmatmul.bf16.gmra.mxu0 %v878
  %v923 = vpop.f32.mrf.mxu0
  %v924 = vadd.f32 0.0, %v923
  %v925 = vpop.f32.mrf.mxu0
  %v926 = vadd.f32 0.0, %v925
  %927 = vmatmul.bf16.gmra.mxu0 %v879
  %v928 = vpop.f32.mrf.mxu0
  %v929 = vadd.f32 0.0, %v928
  %v930 = vpop.f32.mrf.mxu0
  %v931 = vadd.f32 0.0, %v930
  %932 = vmatmul.bf16.gmra.mxu0 %v880
  %v933 = vpop.f32.mrf.mxu0
  %v934 = vadd.f32 0.0, %v933
  %v935 = vpop.f32.mrf.mxu0
  %v936 = vadd.f32 0.0, %v935
  %937 = vdwg.mxu0
  %v938 = vmax.f32 %v899, 0.0
  %v939 = vmax.f32 %v901, 0.0
  %v940 = vmax.f32 %v904, 0.0
  %v941 = vmax.f32 %v906, 0.0
  %v942 = vmax.f32 %v909, 0.0
  %v943 = vmax.f32 %v911, 0.0
  %v944 = vmax.f32 %v914, 0.0
  %v945 = vmax.f32 %v916, 0.0
  %v946 = vmax.f32 %v919, 0.0
  %v947 = vmax.f32 %v921, 0.0
  %v948 = vmax.f32 %v924, 0.0
  %v949 = vmax.f32 %v926, 0.0
  %v950 = vmax.f32 %v929, 0.0
  %v951 = vmax.f32 %v931, 0.0
  %v952 = vmax.f32 %v934, 0.0
  %v953 = vmax.f32 %v936, 0.0
  %v954 = vpack.c.bf16 %v938, %v938
  %v955 = vpack.c.bf16 %v939, %v939
  %v956 = vpack.c.bf16 %v940, %v940
  %v957 = vpack.c.bf16 %v941, %v941
  %v958 = vpack.c.bf16 %v942, %v942
  %v959 = vpack.c.bf16 %v943, %v943
  %v960 = vpack.c.bf16 %v944, %v944
  %v961 = vpack.c.bf16 %v945, %v945
  %v962 = vpack.c.bf16 %v946, %v946
  %v963 = vpack.c.bf16 %v947, %v947
  %v964 = vpack.c.bf16 %v948, %v948
  %v965 = vpack.c.bf16 %v949, %v949
  %v966 = vpack.c.bf16 %v950, %v950
  %v967 = vpack.c.bf16 %v951, %v951
  %v968 = vpack.c.bf16 %v952, %v952
  %v969 = vpack.c.bf16 %v953, %v953
  %v970 = vld [vmem:[%s0 + $0x180] sm:$0xf]
  %v971 = vld [vmem:[%s0 + $0x184] sm:$0xf]
  %v972 = vld [vmem:[%s0 + $0x188] sm:$0xf]
  %v973 = vld [vmem:[%s0 + $0x18c] sm:$0xf]
  %v974 = vld [vmem:[%s0 + $0x190] sm:$0xf]
  %v975 = vld [vmem:[%s0 + $0x194] sm:$0xf]
  %v976 = vld [vmem:[%s0 + $0x198] sm:$0xf]
  %v977 = vld [vmem:[%s0 + $0x19c] sm:$0xf]
  %v978 = vld [vmem:[%s0 + $0x1a0] sm:$0xf]
  %v979 = vld [vmem:[%s0 + $0x1a4] sm:$0xf]
  %v980 = vld [vmem:[%s0 + $0x1a8] sm:$0xf]
  %v981 = vld [vmem:[%s0 + $0x1ac] sm:$0xf]
  %v982 = vld [vmem:[%s0 + $0x1b0] sm:$0xf]
  %v983 = vld [vmem:[%s0 + $0x1b4] sm:$0xf]
  %v984 = vld [vmem:[%s0 + $0x1b8] sm:$0xf]
  %v985 = vld [vmem:[%s0 + $0x1bc] sm:$0xf]
  %v1002 = vunpack.c.l.b16 %v970
  %v1003 = vunpack.c.l.b16 %v971
  %v1004 = vunpack.c.l.b16 %v972
  %v1005 = vunpack.c.l.b16 %v973
  %v1006 = vunpack.c.l.b16 %v974
  %v1007 = vunpack.c.l.b16 %v975
  %v1008 = vunpack.c.l.b16 %v976
  %v1009 = vunpack.c.l.b16 %v977
  %v1010 = vunpack.c.l.b16 %v978
  %v1011 = vunpack.c.l.b16 %v979
  %v1012 = vunpack.c.l.b16 %v980
  %v1013 = vunpack.c.l.b16 %v981
  %v1014 = vunpack.c.l.b16 %v982
  %v1015 = vunpack.c.l.b16 %v983
  %v1016 = vunpack.c.l.b16 %v984
  %v1017 = vunpack.c.l.b16 %v985
  %v1018 = vpack.c.b16 %v1003, %v1002
  %v1019 = vpack.c.b16 %v1005, %v1004
  %v1020 = vpack.c.b16 %v1007, %v1006
  %v1021 = vpack.c.b16 %v1009, %v1008
  %v1022 = vpack.c.b16 %v1011, %v1010
  %v1023 = vpack.c.b16 %v1013, %v1012
  %v1024 = vpack.c.b16 %v1015, %v1014
  %v1025 = vpack.c.b16 %v1017, %v1016
  %1034 = vmatpush.bf16.msra.mxu0 %v155
  %1035 = vmatpush.bf16.msra.mxu0 %v154
  %1036 = vmatpush.bf16.msra.mxu0 %v153
  %1037 = vmatpush.bf16.msra.mxu0 %v152
  %1038 = vmatpush.bf16.msra.mxu0 %v151
  %1039 = vmatpush.bf16.msra.mxu0 %v150
  %1040 = vmatpush.bf16.msra.mxu0 %v149
  %1041 = vmatpush.bf16.msra.mxu0 %v148
  %1042 = vmatmul.bf16.gmra.mxu0 %v1018
  %v1043 = vpop.f32.mrf.mxu0
  %v1044 = vadd.f32 0.0, %v1043
  %v1045 = vpop.f32.mrf.mxu0
  %v1046 = vadd.f32 0.0, %v1045
  %1047 = vmatmul.bf16.gmra.mxu0 %v1019
  %v1048 = vpop.f32.mrf.mxu0
  %v1049 = vadd.f32 0.0, %v1048
  %v1050 = vpop.f32.mrf.mxu0
  %v1051 = vadd.f32 0.0, %v1050
  %1052 = vmatmul.bf16.gmra.mxu0 %v1020
  %v1053 = vpop.f32.mrf.mxu0
  %v1054 = vadd.f32 0.0, %v1053
  %v1055 = vpop.f32.mrf.mxu0
  %v1056 = vadd.f32 0.0, %v1055
  %1057 = vmatmul.bf16.gmra.mxu0 %v1021
  %v1058 = vpop.f32.mrf.mxu0
  %v1059 = vadd.f32 0.0, %v1058
  %v1060 = vpop.f32.mrf.mxu0
  %v1061 = vadd.f32 0.0, %v1060
  %1062 = vmatmul.bf16.gmra.mxu0 %v1022
  %v1063 = vpop.f32.mrf.mxu0
  %v1064 = vadd.f32 0.0, %v1063
  %v1065 = vpop.f32.mrf.mxu0
  %v1066 = vadd.f32 0.0, %v1065
  %1067 = vmatmul.bf16.gmra.mxu0 %v1023
  %v1068 = vpop.f32.mrf.mxu0
  %v1069 = vadd.f32 0.0, %v1068
  %v1070 = vpop.f32.mrf.mxu0
  %v1071 = vadd.f32 0.0, %v1070
  %1072 = vmatmul.bf16.gmra.mxu0 %v1024
  %v1073 = vpop.f32.mrf.mxu0
  %v1074 = vadd.f32 0.0, %v1073
  %v1075 = vpop.f32.mrf.mxu0
  %v1076 = vadd.f32 0.0, %v1075
  %1077 = vmatmul.bf16.gmra.mxu0 %v1025
  %v1078 = vpop.f32.mrf.mxu0
  %v1079 = vadd.f32 0.0, %v1078
  %v1080 = vpop.f32.mrf.mxu0
  %v1081 = vadd.f32 0.0, %v1080
  %1082 = vdwg.mxu0
  %v1083 = vmax.f32 %v1044, 0.0
  %v1084 = vmax.f32 %v1046, 0.0
  %v1085 = vmax.f32 %v1049, 0.0
  %v1086 = vmax.f32 %v1051, 0.0
  %v1087 = vmax.f32 %v1054, 0.0
  %v1088 = vmax.f32 %v1056, 0.0
  %v1089 = vmax.f32 %v1059, 0.0
  %v1090 = vmax.f32 %v1061, 0.0
  %v1091 = vmax.f32 %v1064, 0.0
  %v1092 = vmax.f32 %v1066, 0.0
  %v1093 = vmax.f32 %v1069, 0.0
  %v1094 = vmax.f32 %v1071, 0.0
  %v1095 = vmax.f32 %v1074, 0.0
  %v1096 = vmax.f32 %v1076, 0.0
  %v1097 = vmax.f32 %v1079, 0.0
  %v1098 = vmax.f32 %v1081, 0.0
  %v1099 = vpack.c.bf16 %v1083, %v1083
  %v1100 = vpack.c.bf16 %v1084, %v1084
  %v1101 = vpack.c.bf16 %v1085, %v1085
  %v1102 = vpack.c.bf16 %v1086, %v1086
  %v1103 = vpack.c.bf16 %v1087, %v1087
  %v1104 = vpack.c.bf16 %v1088, %v1088
  %v1105 = vpack.c.bf16 %v1089, %v1089
  %v1106 = vpack.c.bf16 %v1090, %v1090
  %v1107 = vpack.c.bf16 %v1091, %v1091
  %v1108 = vpack.c.bf16 %v1092, %v1092
  %v1109 = vpack.c.bf16 %v1093, %v1093
  %v1110 = vpack.c.bf16 %v1094, %v1094
  %v1111 = vpack.c.bf16 %v1095, %v1095
  %v1112 = vpack.c.bf16 %v1096, %v1096
  %v1113 = vpack.c.bf16 %v1097, %v1097
  %v1114 = vpack.c.bf16 %v1098, %v1098
  %v1115 = vld [vmem:[%s0 + $0x1c0] sm:$0xf]
  %v1116 = vld [vmem:[%s0 + $0x1c4] sm:$0xf]
  %v1117 = vld [vmem:[%s0 + $0x1c8] sm:$0xf]
  %v1118 = vld [vmem:[%s0 + $0x1cc] sm:$0xf]
  %v1119 = vld [vmem:[%s0 + $0x1d0] sm:$0xf]
  %v1120 = vld [vmem:[%s0 + $0x1d4] sm:$0xf]
  %v1121 = vld [vmem:[%s0 + $0x1d8] sm:$0xf]
  %v1122 = vld [vmem:[%s0 + $0x1dc] sm:$0xf]
  %v1123 = vld [vmem:[%s0 + $0x1e0] sm:$0xf]
  %v1124 = vld [vmem:[%s0 + $0x1e4] sm:$0xf]
  %v1125 = vld [vmem:[%s0 + $0x1e8] sm:$0xf]
  %v1126 = vld [vmem:[%s0 + $0x1ec] sm:$0xf]
  %v1127 = vld [vmem:[%s0 + $0x1f0] sm:$0xf]
  %v1128 = vld [vmem:[%s0 + $0x1f4] sm:$0xf]
  %v1129 = vld [vmem:[%s0 + $0x1f8] sm:$0xf]
  %v1130 = vld [vmem:[%s0 + $0x1fc] sm:$0xf]
  %v1147 = vunpack.c.l.b16 %v1115
  %v1148 = vunpack.c.l.b16 %v1116
  %v1149 = vunpack.c.l.b16 %v1117
  %v1150 = vunpack.c.l.b16 %v1118
  %v1151 = vunpack.c.l.b16 %v1119
  %v1152 = vunpack.c.l.b16 %v1120
  %v1153 = vunpack.c.l.b16 %v1121
  %v1154 = vunpack.c.l.b16 %v1122
  %v1155 = vunpack.c.l.b16 %v1123
  %v1156 = vunpack.c.l.b16 %v1124
  %v1157 = vunpack.c.l.b16 %v1125
  %v1158 = vunpack.c.l.b16 %v1126
  %v1159 = vunpack.c.l.b16 %v1127
  %v1160 = vunpack.c.l.b16 %v1128
  %v1161 = vunpack.c.l.b16 %v1129
  %v1162 = vunpack.c.l.b16 %v1130
  %v1163 = vpack.c.b16 %v1148, %v1147
  %v1164 = vpack.c.b16 %v1150, %v1149
  %v1165 = vpack.c.b16 %v1152, %v1151
  %v1166 = vpack.c.b16 %v1154, %v1153
  %v1167 = vpack.c.b16 %v1156, %v1155
  %v1168 = vpack.c.b16 %v1158, %v1157
  %v1169 = vpack.c.b16 %v1160, %v1159
  %v1170 = vpack.c.b16 %v1162, %v1161
  %1179 = vmatpush.bf16.msra.mxu0 %v155
  %1180 = vmatpush.bf16.msra.mxu0 %v154
  %1181 = vmatpush.bf16.msra.mxu0 %v153
  %1182 = vmatpush.bf16.msra.mxu0 %v152
  %1183 = vmatpush.bf16.msra.mxu0 %v151
  %1184 = vmatpush.bf16.msra.mxu0 %v150
  %1185 = vmatpush.bf16.msra.mxu0 %v149
  %1186 = vmatpush.bf16.msra.mxu0 %v148
  %1187 = vmatmul.bf16.gmra.mxu0 %v1163
  %v1188 = vpop.f32.mrf.mxu0
  %v1189 = vadd.f32 0.0, %v1188
  %v1190 = vpop.f32.mrf.mxu0
  %v1191 = vadd.f32 0.0, %v1190
  %1192 = vmatmul.bf16.gmra.mxu0 %v1164
  %v1193 = vpop.f32.mrf.mxu0
  %v1194 = vadd.f32 0.0, %v1193
  %v1195 = vpop.f32.mrf.mxu0
  %v1196 = vadd.f32 0.0, %v1195
  %1197 = vmatmul.bf16.gmra.mxu0 %v1165
  %v1198 = vpop.f32.mrf.mxu0
  %v1199 = vadd.f32 0.0, %v1198
  %v1200 = vpop.f32.mrf.mxu0
  %v1201 = vadd.f32 0.0, %v1200
  %1202 = vmatmul.bf16.gmra.mxu0 %v1166
  %v1203 = vpop.f32.mrf.mxu0
  %v1204 = vadd.f32 0.0, %v1203
  %v1205 = vpop.f32.mrf.mxu0
  %v1206 = vadd.f32 0.0, %v1205
  %1207 = vmatmul.bf16.gmra.mxu0 %v1167
  %v1208 = vpop.f32.mrf.mxu0
  %v1209 = vadd.f32 0.0, %v1208
  %v1210 = vpop.f32.mrf.mxu0
  %v1211 = vadd.f32 0.0, %v1210
  %1212 = vmatmul.bf16.gmra.mxu0 %v1168
  %v1213 = vpop.f32.mrf.mxu0
  %v1214 = vadd.f32 0.0, %v1213
  %v1215 = vpop.f32.mrf.mxu0
  %v1216 = vadd.f32 0.0, %v1215
  %1217 = vmatmul.bf16.gmra.mxu0 %v1169
  %v1218 = vpop.f32.mrf.mxu0
  %v1219 = vadd.f32 0.0, %v1218
  %v1220 = vpop.f32.mrf.mxu0
  %v1221 = vadd.f32 0.0, %v1220
  %1222 = vmatmul.bf16.gmra.mxu0 %v1170
  %v1223 = vpop.f32.mrf.mxu0
  %v1224 = vadd.f32 0.0, %v1223
  %v1225 = vpop.f32.mrf.mxu0
  %v1226 = vadd.f32 0.0, %v1225
  %1227 = vdwg.mxu0
  %v1228 = vmax.f32 %v1189, 0.0
  %v1229 = vmax.f32 %v1191, 0.0
  %v1230 = vmax.f32 %v1194, 0.0
  %v1231 = vmax.f32 %v1196, 0.0
  %v1232 = vmax.f32 %v1199, 0.0
  %v1233 = vmax.f32 %v1201, 0.0
  %v1234 = vmax.f32 %v1204, 0.0
  %v1235 = vmax.f32 %v1206, 0.0
  %v1236 = vmax.f32 %v1209, 0.0
  %v1237 = vmax.f32 %v1211, 0.0
  %v1238 = vmax.f32 %v1214, 0.0
  %v1239 = vmax.f32 %v1216, 0.0
  %v1240 = vmax.f32 %v1219, 0.0
  %v1241 = vmax.f32 %v1221, 0.0
  %v1242 = vmax.f32 %v1224, 0.0
  %v1243 = vmax.f32 %v1226, 0.0
  %v1244 = vpack.c.bf16 %v1228, %v1228
  %v1245 = vpack.c.bf16 %v1229, %v1229
  %v1246 = vpack.c.bf16 %v1230, %v1230
  %v1247 = vpack.c.bf16 %v1231, %v1231
  %v1248 = vpack.c.bf16 %v1232, %v1232
  %v1249 = vpack.c.bf16 %v1233, %v1233
  %v1250 = vpack.c.bf16 %v1234, %v1234
  %v1251 = vpack.c.bf16 %v1235, %v1235
  %v1252 = vpack.c.bf16 %v1236, %v1236
  %v1253 = vpack.c.bf16 %v1237, %v1237
  %v1254 = vpack.c.bf16 %v1238, %v1238
  %v1255 = vpack.c.bf16 %v1239, %v1239
  %v1256 = vpack.c.bf16 %v1240, %v1240
  %v1257 = vpack.c.bf16 %v1241, %v1241
  %v1258 = vpack.c.bf16 %v1242, %v1242
  %v1259 = vpack.c.bf16 %v1243, %v1243
  %v1260 = vld [vmem:[%s0 + $0x200] sm:$0xf]
  %v1261 = vld [vmem:[%s0 + $0x204] sm:$0xf]
  %v1262 = vld [vmem:[%s0 + $0x208] sm:$0xf]
  %v1263 = vld [vmem:[%s0 + $0x20c] sm:$0xf]
  %v1264 = vld [vmem:[%s0 + $0x210] sm:$0xf]
  %v1265 = vld [vmem:[%s0 + $0x214] sm:$0xf]
  %v1266 = vld [vmem:[%s0 + $0x218] sm:$0xf]
  %v1267 = vld [vmem:[%s0 + $0x21c] sm:$0xf]
  %v1268 = vld [vmem:[%s0 + $0x220] sm:$0xf]
  %v1269 = vld [vmem:[%s0 + $0x224] sm:$0xf]
  %v1270 = vld [vmem:[%s0 + $0x228] sm:$0xf]
  %v1271 = vld [vmem:[%s0 + $0x22c] sm:$0xf]
  %v1272 = vld [vmem:[%s0 + $0x230] sm:$0xf]
  %v1273 = vld [vmem:[%s0 + $0x234] sm:$0xf]
  %v1274 = vld [vmem:[%s0 + $0x238] sm:$0xf]
  %v1275 = vld [vmem:[%s0 + $0x23c] sm:$0xf]
  %v1292 = vunpack.c.l.b16 %v1260
  %v1293 = vunpack.c.l.b16 %v1261
  %v1294 = vunpack.c.l.b16 %v1262
  %v1295 = vunpack.c.l.b16 %v1263
  %v1296 = vunpack.c.l.b16 %v1264
  %v1297 = vunpack.c.l.b16 %v1265
  %v1298 = vunpack.c.l.b16 %v1266
  %v1299 = vunpack.c.l.b16 %v1267
  %v1300 = vunpack.c.l.b16 %v1268
  %v1301 = vunpack.c.l.b16 %v1269
  %v1302 = vunpack.c.l.b16 %v1270
  %v1303 = vunpack.c.l.b16 %v1271
  %v1304 = vunpack.c.l.b16 %v1272
  %v1305 = vunpack.c.l.b16 %v1273
  %v1306 = vunpack.c.l.b16 %v1274
  %v1307 = vunpack.c.l.b16 %v1275
  %v1308 = vpack.c.b16 %v1293, %v1292
  %v1309 = vpack.c.b16 %v1295, %v1294
  %v1310 = vpack.c.b16 %v1297, %v1296
  %v1311 = vpack.c.b16 %v1299, %v1298
  %v1312 = vpack.c.b16 %v1301, %v1300
  %v1313 = vpack.c.b16 %v1303, %v1302
  %v1314 = vpack.c.b16 %v1305, %v1304
  %v1315 = vpack.c.b16 %v1307, %v1306
  %1324 = vmatpush.bf16.msra.mxu0 %v155
  %1325 = vmatpush.bf16.msra.mxu0 %v154
  %1326 = vmatpush.bf16.msra.mxu0 %v153
  %1327 = vmatpush.bf16.msra.mxu0 %v152
  %1328 = vmatpush.bf16.msra.mxu0 %v151
  %1329 = vmatpush.bf16.msra.mxu0 %v150
  %1330 = vmatpush.bf16.msra.mxu0 %v149
  %1331 = vmatpush.bf16.msra.mxu0 %v148
  %1332 = vmatmul.bf16.gmra.mxu0 %v1308
  %v1333 = vpop.f32.mrf.mxu0
  %v1334 = vadd.f32 0.0, %v1333
  %v1335 = vpop.f32.mrf.mxu0
  %v1336 = vadd.f32 0.0, %v1335
  %1337 = vmatmul.bf16.gmra.mxu0 %v1309
  %v1338 = vpop.f32.mrf.mxu0
  %v1339 = vadd.f32 0.0, %v1338
  %v1340 = vpop.f32.mrf.mxu0
  %v1341 = vadd.f32 0.0, %v1340
  %1342 = vmatmul.bf16.gmra.mxu0 %v1310
  %v1343 = vpop.f32.mrf.mxu0
  %v1344 = vadd.f32 0.0, %v1343
  %v1345 = vpop.f32.mrf.mxu0
  %v1346 = vadd.f32 0.0, %v1345
  %1347 = vmatmul.bf16.gmra.mxu0 %v1311
  %v1348 = vpop.f32.mrf.mxu0
  %v1349 = vadd.f32 0.0, %v1348
  %v1350 = vpop.f32.mrf.mxu0
  %v1351 = vadd.f32 0.0, %v1350
  %1352 = vmatmul.bf16.gmra.mxu0 %v1312
  %v1353 = vpop.f32.mrf.mxu0
  %v1354 = vadd.f32 0.0, %v1353
  %v1355 = vpop.f32.mrf.mxu0
  %v1356 = vadd.f32 0.0, %v1355
  %1357 = vmatmul.bf16.gmra.mxu0 %v1313
  %v1358 = vpop.f32.mrf.mxu0
  %v1359 = vadd.f32 0.0, %v1358
  %v1360 = vpop.f32.mrf.mxu0
  %v1361 = vadd.f32 0.0, %v1360
  %1362 = vmatmul.bf16.gmra.mxu0 %v1314
  %v1363 = vpop.f32.mrf.mxu0
  %v1364 = vadd.f32 0.0, %v1363
  %v1365 = vpop.f32.mrf.mxu0
  %v1366 = vadd.f32 0.0, %v1365
  %1367 = vmatmul.bf16.gmra.mxu0 %v1315
  %v1368 = vpop.f32.mrf.mxu0
  %v1369 = vadd.f32 0.0, %v1368
  %v1370 = vpop.f32.mrf.mxu0
  %v1371 = vadd.f32 0.0, %v1370
  %1372 = vdwg.mxu0
  %v1373 = vmax.f32 %v1334, 0.0
  %v1374 = vmax.f32 %v1336, 0.0
  %v1375 = vmax.f32 %v1339, 0.0
  %v1376 = vmax.f32 %v1341, 0.0
  %v1377 = vmax.f32 %v1344, 0.0
  %v1378 = vmax.f32 %v1346, 0.0
  %v1379 = vmax.f32 %v1349, 0.0
  %v1380 = vmax.f32 %v1351, 0.0
  %v1381 = vmax.f32 %v1354, 0.0
  %v1382 = vmax.f32 %v1356, 0.0
  %v1383 = vmax.f32 %v1359, 0.0
  %v1384 = vmax.f32 %v1361, 0.0
  %v1385 = vmax.f32 %v1364, 0.0
  %v1386 = vmax.f32 %v1366, 0.0
  %v1387 = vmax.f32 %v1369, 0.0
  %v1388 = vmax.f32 %v1371, 0.0
  %v1389 = vpack.c.bf16 %v1373, %v1373
  %v1390 = vpack.c.bf16 %v1374, %v1374
  %v1391 = vpack.c.bf16 %v1375, %v1375
  %v1392 = vpack.c.bf16 %v1376, %v1376
  %v1393 = vpack.c.bf16 %v1377, %v1377
  %v1394 = vpack.c.bf16 %v1378, %v1378
  %v1395 = vpack.c.bf16 %v1379, %v1379
  %v1396 = vpack.c.bf16 %v1380, %v1380
  %v1397 = vpack.c.bf16 %v1381, %v1381
  %v1398 = vpack.c.bf16 %v1382, %v1382
  %v1399 = vpack.c.bf16 %v1383, %v1383
  %v1400 = vpack.c.bf16 %v1384, %v1384
  %v1401 = vpack.c.bf16 %v1385, %v1385
  %v1402 = vpack.c.bf16 %v1386, %v1386
  %v1403 = vpack.c.bf16 %v1387, %v1387
  %v1404 = vpack.c.bf16 %v1388, %v1388
  %v1405 = vld [vmem:[%s0 + $0x240] sm:$0xf]
  %v1406 = vld [vmem:[%s0 + $0x244] sm:$0xf]
  %v1407 = vld [vmem:[%s0 + $0x248] sm:$0xf]
  %v1408 = vld [vmem:[%s0 + $0x24c] sm:$0xf]
  %v1409 = vld [vmem:[%s0 + $0x250] sm:$0xf]
  %v1410 = vld [vmem:[%s0 + $0x254] sm:$0xf]
  %v1411 = vld [vmem:[%s0 + $0x258] sm:$0xf]
  %v1412 = vld [vmem:[%s0 + $0x25c] sm:$0xf]
  %v1413 = vld [vmem:[%s0 + $0x260] sm:$0xf]
  %v1414 = vld [vmem:[%s0 + $0x264] sm:$0xf]
  %v1415 = vld [vmem:[%s0 + $0x268] sm:$0xf]
  %v1416 = vld [vmem:[%s0 + $0x26c] sm:$0xf]
  %v1417 = vld [vmem:[%s0 + $0x270] sm:$0xf]
  %v1418 = vld [vmem:[%s0 + $0x274] sm:$0xf]
  %v1419 = vld [vmem:[%s0 + $0x278] sm:$0xf]
  %v1420 = vld [vmem:[%s0 + $0x27c] sm:$0xf]
  %v1437 = vunpack.c.l.b16 %v1405
  %v1438 = vunpack.c.l.b16 %v1406
  %v1439 = vunpack.c.l.b16 %v1407
  %v1440 = vunpack.c.l.b16 %v1408
  %v1441 = vunpack.c.l.b16 %v1409
  %v1442 = vunpack.c.l.b16 %v1410
  %v1443 = vunpack.c.l.b16 %v1411
  %v1444 = vunpack.c.l.b16 %v1412
  %v1445 = vunpack.c.l.b16 %v1413
  %v1446 = vunpack.c.l.b16 %v1414
  %v1447 = vunpack.c.l.b16 %v1415
  %v1448 = vunpack.c.l.b16 %v1416
  %v1449 = vunpack.c.l.b16 %v1417
  %v1450 = vunpack.c.l.b16 %v1418
  %v1451 = vunpack.c.l.b16 %v1419
  %v1452 = vunpack.c.l.b16 %v1420
  %v1453 = vpack.c.b16 %v1438, %v1437
  %v1454 = vpack.c.b16 %v1440, %v1439
  %v1455 = vpack.c.b16 %v1442, %v1441
  %v1456 = vpack.c.b16 %v1444, %v1443
  %v1457 = vpack.c.b16 %v1446, %v1445
  %v1458 = vpack.c.b16 %v1448, %v1447
  %v1459 = vpack.c.b16 %v1450, %v1449
  %v1460 = vpack.c.b16 %v1452, %v1451
  %1469 = vmatpush.bf16.msra.mxu0 %v155
  %1470 = vmatpush.bf16.msra.mxu0 %v154
  %1471 = vmatpush.bf16.msra.mxu0 %v153
  %1472 = vmatpush.bf16.msra.mxu0 %v152
  %1473 = vmatpush.bf16.msra.mxu0 %v151
  %1474 = vmatpush.bf16.msra.mxu0 %v150
  %1475 = vmatpush.bf16.msra.mxu0 %v149
  %1476 = vmatpush.bf16.msra.mxu0 %v148
  %1477 = vmatmul.bf16.gmra.mxu0 %v1453
  %v1478 = vpop.f32.mrf.mxu0
  %v1479 = vadd.f32 0.0, %v1478
  %v1480 = vpop.f32.mrf.mxu0
  %v1481 = vadd.f32 0.0, %v1480
  %1482 = vmatmul.bf16.gmra.mxu0 %v1454
  %v1483 = vpop.f32.mrf.mxu0
  %v1484 = vadd.f32 0.0, %v1483
  %v1485 = vpop.f32.mrf.mxu0
  %v1486 = vadd.f32 0.0, %v1485
  %1487 = vmatmul.bf16.gmra.mxu0 %v1455
  %v1488 = vpop.f32.mrf.mxu0
  %v1489 = vadd.f32 0.0, %v1488
  %v1490 = vpop.f32.mrf.mxu0
  %v1491 = vadd.f32 0.0, %v1490
  %1492 = vmatmul.bf16.gmra.mxu0 %v1456
  %v1493 = vpop.f32.mrf.mxu0
  %v1494 = vadd.f32 0.0, %v1493
  %v1495 = vpop.f32.mrf.mxu0
  %v1496 = vadd.f32 0.0, %v1495
  %1497 = vmatmul.bf16.gmra.mxu0 %v1457
  %v1498 = vpop.f32.mrf.mxu0
  %v1499 = vadd.f32 0.0, %v1498
  %v1500 = vpop.f32.mrf.mxu0
  %v1501 = vadd.f32 0.0, %v1500
  %1502 = vmatmul.bf16.gmra.mxu0 %v1458
  %v1503 = vpop.f32.mrf.mxu0
  %v1504 = vadd.f32 0.0, %v1503
  %v1505 = vpop.f32.mrf.mxu0
  %v1506 = vadd.f32 0.0, %v1505
  %1507 = vmatmul.bf16.gmra.mxu0 %v1459
  %v1508 = vpop.f32.mrf.mxu0
  %v1509 = vadd.f32 0.0, %v1508
  %v1510 = vpop.f32.mrf.mxu0
  %v1511 = vadd.f32 0.0, %v1510
  %1512 = vmatmul.bf16.gmra.mxu0 %v1460
  %v1513 = vpop.f32.mrf.mxu0
  %v1514 = vadd.f32 0.0, %v1513
  %v1515 = vpop.f32.mrf.mxu0
  %v1516 = vadd.f32 0.0, %v1515
  %1517 = vdwg.mxu0
  %v1518 = vmax.f32 %v1479, 0.0
  %v1519 = vmax.f32 %v1481, 0.0
  %v1520 = vmax.f32 %v1484, 0.0
  %v1521 = vmax.f32 %v1486, 0.0
  %v1522 = vmax.f32 %v1489, 0.0
  %v1523 = vmax.f32 %v1491, 0.0
  %v1524 = vmax.f32 %v1494, 0.0
  %v1525 = vmax.f32 %v1496, 0.0
  %v1526 = vmax.f32 %v1499, 0.0
  %v1527 = vmax.f32 %v1501, 0.0
  %v1528 = vmax.f32 %v1504, 0.0
  %v1529 = vmax.f32 %v1506, 0.0
  %v1530 = vmax.f32 %v1509, 0.0
  %v1531 = vmax.f32 %v1511, 0.0
  %v1532 = vmax.f32 %v1514, 0.0
  %v1533 = vmax.f32 %v1516, 0.0
  %v1534 = vpack.c.bf16 %v1518, %v1518
  %v1535 = vpack.c.bf16 %v1519, %v1519
  %v1536 = vpack.c.bf16 %v1520, %v1520
  %v1537 = vpack.c.bf16 %v1521, %v1521
  %v1538 = vpack.c.bf16 %v1522, %v1522
  %v1539 = vpack.c.bf16 %v1523, %v1523
  %v1540 = vpack.c.bf16 %v1524, %v1524
  %v1541 = vpack.c.bf16 %v1525, %v1525
  %v1542 = vpack.c.bf16 %v1526, %v1526
  %v1543 = vpack.c.bf16 %v1527, %v1527
  %v1544 = vpack.c.bf16 %v1528, %v1528
  %v1545 = vpack.c.bf16 %v1529, %v1529
  %v1546 = vpack.c.bf16 %v1530, %v1530
  %v1547 = vpack.c.bf16 %v1531, %v1531
  %v1548 = vpack.c.bf16 %v1532, %v1532
  %v1549 = vpack.c.bf16 %v1533, %v1533
  %v1550 = vld [vmem:[%s0 + $0x280] sm:$0xf]
  %v1551 = vld [vmem:[%s0 + $0x284] sm:$0xf]
  %v1552 = vld [vmem:[%s0 + $0x288] sm:$0xf]
  %v1553 = vld [vmem:[%s0 + $0x28c] sm:$0xf]
  %v1554 = vld [vmem:[%s0 + $0x290] sm:$0xf]
  %v1555 = vld [vmem:[%s0 + $0x294] sm:$0xf]
  %v1556 = vld [vmem:[%s0 + $0x298] sm:$0xf]
  %v1557 = vld [vmem:[%s0 + $0x29c] sm:$0xf]
  %v1558 = vld [vmem:[%s0 + $0x2a0] sm:$0xf]
  %v1559 = vld [vmem:[%s0 + $0x2a4] sm:$0xf]
  %v1560 = vld [vmem:[%s0 + $0x2a8] sm:$0xf]
  %v1561 = vld [vmem:[%s0 + $0x2ac] sm:$0xf]
  %v1562 = vld [vmem:[%s0 + $0x2b0] sm:$0xf]
  %v1563 = vld [vmem:[%s0 + $0x2b4] sm:$0xf]
  %v1564 = vld [vmem:[%s0 + $0x2b8] sm:$0xf]
  %v1565 = vld [vmem:[%s0 + $0x2bc] sm:$0xf]
  %v1582 = vunpack.c.l.b16 %v1550
  %v1583 = vunpack.c.l.b16 %v1551
  %v1584 = vunpack.c.l.b16 %v1552
  %v1585 = vunpack.c.l.b16 %v1553
  %v1586 = vunpack.c.l.b16 %v1554
  %v1587 = vunpack.c.l.b16 %v1555
  %v1588 = vunpack.c.l.b16 %v1556
  %v1589 = vunpack.c.l.b16 %v1557
  %v1590 = vunpack.c.l.b16 %v1558
  %v1591 = vunpack.c.l.b16 %v1559
  %v1592 = vunpack.c.l.b16 %v1560
  %v1593 = vunpack.c.l.b16 %v1561
  %v1594 = vunpack.c.l.b16 %v1562
  %v1595 = vunpack.c.l.b16 %v1563
  %v1596 = vunpack.c.l.b16 %v1564
  %v1597 = vunpack.c.l.b16 %v1565
  %v1598 = vpack.c.b16 %v1583, %v1582
  %v1599 = vpack.c.b16 %v1585, %v1584
  %v1600 = vpack.c.b16 %v1587, %v1586
  %v1601 = vpack.c.b16 %v1589, %v1588
  %v1602 = vpack.c.b16 %v1591, %v1590
  %v1603 = vpack.c.b16 %v1593, %v1592
  %v1604 = vpack.c.b16 %v1595, %v1594
  %v1605 = vpack.c.b16 %v1597, %v1596
  %1614 = vmatpush.bf16.msra.mxu0 %v155
  %1615 = vmatpush.bf16.msra.mxu0 %v154
  %1616 = vmatpush.bf16.msra.mxu0 %v153
  %1617 = vmatpush.bf16.msra.mxu0 %v152
  %1618 = vmatpush.bf16.msra.mxu0 %v151
  %1619 = vmatpush.bf16.msra.mxu0 %v150
  %1620 = vmatpush.bf16.msra.mxu0 %v149
  %1621 = vmatpush.bf16.msra.mxu0 %v148
  %1622 = vmatmul.bf16.gmra.mxu0 %v1598
  %v1623 = vpop.f32.mrf.mxu0
  %v1624 = vadd.f32 0.0, %v1623
  %v1625 = vpop.f32.mrf.mxu0
  %v1626 = vadd.f32 0.0, %v1625
  %1627 = vmatmul.bf16.gmra.mxu0 %v1599
  %v1628 = vpop.f32.mrf.mxu0
  %v1629 = vadd.f32 0.0, %v1628
  %v1630 = vpop.f32.mrf.mxu0
  %v1631 = vadd.f32 0.0, %v1630
  %1632 = vmatmul.bf16.gmra.mxu0 %v1600
  %v1633 = vpop.f32.mrf.mxu0
  %v1634 = vadd.f32 0.0, %v1633
  %v1635 = vpop.f32.mrf.mxu0
  %v1636 = vadd.f32 0.0, %v1635
  %1637 = vmatmul.bf16.gmra.mxu0 %v1601
  %v1638 = vpop.f32.mrf.mxu0
  %v1639 = vadd.f32 0.0, %v1638
  %v1640 = vpop.f32.mrf.mxu0
  %v1641 = vadd.f32 0.0, %v1640
  %1642 = vmatmul.bf16.gmra.mxu0 %v1602
  %v1643 = vpop.f32.mrf.mxu0
  %v1644 = vadd.f32 0.0, %v1643
  %v1645 = vpop.f32.mrf.mxu0
  %v1646 = vadd.f32 0.0, %v1645
  %1647 = vmatmul.bf16.gmra.mxu0 %v1603
  %v1648 = vpop.f32.mrf.mxu0
  %v1649 = vadd.f32 0.0, %v1648
  %v1650 = vpop.f32.mrf.mxu0
  %v1651 = vadd.f32 0.0, %v1650
  %1652 = vmatmul.bf16.gmra.mxu0 %v1604
  %v1653 = vpop.f32.mrf.mxu0
  %v1654 = vadd.f32 0.0, %v1653
  %v1655 = vpop.f32.mrf.mxu0
  %v1656 = vadd.f32 0.0, %v1655
  %1657 = vmatmul.bf16.gmra.mxu0 %v1605
  %v1658 = vpop.f32.mrf.mxu0
  %v1659 = vadd.f32 0.0, %v1658
  %v1660 = vpop.f32.mrf.mxu0
  %v1661 = vadd.f32 0.0, %v1660
  %1662 = vdwg.mxu0
  %v1663 = vmax.f32 %v1624, 0.0
  %v1664 = vmax.f32 %v1626, 0.0
  %v1665 = vmax.f32 %v1629, 0.0
  %v1666 = vmax.f32 %v1631, 0.0
  %v1667 = vmax.f32 %v1634, 0.0
  %v1668 = vmax.f32 %v1636, 0.0
  %v1669 = vmax.f32 %v1639, 0.0
  %v1670 = vmax.f32 %v1641, 0.0
  %v1671 = vmax.f32 %v1644, 0.0
  %v1672 = vmax.f32 %v1646, 0.0
  %v1673 = vmax.f32 %v1649, 0.0
  %v1674 = vmax.f32 %v1651, 0.0
  %v1675 = vmax.f32 %v1654, 0.0
  %v1676 = vmax.f32 %v1656, 0.0
  %v1677 = vmax.f32 %v1659, 0.0
  %v1678 = vmax.f32 %v1661, 0.0
  %v1679 = vpack.c.bf16 %v1663, %v1663
  %v1680 = vpack.c.bf16 %v1664, %v1664
  %v1681 = vpack.c.bf16 %v1665, %v1665
  %v1682 = vpack.c.bf16 %v1666, %v1666
  %v1683 = vpack.c.bf16 %v1667, %v1667
  %v1684 = vpack.c.bf16 %v1668, %v1668
  %v1685 = vpack.c.bf16 %v1669, %v1669
  %v1686 = vpack.c.bf16 %v1670, %v1670
  %v1687 = vpack.c.bf16 %v1671, %v1671
  %v1688 = vpack.c.bf16 %v1672, %v1672
  %v1689 = vpack.c.bf16 %v1673, %v1673
  %v1690 = vpack.c.bf16 %v1674, %v1674
  %v1691 = vpack.c.bf16 %v1675, %v1675
  %v1692 = vpack.c.bf16 %v1676, %v1676
  %v1693 = vpack.c.bf16 %v1677, %v1677
  %v1694 = vpack.c.bf16 %v1678, %v1678
  %v1695 = vld [vmem:[%s0 + $0x2c0] sm:$0xf]
  %v1696 = vld [vmem:[%s0 + $0x2c4] sm:$0xf]
  %v1697 = vld [vmem:[%s0 + $0x2c8] sm:$0xf]
  %v1698 = vld [vmem:[%s0 + $0x2cc] sm:$0xf]
  %v1699 = vld [vmem:[%s0 + $0x2d0] sm:$0xf]
  %v1700 = vld [vmem:[%s0 + $0x2d4] sm:$0xf]
  %v1701 = vld [vmem:[%s0 + $0x2d8] sm:$0xf]
  %v1702 = vld [vmem:[%s0 + $0x2dc] sm:$0xf]
  %v1703 = vld [vmem:[%s0 + $0x2e0] sm:$0xf]
  %v1704 = vld [vmem:[%s0 + $0x2e4] sm:$0xf]
  %v1705 = vld [vmem:[%s0 + $0x2e8] sm:$0xf]
  %v1706 = vld [vmem:[%s0 + $0x2ec] sm:$0xf]
  %v1707 = vld [vmem:[%s0 + $0x2f0] sm:$0xf]
  %v1708 = vld [vmem:[%s0 + $0x2f4] sm:$0xf]
  %v1709 = vld [vmem:[%s0 + $0x2f8] sm:$0xf]
  %v1710 = vld [vmem:[%s0 + $0x2fc] sm:$0xf]
  %v1727 = vunpack.c.l.b16 %v1695
  %v1728 = vunpack.c.l.b16 %v1696
  %v1729 = vunpack.c.l.b16 %v1697
  %v1730 = vunpack.c.l.b16 %v1698
  %v1731 = vunpack.c.l.b16 %v1699
  %v1732 = vunpack.c.l.b16 %v1700
  %v1733 = vunpack.c.l.b16 %v1701
  %v1734 = vunpack.c.l.b16 %v1702
  %v1735 = vunpack.c.l.b16 %v1703
  %v1736 = vunpack.c.l.b16 %v1704
  %v1737 = vunpack.c.l.b16 %v1705
  %v1738 = vunpack.c.l.b16 %v1706
  %v1739 = vunpack.c.l.b16 %v1707
  %v1740 = vunpack.c.l.b16 %v1708
  %v1741 = vunpack.c.l.b16 %v1709
  %v1742 = vunpack.c.l.b16 %v1710
  %v1743 = vpack.c.b16 %v1728, %v1727
  %v1744 = vpack.c.b16 %v1730, %v1729
  %v1745 = vpack.c.b16 %v1732, %v1731
  %v1746 = vpack.c.b16 %v1734, %v1733
  %v1747 = vpack.c.b16 %v1736, %v1735
  %v1748 = vpack.c.b16 %v1738, %v1737
  %v1749 = vpack.c.b16 %v1740, %v1739
  %v1750 = vpack.c.b16 %v1742, %v1741
  %1759 = vmatpush.bf16.msra.mxu0 %v155
  %1760 = vmatpush.bf16.msra.mxu0 %v154
  %1761 = vmatpush.bf16.msra.mxu0 %v153
  %1762 = vmatpush.bf16.msra.mxu0 %v152
  %1763 = vmatpush.bf16.msra.mxu0 %v151
  %1764 = vmatpush.bf16.msra.mxu0 %v150
  %1765 = vmatpush.bf16.msra.mxu0 %v149
  %1766 = vmatpush.bf16.msra.mxu0 %v148
  %1767 = vmatmul.bf16.gmra.mxu0 %v1743
  %v1768 = vpop.f32.mrf.mxu0
  %v1769 = vadd.f32 0.0, %v1768
  %v1770 = vpop.f32.mrf.mxu0
  %v1771 = vadd.f32 0.0, %v1770
  %1772 = vmatmul.bf16.gmra.mxu0 %v1744
  %v1773 = vpop.f32.mrf.mxu0
  %v1774 = vadd.f32 0.0, %v1773
  %v1775 = vpop.f32.mrf.mxu0
  %v1776 = vadd.f32 0.0, %v1775
  %1777 = vmatmul.bf16.gmra.mxu0 %v1745
  %v1778 = vpop.f32.mrf.mxu0
  %v1779 = vadd.f32 0.0, %v1778
  %v1780 = vpop.f32.mrf.mxu0
  %v1781 = vadd.f32 0.0, %v1780
  %1782 = vmatmul.bf16.gmra.mxu0 %v1746
  %v1783 = vpop.f32.mrf.mxu0
  %v1784 = vadd.f32 0.0, %v1783
  %v1785 = vpop.f32.mrf.mxu0
  %v1786 = vadd.f32 0.0, %v1785
  %1787 = vmatmul.bf16.gmra.mxu0 %v1747
  %v1788 = vpop.f32.mrf.mxu0
  %v1789 = vadd.f32 0.0, %v1788
  %v1790 = vpop.f32.mrf.mxu0
  %v1791 = vadd.f32 0.0, %v1790
  %1792 = vmatmul.bf16.gmra.mxu0 %v1748
  %v1793 = vpop.f32.mrf.mxu0
  %v1794 = vadd.f32 0.0, %v1793
  %v1795 = vpop.f32.mrf.mxu0
  %v1796 = vadd.f32 0.0, %v1795
  %1797 = vmatmul.bf16.gmra.mxu0 %v1749
  %v1798 = vpop.f32.mrf.mxu0
  %v1799 = vadd.f32 0.0, %v1798
  %v1800 = vpop.f32.mrf.mxu0
  %v1801 = vadd.f32 0.0, %v1800
  %1802 = vmatmul.bf16.gmra.mxu0 %v1750
  %v1803 = vpop.f32.mrf.mxu0
  %v1804 = vadd.f32 0.0, %v1803
  %v1805 = vpop.f32.mrf.mxu0
  %v1806 = vadd.f32 0.0, %v1805
  %1807 = vdwg.mxu0
  %v1808 = vmax.f32 %v1769, 0.0
  %v1809 = vmax.f32 %v1771, 0.0
  %v1810 = vmax.f32 %v1774, 0.0
  %v1811 = vmax.f32 %v1776, 0.0
  %v1812 = vmax.f32 %v1779, 0.0
  %v1813 = vmax.f32 %v1781, 0.0
  %v1814 = vmax.f32 %v1784, 0.0
  %v1815 = vmax.f32 %v1786, 0.0
  %v1816 = vmax.f32 %v1789, 0.0
  %v1817 = vmax.f32 %v1791, 0.0
  %v1818 = vmax.f32 %v1794, 0.0
  %v1819 = vmax.f32 %v1796, 0.0
  %v1820 = vmax.f32 %v1799, 0.0
  %v1821 = vmax.f32 %v1801, 0.0
  %v1822 = vmax.f32 %v1804, 0.0
  %v1823 = vmax.f32 %v1806, 0.0
  %v1824 = vpack.c.bf16 %v1808, %v1808
  %v1825 = vpack.c.bf16 %v1809, %v1809
  %v1826 = vpack.c.bf16 %v1810, %v1810
  %v1827 = vpack.c.bf16 %v1811, %v1811
  %v1828 = vpack.c.bf16 %v1812, %v1812
  %v1829 = vpack.c.bf16 %v1813, %v1813
  %v1830 = vpack.c.bf16 %v1814, %v1814
  %v1831 = vpack.c.bf16 %v1815, %v1815
  %v1832 = vpack.c.bf16 %v1816, %v1816
  %v1833 = vpack.c.bf16 %v1817, %v1817
  %v1834 = vpack.c.bf16 %v1818, %v1818
  %v1835 = vpack.c.bf16 %v1819, %v1819
  %v1836 = vpack.c.bf16 %v1820, %v1820
  %v1837 = vpack.c.bf16 %v1821, %v1821
  %v1838 = vpack.c.bf16 %v1822, %v1822
  %v1839 = vpack.c.bf16 %v1823, %v1823
  %v1840 = vld [vmem:[%s0 + $0x300] sm:$0xf]
  %v1841 = vld [vmem:[%s0 + $0x304] sm:$0xf]
  %v1842 = vld [vmem:[%s0 + $0x308] sm:$0xf]
  %v1843 = vld [vmem:[%s0 + $0x30c] sm:$0xf]
  %v1844 = vld [vmem:[%s0 + $0x310] sm:$0xf]
  %v1845 = vld [vmem:[%s0 + $0x314] sm:$0xf]
  %v1846 = vld [vmem:[%s0 + $0x318] sm:$0xf]
  %v1847 = vld [vmem:[%s0 + $0x31c] sm:$0xf]
  %v1848 = vld [vmem:[%s0 + $0x320] sm:$0xf]
  %v1849 = vld [vmem:[%s0 + $0x324] sm:$0xf]
  %v1850 = vld [vmem:[%s0 + $0x328] sm:$0xf]
  %v1851 = vld [vmem:[%s0 + $0x32c] sm:$0xf]
  %v1852 = vld [vmem:[%s0 + $0x330] sm:$0xf]
  %v1853 = vld [vmem:[%s0 + $0x334] sm:$0xf]
  %v1854 = vld [vmem:[%s0 + $0x338] sm:$0xf]
  %v1855 = vld [vmem:[%s0 + $0x33c] sm:$0xf]
  %v1872 = vunpack.c.l.b16 %v1840
  %v1873 = vunpack.c.l.b16 %v1841
  %v1874 = vunpack.c.l.b16 %v1842
  %v1875 = vunpack.c.l.b16 %v1843
  %v1876 = vunpack.c.l.b16 %v1844
  %v1877 = vunpack.c.l.b16 %v1845
  %v1878 = vunpack.c.l.b16 %v1846
  %v1879 = vunpack.c.l.b16 %v1847
  %v1880 = vunpack.c.l.b16 %v1848
  %v1881 = vunpack.c.l.b16 %v1849
  %v1882 = vunpack.c.l.b16 %v1850
  %v1883 = vunpack.c.l.b16 %v1851
  %v1884 = vunpack.c.l.b16 %v1852
  %v1885 = vunpack.c.l.b16 %v1853
  %v1886 = vunpack.c.l.b16 %v1854
  %v1887 = vunpack.c.l.b16 %v1855
  %v1888 = vpack.c.b16 %v1873, %v1872
  %v1889 = vpack.c.b16 %v1875, %v1874
  %v1890 = vpack.c.b16 %v1877, %v1876
  %v1891 = vpack.c.b16 %v1879, %v1878
  %v1892 = vpack.c.b16 %v1881, %v1880
  %v1893 = vpack.c.b16 %v1883, %v1882
  %v1894 = vpack.c.b16 %v1885, %v1884
  %v1895 = vpack.c.b16 %v1887, %v1886
  %1904 = vmatpush.bf16.msra.mxu0 %v155
  %1905 = vmatpush.bf16.msra.mxu0 %v154
  %1906 = vmatpush.bf16.msra.mxu0 %v153
  %1907 = vmatpush.bf16.msra.mxu0 %v152
  %1908 = vmatpush.bf16.msra.mxu0 %v151
  %1909 = vmatpush.bf16.msra.mxu0 %v150
  %1910 = vmatpush.bf16.msra.mxu0 %v149
  %1911 = vmatpush.bf16.msra.mxu0 %v148
  %1912 = vmatmul.bf16.gmra.mxu0 %v1888
  %v1913 = vpop.f32.mrf.mxu0
  %v1914 = vadd.f32 0.0, %v1913
  %v1915 = vpop.f32.mrf.mxu0
  %v1916 = vadd.f32 0.0, %v1915
  %1917 = vmatmul.bf16.gmra.mxu0 %v1889
  %v1918 = vpop.f32.mrf.mxu0
  %v1919 = vadd.f32 0.0, %v1918
  %v1920 = vpop.f32.mrf.mxu0
  %v1921 = vadd.f32 0.0, %v1920
  %1922 = vmatmul.bf16.gmra.mxu0 %v1890
  %v1923 = vpop.f32.mrf.mxu0
  %v1924 = vadd.f32 0.0, %v1923
  %v1925 = vpop.f32.mrf.mxu0
  %v1926 = vadd.f32 0.0, %v1925
  %1927 = vmatmul.bf16.gmra.mxu0 %v1891
  %v1928 = vpop.f32.mrf.mxu0
  %v1929 = vadd.f32 0.0, %v1928
  %v1930 = vpop.f32.mrf.mxu0
  %v1931 = vadd.f32 0.0, %v1930
  %1932 = vmatmul.bf16.gmra.mxu0 %v1892
  %v1933 = vpop.f32.mrf.mxu0
  %v1934 = vadd.f32 0.0, %v1933
  %v1935 = vpop.f32.mrf.mxu0
  %v1936 = vadd.f32 0.0, %v1935
  %1937 = vmatmul.bf16.gmra.mxu0 %v1893
  %v1938 = vpop.f32.mrf.mxu0
  %v1939 = vadd.f32 0.0, %v1938
  %v1940 = vpop.f32.mrf.mxu0
  %v1941 = vadd.f32 0.0, %v1940
  %1942 = vmatmul.bf16.gmra.mxu0 %v1894
  %v1943 = vpop.f32.mrf.mxu0
  %v1944 = vadd.f32 0.0, %v1943
  %v1945 = vpop.f32.mrf.mxu0
  %v1946 = vadd.f32 0.0, %v1945
  %1947 = vmatmul.bf16.gmra.mxu0 %v1895
  %v1948 = vpop.f32.mrf.mxu0
  %v1949 = vadd.f32 0.0, %v1948
  %v1950 = vpop.f32.mrf.mxu0
  %v1951 = vadd.f32 0.0, %v1950
  %1952 = vdwg.mxu0
  %v1953 = vmax.f32 %v1914, 0.0
  %v1954 = vmax.f32 %v1916, 0.0
  %v1955 = vmax.f32 %v1919, 0.0
  %v1956 = vmax.f32 %v1921, 0.0
  %v1957 = vmax.f32 %v1924, 0.0
  %v1958 = vmax.f32 %v1926, 0.0
  %v1959 = vmax.f32 %v1929, 0.0
  %v1960 = vmax.f32 %v1931, 0.0
  %v1961 = vmax.f32 %v1934, 0.0
  %v1962 = vmax.f32 %v1936, 0.0
  %v1963 = vmax.f32 %v1939, 0.0
  %v1964 = vmax.f32 %v1941, 0.0
  %v1965 = vmax.f32 %v1944, 0.0
  %v1966 = vmax.f32 %v1946, 0.0
  %v1967 = vmax.f32 %v1949, 0.0
  %v1968 = vmax.f32 %v1951, 0.0
  %v1969 = vpack.c.bf16 %v1953, %v1953
  %v1970 = vpack.c.bf16 %v1954, %v1954
  %v1971 = vpack.c.bf16 %v1955, %v1955
  %v1972 = vpack.c.bf16 %v1956, %v1956
  %v1973 = vpack.c.bf16 %v1957, %v1957
  %v1974 = vpack.c.bf16 %v1958, %v1958
  %v1975 = vpack.c.bf16 %v1959, %v1959
  %v1976 = vpack.c.bf16 %v1960, %v1960
  %v1977 = vpack.c.bf16 %v1961, %v1961
  %v1978 = vpack.c.bf16 %v1962, %v1962
  %v1979 = vpack.c.bf16 %v1963, %v1963
  %v1980 = vpack.c.bf16 %v1964, %v1964
  %v1981 = vpack.c.bf16 %v1965, %v1965
  %v1982 = vpack.c.bf16 %v1966, %v1966
  %v1983 = vpack.c.bf16 %v1967, %v1967
  %v1984 = vpack.c.bf16 %v1968, %v1968
  %v1985 = vld [vmem:[%s0 + $0x340] sm:$0xf]
  %v1986 = vld [vmem:[%s0 + $0x344] sm:$0xf]
  %v1987 = vld [vmem:[%s0 + $0x348] sm:$0xf]
  %v1988 = vld [vmem:[%s0 + $0x34c] sm:$0xf]
  %v1989 = vld [vmem:[%s0 + $0x350] sm:$0xf]
  %v1990 = vld [vmem:[%s0 + $0x354] sm:$0xf]
  %v1991 = vld [vmem:[%s0 + $0x358] sm:$0xf]
  %v1992 = vld [vmem:[%s0 + $0x35c] sm:$0xf]
  %v1993 = vld [vmem:[%s0 + $0x360] sm:$0xf]
  %v1994 = vld [vmem:[%s0 + $0x364] sm:$0xf]
  %v1995 = vld [vmem:[%s0 + $0x368] sm:$0xf]
  %v1996 = vld [vmem:[%s0 + $0x36c] sm:$0xf]
  %v1997 = vld [vmem:[%s0 + $0x370] sm:$0xf]
  %v1998 = vld [vmem:[%s0 + $0x374] sm:$0xf]
  %v1999 = vld [vmem:[%s0 + $0x378] sm:$0xf]
  %v2000 = vld [vmem:[%s0 + $0x37c] sm:$0xf]
  %v2017 = vunpack.c.l.b16 %v1985
  %v2018 = vunpack.c.l.b16 %v1986
  %v2019 = vunpack.c.l.b16 %v1987
  %v2020 = vunpack.c.l.b16 %v1988
  %v2021 = vunpack.c.l.b16 %v1989
  %v2022 = vunpack.c.l.b16 %v1990
  %v2023 = vunpack.c.l.b16 %v1991
  %v2024 = vunpack.c.l.b16 %v1992
  %v2025 = vunpack.c.l.b16 %v1993
  %v2026 = vunpack.c.l.b16 %v1994
  %v2027 = vunpack.c.l.b16 %v1995
  %v2028 = vunpack.c.l.b16 %v1996
  %v2029 = vunpack.c.l.b16 %v1997
  %v2030 = vunpack.c.l.b16 %v1998
  %v2031 = vunpack.c.l.b16 %v1999
  %v2032 = vunpack.c.l.b16 %v2000
  %v2033 = vpack.c.b16 %v2018, %v2017
  %v2034 = vpack.c.b16 %v2020, %v2019
  %v2035 = vpack.c.b16 %v2022, %v2021
  %v2036 = vpack.c.b16 %v2024, %v2023
  %v2037 = vpack.c.b16 %v2026, %v2025
  %v2038 = vpack.c.b16 %v2028, %v2027
  %v2039 = vpack.c.b16 %v2030, %v2029
  %v2040 = vpack.c.b16 %v2032, %v2031
  %2049 = vmatpush.bf16.msra.mxu0 %v155
  %2050 = vmatpush.bf16.msra.mxu0 %v154
  %2051 = vmatpush.bf16.msra.mxu0 %v153
  %2052 = vmatpush.bf16.msra.mxu0 %v152
  %2053 = vmatpush.bf16.msra.mxu0 %v151
  %2054 = vmatpush.bf16.msra.mxu0 %v150
  %2055 = vmatpush.bf16.msra.mxu0 %v149
  %2056 = vmatpush.bf16.msra.mxu0 %v148
  %2057 = vmatmul.bf16.gmra.mxu0 %v2033
  %v2058 = vpop.f32.mrf.mxu0
  %v2059 = vadd.f32 0.0, %v2058
  %v2060 = vpop.f32.mrf.mxu0
  %v2061 = vadd.f32 0.0, %v2060
  %2062 = vmatmul.bf16.gmra.mxu0 %v2034
  %v2063 = vpop.f32.mrf.mxu0
  %v2064 = vadd.f32 0.0, %v2063
  %v2065 = vpop.f32.mrf.mxu0
  %v2066 = vadd.f32 0.0, %v2065
  %2067 = vmatmul.bf16.gmra.mxu0 %v2035
  %v2068 = vpop.f32.mrf.mxu0
  %v2069 = vadd.f32 0.0, %v2068
  %v2070 = vpop.f32.mrf.mxu0
  %v2071 = vadd.f32 0.0, %v2070
  %2072 = vmatmul.bf16.gmra.mxu0 %v2036
  %v2073 = vpop.f32.mrf.mxu0
  %v2074 = vadd.f32 0.0, %v2073
  %v2075 = vpop.f32.mrf.mxu0
  %v2076 = vadd.f32 0.0, %v2075
  %2077 = vmatmul.bf16.gmra.mxu0 %v2037
  %v2078 = vpop.f32.mrf.mxu0
  %v2079 = vadd.f32 0.0, %v2078
  %v2080 = vpop.f32.mrf.mxu0
  %v2081 = vadd.f32 0.0, %v2080
  %2082 = vmatmul.bf16.gmra.mxu0 %v2038
  %v2083 = vpop.f32.mrf.mxu0
  %v2084 = vadd.f32 0.0, %v2083
  %v2085 = vpop.f32.mrf.mxu0
  %v2086 = vadd.f32 0.0, %v2085
  %2087 = vmatmul.bf16.gmra.mxu0 %v2039
  %v2088 = vpop.f32.mrf.mxu0
  %v2089 = vadd.f32 0.0, %v2088
  %v2090 = vpop.f32.mrf.mxu0
  %v2091 = vadd.f32 0.0, %v2090
  %2092 = vmatmul.bf16.gmra.mxu0 %v2040
  %v2093 = vpop.f32.mrf.mxu0
  %v2094 = vadd.f32 0.0, %v2093
  %v2095 = vpop.f32.mrf.mxu0
  %v2096 = vadd.f32 0.0, %v2095
  %2097 = vdwg.mxu0
  %v2098 = vmax.f32 %v2059, 0.0
  %v2099 = vmax.f32 %v2061, 0.0
  %v2100 = vmax.f32 %v2064, 0.0
  %v2101 = vmax.f32 %v2066, 0.0
  %v2102 = vmax.f32 %v2069, 0.0
  %v2103 = vmax.f32 %v2071, 0.0
  %v2104 = vmax.f32 %v2074, 0.0
  %v2105 = vmax.f32 %v2076, 0.0
  %v2106 = vmax.f32 %v2079, 0.0
  %v2107 = vmax.f32 %v2081, 0.0
  %v2108 = vmax.f32 %v2084, 0.0
  %v2109 = vmax.f32 %v2086, 0.0
  %v2110 = vmax.f32 %v2089, 0.0
  %v2111 = vmax.f32 %v2091, 0.0
  %v2112 = vmax.f32 %v2094, 0.0
  %v2113 = vmax.f32 %v2096, 0.0
  %v2114 = vpack.c.bf16 %v2098, %v2098
  %v2115 = vpack.c.bf16 %v2099, %v2099
  %v2116 = vpack.c.bf16 %v2100, %v2100
  %v2117 = vpack.c.bf16 %v2101, %v2101
  %v2118 = vpack.c.bf16 %v2102, %v2102
  %v2119 = vpack.c.bf16 %v2103, %v2103
  %v2120 = vpack.c.bf16 %v2104, %v2104
  %v2121 = vpack.c.bf16 %v2105, %v2105
  %v2122 = vpack.c.bf16 %v2106, %v2106
  %v2123 = vpack.c.bf16 %v2107, %v2107
  %v2124 = vpack.c.bf16 %v2108, %v2108
  %v2125 = vpack.c.bf16 %v2109, %v2109
  %v2126 = vpack.c.bf16 %v2110, %v2110
  %v2127 = vpack.c.bf16 %v2111, %v2111
  %v2128 = vpack.c.bf16 %v2112, %v2112
  %v2129 = vpack.c.bf16 %v2113, %v2113
  %v2130 = vld [vmem:[%s0 + $0x380] sm:$0xf]
  %v2131 = vld [vmem:[%s0 + $0x384] sm:$0xf]
  %v2132 = vld [vmem:[%s0 + $0x388] sm:$0xf]
  %v2133 = vld [vmem:[%s0 + $0x38c] sm:$0xf]
  %v2134 = vld [vmem:[%s0 + $0x390] sm:$0xf]
  %v2135 = vld [vmem:[%s0 + $0x394] sm:$0xf]
  %v2136 = vld [vmem:[%s0 + $0x398] sm:$0xf]
  %v2137 = vld [vmem:[%s0 + $0x39c] sm:$0xf]
  %v2138 = vld [vmem:[%s0 + $0x3a0] sm:$0xf]
  %v2139 = vld [vmem:[%s0 + $0x3a4] sm:$0xf]
  %v2140 = vld [vmem:[%s0 + $0x3a8] sm:$0xf]
  %v2141 = vld [vmem:[%s0 + $0x3ac] sm:$0xf]
  %v2142 = vld [vmem:[%s0 + $0x3b0] sm:$0xf]
  %v2143 = vld [vmem:[%s0 + $0x3b4] sm:$0xf]
  %v2144 = vld [vmem:[%s0 + $0x3b8] sm:$0xf]
  %v2145 = vld [vmem:[%s0 + $0x3bc] sm:$0xf]
  %v2162 = vunpack.c.l.b16 %v2130
  %v2163 = vunpack.c.l.b16 %v2131
  %v2164 = vunpack.c.l.b16 %v2132
  %v2165 = vunpack.c.l.b16 %v2133
  %v2166 = vunpack.c.l.b16 %v2134
  %v2167 = vunpack.c.l.b16 %v2135
  %v2168 = vunpack.c.l.b16 %v2136
  %v2169 = vunpack.c.l.b16 %v2137
  %v2170 = vunpack.c.l.b16 %v2138
  %v2171 = vunpack.c.l.b16 %v2139
  %v2172 = vunpack.c.l.b16 %v2140
  %v2173 = vunpack.c.l.b16 %v2141
  %v2174 = vunpack.c.l.b16 %v2142
  %v2175 = vunpack.c.l.b16 %v2143
  %v2176 = vunpack.c.l.b16 %v2144
  %v2177 = vunpack.c.l.b16 %v2145
  %v2178 = vpack.c.b16 %v2163, %v2162
  %v2179 = vpack.c.b16 %v2165, %v2164
  %v2180 = vpack.c.b16 %v2167, %v2166
  %v2181 = vpack.c.b16 %v2169, %v2168
  %v2182 = vpack.c.b16 %v2171, %v2170
  %v2183 = vpack.c.b16 %v2173, %v2172
  %v2184 = vpack.c.b16 %v2175, %v2174
  %v2185 = vpack.c.b16 %v2177, %v2176
  %2194 = vmatpush.bf16.msra.mxu0 %v155
  %2195 = vmatpush.bf16.msra.mxu0 %v154
  %2196 = vmatpush.bf16.msra.mxu0 %v153
  %2197 = vmatpush.bf16.msra.mxu0 %v152
  %2198 = vmatpush.bf16.msra.mxu0 %v151
  %2199 = vmatpush.bf16.msra.mxu0 %v150
  %2200 = vmatpush.bf16.msra.mxu0 %v149
  %2201 = vmatpush.bf16.msra.mxu0 %v148
  %2202 = vmatmul.bf16.gmra.mxu0 %v2178
  %v2203 = vpop.f32.mrf.mxu0
  %v2204 = vadd.f32 0.0, %v2203
  %v2205 = vpop.f32.mrf.mxu0
  %v2206 = vadd.f32 0.0, %v2205
  %2207 = vmatmul.bf16.gmra.mxu0 %v2179
  %v2208 = vpop.f32.mrf.mxu0
  %v2209 = vadd.f32 0.0, %v2208
  %v2210 = vpop.f32.mrf.mxu0
  %v2211 = vadd.f32 0.0, %v2210
  %2212 = vmatmul.bf16.gmra.mxu0 %v2180
  %v2213 = vpop.f32.mrf.mxu0
  %v2214 = vadd.f32 0.0, %v2213
  %v2215 = vpop.f32.mrf.mxu0
  %v2216 = vadd.f32 0.0, %v2215
  %2217 = vmatmul.bf16.gmra.mxu0 %v2181
  %v2218 = vpop.f32.mrf.mxu0
  %v2219 = vadd.f32 0.0, %v2218
  %v2220 = vpop.f32.mrf.mxu0
  %v2221 = vadd.f32 0.0, %v2220
  %2222 = vmatmul.bf16.gmra.mxu0 %v2182
  %v2223 = vpop.f32.mrf.mxu0
  %v2224 = vadd.f32 0.0, %v2223
  %v2225 = vpop.f32.mrf.mxu0
  %v2226 = vadd.f32 0.0, %v2225
  %2227 = vmatmul.bf16.gmra.mxu0 %v2183
  %v2228 = vpop.f32.mrf.mxu0
  %v2229 = vadd.f32 0.0, %v2228
  %v2230 = vpop.f32.mrf.mxu0
  %v2231 = vadd.f32 0.0, %v2230
  %2232 = vmatmul.bf16.gmra.mxu0 %v2184
  %v2233 = vpop.f32.mrf.mxu0
  %v2234 = vadd.f32 0.0, %v2233
  %v2235 = vpop.f32.mrf.mxu0
  %v2236 = vadd.f32 0.0, %v2235
  %2237 = vmatmul.bf16.gmra.mxu0 %v2185
  %v2238 = vpop.f32.mrf.mxu0
  %v2239 = vadd.f32 0.0, %v2238
  %v2240 = vpop.f32.mrf.mxu0
  %v2241 = vadd.f32 0.0, %v2240
  %2242 = vdwg.mxu0
  %v2243 = vmax.f32 %v2204, 0.0
  %v2244 = vmax.f32 %v2206, 0.0
  %v2245 = vmax.f32 %v2209, 0.0
  %v2246 = vmax.f32 %v2211, 0.0
  %v2247 = vmax.f32 %v2214, 0.0
  %v2248 = vmax.f32 %v2216, 0.0
  %v2249 = vmax.f32 %v2219, 0.0
  %v2250 = vmax.f32 %v2221, 0.0
  %v2251 = vmax.f32 %v2224, 0.0
  %v2252 = vmax.f32 %v2226, 0.0
  %v2253 = vmax.f32 %v2229, 0.0
  %v2254 = vmax.f32 %v2231, 0.0
  %v2255 = vmax.f32 %v2234, 0.0
  %v2256 = vmax.f32 %v2236, 0.0
  %v2257 = vmax.f32 %v2239, 0.0
  %v2258 = vmax.f32 %v2241, 0.0
  %v2259 = vpack.c.bf16 %v2243, %v2243
  %v2260 = vpack.c.bf16 %v2244, %v2244
  %v2261 = vpack.c.bf16 %v2245, %v2245
  %v2262 = vpack.c.bf16 %v2246, %v2246
  %v2263 = vpack.c.bf16 %v2247, %v2247
  %v2264 = vpack.c.bf16 %v2248, %v2248
  %v2265 = vpack.c.bf16 %v2249, %v2249
  %v2266 = vpack.c.bf16 %v2250, %v2250
  %v2267 = vpack.c.bf16 %v2251, %v2251
  %v2268 = vpack.c.bf16 %v2252, %v2252
  %v2269 = vpack.c.bf16 %v2253, %v2253
  %v2270 = vpack.c.bf16 %v2254, %v2254
  %v2271 = vpack.c.bf16 %v2255, %v2255
  %v2272 = vpack.c.bf16 %v2256, %v2256
  %v2273 = vpack.c.bf16 %v2257, %v2257
  %v2274 = vpack.c.bf16 %v2258, %v2258
  %v2275 = vld [vmem:[%s0 + $0x3c0] sm:$0xf]
  %v2276 = vld [vmem:[%s0 + $0x3c4] sm:$0xf]
  %v2277 = vld [vmem:[%s0 + $0x3c8] sm:$0xf]
  %v2278 = vld [vmem:[%s0 + $0x3cc] sm:$0xf]
  %v2279 = vld [vmem:[%s0 + $0x3d0] sm:$0xf]
  %v2280 = vld [vmem:[%s0 + $0x3d4] sm:$0xf]
  %v2281 = vld [vmem:[%s0 + $0x3d8] sm:$0xf]
  %v2282 = vld [vmem:[%s0 + $0x3dc] sm:$0xf]
  %v2283 = vld [vmem:[%s0 + $0x3e0] sm:$0xf]
  %v2284 = vld [vmem:[%s0 + $0x3e4] sm:$0xf]
  %v2285 = vld [vmem:[%s0 + $0x3e8] sm:$0xf]
  %v2286 = vld [vmem:[%s0 + $0x3ec] sm:$0xf]
  %v2287 = vld [vmem:[%s0 + $0x3f0] sm:$0xf]
  %v2288 = vld [vmem:[%s0 + $0x3f4] sm:$0xf]
  %v2289 = vld [vmem:[%s0 + $0x3f8] sm:$0xf]
  %v2290 = vld [vmem:[%s0 + $0x3fc] sm:$0xf]
  %v2307 = vunpack.c.l.b16 %v2275
  %v2308 = vunpack.c.l.b16 %v2276
  %v2309 = vunpack.c.l.b16 %v2277
  %v2310 = vunpack.c.l.b16 %v2278
  %v2311 = vunpack.c.l.b16 %v2279
  %v2312 = vunpack.c.l.b16 %v2280
  %v2313 = vunpack.c.l.b16 %v2281
  %v2314 = vunpack.c.l.b16 %v2282
  %v2315 = vunpack.c.l.b16 %v2283
  %v2316 = vunpack.c.l.b16 %v2284
  %v2317 = vunpack.c.l.b16 %v2285
  %v2318 = vunpack.c.l.b16 %v2286
  %v2319 = vunpack.c.l.b16 %v2287
  %v2320 = vunpack.c.l.b16 %v2288
  %v2321 = vunpack.c.l.b16 %v2289
  %v2322 = vunpack.c.l.b16 %v2290
  %v2323 = vpack.c.b16 %v2308, %v2307
  %v2324 = vpack.c.b16 %v2310, %v2309
  %v2325 = vpack.c.b16 %v2312, %v2311
  %v2326 = vpack.c.b16 %v2314, %v2313
  %v2327 = vpack.c.b16 %v2316, %v2315
  %v2328 = vpack.c.b16 %v2318, %v2317
  %v2329 = vpack.c.b16 %v2320, %v2319
  %v2330 = vpack.c.b16 %v2322, %v2321
  %2339 = vmatpush.bf16.msra.mxu0 %v155
  %2340 = vmatpush.bf16.msra.mxu0 %v154
  %2341 = vmatpush.bf16.msra.mxu0 %v153
  %2342 = vmatpush.bf16.msra.mxu0 %v152
  %2343 = vmatpush.bf16.msra.mxu0 %v151
  %2344 = vmatpush.bf16.msra.mxu0 %v150
  %2345 = vmatpush.bf16.msra.mxu0 %v149
  %2346 = vmatpush.bf16.msra.mxu0 %v148
  %2347 = vmatmul.bf16.gmra.mxu0 %v2323
  %v2348 = vpop.f32.mrf.mxu0
  %v2349 = vadd.f32 0.0, %v2348
  %v2350 = vpop.f32.mrf.mxu0
  %v2351 = vadd.f32 0.0, %v2350
  %2352 = vmatmul.bf16.gmra.mxu0 %v2324
  %v2353 = vpop.f32.mrf.mxu0
  %v2354 = vadd.f32 0.0, %v2353
  %v2355 = vpop.f32.mrf.mxu0
  %v2356 = vadd.f32 0.0, %v2355
  %2357 = vmatmul.bf16.gmra.mxu0 %v2325
  %v2358 = vpop.f32.mrf.mxu0
  %v2359 = vadd.f32 0.0, %v2358
  %v2360 = vpop.f32.mrf.mxu0
  %v2361 = vadd.f32 0.0, %v2360
  %2362 = vmatmul.bf16.gmra.mxu0 %v2326
  %v2363 = vpop.f32.mrf.mxu0
  %v2364 = vadd.f32 0.0, %v2363
  %v2365 = vpop.f32.mrf.mxu0
  %v2366 = vadd.f32 0.0, %v2365
  %2367 = vmatmul.bf16.gmra.mxu0 %v2327
  %v2368 = vpop.f32.mrf.mxu0
  %v2369 = vadd.f32 0.0, %v2368
  %v2370 = vpop.f32.mrf.mxu0
  %v2371 = vadd.f32 0.0, %v2370
  %2372 = vmatmul.bf16.gmra.mxu0 %v2328
  %v2373 = vpop.f32.mrf.mxu0
  %v2374 = vadd.f32 0.0, %v2373
  %v2375 = vpop.f32.mrf.mxu0
  %v2376 = vadd.f32 0.0, %v2375
  %2377 = vmatmul.bf16.gmra.mxu0 %v2329
  %v2378 = vpop.f32.mrf.mxu0
  %v2379 = vadd.f32 0.0, %v2378
  %v2380 = vpop.f32.mrf.mxu0
  %v2381 = vadd.f32 0.0, %v2380
  %2382 = vmatmul.bf16.gmra.mxu0 %v2330
  %v2383 = vpop.f32.mrf.mxu0
  %v2384 = vadd.f32 0.0, %v2383
  %v2385 = vpop.f32.mrf.mxu0
  %v2386 = vadd.f32 0.0, %v2385
  %2387 = vdwg.mxu0
  %v2388 = vmax.f32 %v2349, 0.0
  %v2389 = vmax.f32 %v2351, 0.0
  %v2390 = vmax.f32 %v2354, 0.0
  %v2391 = vmax.f32 %v2356, 0.0
  %v2392 = vmax.f32 %v2359, 0.0
  %v2393 = vmax.f32 %v2361, 0.0
  %v2394 = vmax.f32 %v2364, 0.0
  %v2395 = vmax.f32 %v2366, 0.0
  %v2396 = vmax.f32 %v2369, 0.0
  %v2397 = vmax.f32 %v2371, 0.0
  %v2398 = vmax.f32 %v2374, 0.0
  %v2399 = vmax.f32 %v2376, 0.0
  %v2400 = vmax.f32 %v2379, 0.0
  %v2401 = vmax.f32 %v2381, 0.0
  %v2402 = vmax.f32 %v2384, 0.0
  %v2403 = vmax.f32 %v2386, 0.0
  %v2404 = vpack.c.bf16 %v2388, %v2388
  %v2405 = vpack.c.bf16 %v2389, %v2389
  %v2406 = vpack.c.bf16 %v2390, %v2390
  %v2407 = vpack.c.bf16 %v2391, %v2391
  %v2408 = vpack.c.bf16 %v2392, %v2392
  %v2409 = vpack.c.bf16 %v2393, %v2393
  %v2410 = vpack.c.bf16 %v2394, %v2394
  %v2411 = vpack.c.bf16 %v2395, %v2395
  %v2412 = vpack.c.bf16 %v2396, %v2396
  %v2413 = vpack.c.bf16 %v2397, %v2397
  %v2414 = vpack.c.bf16 %v2398, %v2398
  %v2415 = vpack.c.bf16 %v2399, %v2399
  %v2416 = vpack.c.bf16 %v2400, %v2400
  %v2417 = vpack.c.bf16 %v2401, %v2401
  %v2418 = vpack.c.bf16 %v2402, %v2402
  %v2419 = vpack.c.bf16 %v2403, %v2403
  %v2436 = vunpack.c.l.b16 %v229
  %v2437 = vunpack.c.l.b16 %v230
  %v2438 = vunpack.c.l.b16 %v231
  %v2439 = vunpack.c.l.b16 %v232
  %v2440 = vunpack.c.l.b16 %v233
  %v2441 = vunpack.c.l.b16 %v234
  %v2442 = vunpack.c.l.b16 %v235
  %v2443 = vunpack.c.l.b16 %v236
  %v2444 = vunpack.c.l.b16 %v237
  %v2445 = vunpack.c.l.b16 %v238
  %v2446 = vunpack.c.l.b16 %v239
  %v2447 = vunpack.c.l.b16 %v240
  %v2448 = vunpack.c.l.b16 %v241
  %v2449 = vunpack.c.l.b16 %v242
  %v2450 = vunpack.c.l.b16 %v243
  %v2451 = vunpack.c.l.b16 %v244
  %v2452 = vpack.c.b16 %v2437, %v2436
  %v2453 = vpack.c.b16 %v2439, %v2438
  %v2454 = vpack.c.b16 %v2441, %v2440
  %v2455 = vpack.c.b16 %v2443, %v2442
  %v2456 = vpack.c.b16 %v2445, %v2444
  %v2457 = vpack.c.b16 %v2447, %v2446
  %v2458 = vpack.c.b16 %v2449, %v2448
  %v2459 = vpack.c.b16 %v2451, %v2450
  %v2476 = vunpack.c.l.b16 %v374
  %v2477 = vunpack.c.l.b16 %v375
  %v2478 = vunpack.c.l.b16 %v376
  %v2479 = vunpack.c.l.b16 %v377
  %v2480 = vunpack.c.l.b16 %v378
  %v2481 = vunpack.c.l.b16 %v379
  %v2482 = vunpack.c.l.b16 %v380
  %v2483 = vunpack.c.l.b16 %v381
  %v2484 = vunpack.c.l.b16 %v382
  %v2485 = vunpack.c.l.b16 %v383
  %v2486 = vunpack.c.l.b16 %v384
  %v2487 = vunpack.c.l.b16 %v385
  %v2488 = vunpack.c.l.b16 %v386
  %v2489 = vunpack.c.l.b16 %v387
  %v2490 = vunpack.c.l.b16 %v388
  %v2491 = vunpack.c.l.b16 %v389
  %v2492 = vpack.c.b16 %v2477, %v2476
  %v2493 = vpack.c.b16 %v2479, %v2478
  %v2494 = vpack.c.b16 %v2481, %v2480
  %v2495 = vpack.c.b16 %v2483, %v2482
  %v2496 = vpack.c.b16 %v2485, %v2484
  %v2497 = vpack.c.b16 %v2487, %v2486
  %v2498 = vpack.c.b16 %v2489, %v2488
  %v2499 = vpack.c.b16 %v2491, %v2490
  %2500 = vrot.lane.b32.xlu0 %v2492, 8
  %v2501 = vpop.permute.xlu0 %2500
  %2502 = vrot.lane.b32.xlu0 %v2493, 8
  %v2503 = vpop.permute.xlu0 %2502
  %2504 = vrot.lane.b32.xlu0 %v2494, 8
  %v2505 = vpop.permute.xlu0 %2504
  %2506 = vrot.lane.b32.xlu0 %v2495, 8
  %v2507 = vpop.permute.xlu0 %2506
  %2508 = vrot.lane.b32.xlu0 %v2496, 8
  %v2509 = vpop.permute.xlu0 %2508
  %2510 = vrot.lane.b32.xlu0 %v2497, 8
  %v2511 = vpop.permute.xlu0 %2510
  %2512 = vrot.lane.b32.xlu0 %v2498, 8
  %v2513 = vpop.permute.xlu0 %2512
  %2514 = vrot.lane.b32.xlu0 %v2499, 8
  %v2515 = vpop.permute.xlu0 %2514
  %v2532 = vunpack.c.l.b16 %v519
  %v2533 = vunpack.c.l.b16 %v520
  %v2534 = vunpack.c.l.b16 %v521
  %v2535 = vunpack.c.l.b16 %v522
  %v2536 = vunpack.c.l.b16 %v523
  %v2537 = vunpack.c.l.b16 %v524
  %v2538 = vunpack.c.l.b16 %v525
  %v2539 = vunpack.c.l.b16 %v526
  %v2540 = vunpack.c.l.b16 %v527
  %v2541 = vunpack.c.l.b16 %v528
  %v2542 = vunpack.c.l.b16 %v529
  %v2543 = vunpack.c.l.b16 %v530
  %v2544 = vunpack.c.l.b16 %v531
  %v2545 = vunpack.c.l.b16 %v532
  %v2546 = vunpack.c.l.b16 %v533
  %v2547 = vunpack.c.l.b16 %v534
  %v2548 = vpack.c.b16 %v2533, %v2532
  %v2549 = vpack.c.b16 %v2535, %v2534
  %v2550 = vpack.c.b16 %v2537, %v2536
  %v2551 = vpack.c.b16 %v2539, %v2538
  %v2552 = vpack.c.b16 %v2541, %v2540
  %v2553 = vpack.c.b16 %v2543, %v2542
  %v2554 = vpack.c.b16 %v2545, %v2544
  %v2555 = vpack.c.b16 %v2547, %v2546
  %2556 = vrot.lane.b32.xlu0 %v2548, 16
  %v2557 = vpop.permute.xlu0 %2556
  %2558 = vrot.lane.b32.xlu0 %v2549, 16
  %v2559 = vpop.permute.xlu0 %2558
  %2560 = vrot.lane.b32.xlu0 %v2550, 16
  %v2561 = vpop.permute.xlu0 %2560
  %2562 = vrot.lane.b32.xlu0 %v2551, 16
  %v2563 = vpop.permute.xlu0 %2562
  %2564 = vrot.lane.b32.xlu0 %v2552, 16
  %v2565 = vpop.permute.xlu0 %2564
  %2566 = vrot.lane.b32.xlu0 %v2553, 16
  %v2567 = vpop.permute.xlu0 %2566
  %2568 = vrot.lane.b32.xlu0 %v2554, 16
  %v2569 = vpop.permute.xlu0 %2568
  %2570 = vrot.lane.b32.xlu0 %v2555, 16
  %v2571 = vpop.permute.xlu0 %2570
  %v2588 = vunpack.c.l.b16 %v664
  %v2589 = vunpack.c.l.b16 %v665
  %v2590 = vunpack.c.l.b16 %v666
  %v2591 = vunpack.c.l.b16 %v667
  %v2592 = vunpack.c.l.b16 %v668
  %v2593 = vunpack.c.l.b16 %v669
  %v2594 = vunpack.c.l.b16 %v670
  %v2595 = vunpack.c.l.b16 %v671
  %v2596 = vunpack.c.l.b16 %v672
  %v2597 = vunpack.c.l.b16 %v673
  %v2598 = vunpack.c.l.b16 %v674
  %v2599 = vunpack.c.l.b16 %v675
  %v2600 = vunpack.c.l.b16 %v676
  %v2601 = vunpack.c.l.b16 %v677
  %v2602 = vunpack.c.l.b16 %v678
  %v2603 = vunpack.c.l.b16 %v679
  %v2604 = vpack.c.b16 %v2589, %v2588
  %v2605 = vpack.c.b16 %v2591, %v2590
  %v2606 = vpack.c.b16 %v2593, %v2592
  %v2607 = vpack.c.b16 %v2595, %v2594
  %v2608 = vpack.c.b16 %v2597, %v2596
  %v2609 = vpack.c.b16 %v2599, %v2598
  %v2610 = vpack.c.b16 %v2601, %v2600
  %v2611 = vpack.c.b16 %v2603, %v2602
  %2612 = vrot.lane.b32.xlu0 %v2604, 24
  %v2613 = vpop.permute.xlu0 %2612
  %2614 = vrot.lane.b32.xlu0 %v2605, 24
  %v2615 = vpop.permute.xlu0 %2614
  %2616 = vrot.lane.b32.xlu0 %v2606, 24
  %v2617 = vpop.permute.xlu0 %2616
  %2618 = vrot.lane.b32.xlu0 %v2607, 24
  %v2619 = vpop.permute.xlu0 %2618
  %2620 = vrot.lane.b32.xlu0 %v2608, 24
  %v2621 = vpop.permute.xlu0 %2620
  %2622 = vrot.lane.b32.xlu0 %v2609, 24
  %v2623 = vpop.permute.xlu0 %2622
  %2624 = vrot.lane.b32.xlu0 %v2610, 24
  %v2625 = vpop.permute.xlu0 %2624
  %2626 = vrot.lane.b32.xlu0 %v2611, 24
  %v2627 = vpop.permute.xlu0 %2626
  %v2644 = vunpack.c.l.b16 %v809
  %v2645 = vunpack.c.l.b16 %v810
  %v2646 = vunpack.c.l.b16 %v811
  %v2647 = vunpack.c.l.b16 %v812
  %v2648 = vunpack.c.l.b16 %v813
  %v2649 = vunpack.c.l.b16 %v814
  %v2650 = vunpack.c.l.b16 %v815
  %v2651 = vunpack.c.l.b16 %v816
  %v2652 = vunpack.c.l.b16 %v817
  %v2653 = vunpack.c.l.b16 %v818
  %v2654 = vunpack.c.l.b16 %v819
  %v2655 = vunpack.c.l.b16 %v820
  %v2656 = vunpack.c.l.b16 %v821
  %v2657 = vunpack.c.l.b16 %v822
  %v2658 = vunpack.c.l.b16 %v823
  %v2659 = vunpack.c.l.b16 %v824
  %v2660 = vpack.c.b16 %v2645, %v2644
  %v2661 = vpack.c.b16 %v2647, %v2646
  %v2662 = vpack.c.b16 %v2649, %v2648
  %v2663 = vpack.c.b16 %v2651, %v2650
  %v2664 = vpack.c.b16 %v2653, %v2652
  %v2665 = vpack.c.b16 %v2655, %v2654
  %v2666 = vpack.c.b16 %v2657, %v2656
  %v2667 = vpack.c.b16 %v2659, %v2658
  %2668 = vrot.lane.b32.xlu0 %v2660, 32
  %v2669 = vpop.permute.xlu0 %2668
  %2670 = vrot.lane.b32.xlu0 %v2661, 32
  %v2671 = vpop.permute.xlu0 %2670
  %2672 = vrot.lane.b32.xlu0 %v2662, 32
  %v2673 = vpop.permute.xlu0 %2672
  %2674 = vrot.lane.b32.xlu0 %v2663, 32
  %v2675 = vpop.permute.xlu0 %2674
  %2676 = vrot.lane.b32.xlu0 %v2664, 32
  %v2677 = vpop.permute.xlu0 %2676
  %2678 = vrot.lane.b32.xlu0 %v2665, 32
  %v2679 = vpop.permute.xlu0 %2678
  %2680 = vrot.lane.b32.xlu0 %v2666, 32
  %v2681 = vpop.permute.xlu0 %2680
  %2682 = vrot.lane.b32.xlu0 %v2667, 32
  %v2683 = vpop.permute.xlu0 %2682
  %v2700 = vunpack.c.l.b16 %v954
  %v2701 = vunpack.c.l.b16 %v955
  %v2702 = vunpack.c.l.b16 %v956
  %v2703 = vunpack.c.l.b16 %v957
  %v2704 = vunpack.c.l.b16 %v958
  %v2705 = vunpack.c.l.b16 %v959
  %v2706 = vunpack.c.l.b16 %v960
  %v2707 = vunpack.c.l.b16 %v961
  %v2708 = vunpack.c.l.b16 %v962
  %v2709 = vunpack.c.l.b16 %v963
  %v2710 = vunpack.c.l.b16 %v964
  %v2711 = vunpack.c.l.b16 %v965
  %v2712 = vunpack.c.l.b16 %v966
  %v2713 = vunpack.c.l.b16 %v967
  %v2714 = vunpack.c.l.b16 %v968
  %v2715 = vunpack.c.l.b16 %v969
  %v2716 = vpack.c.b16 %v2701, %v2700
  %v2717 = vpack.c.b16 %v2703, %v2702
  %v2718 = vpack.c.b16 %v2705, %v2704
  %v2719 = vpack.c.b16 %v2707, %v2706
  %v2720 = vpack.c.b16 %v2709, %v2708
  %v2721 = vpack.c.b16 %v2711, %v2710
  %v2722 = vpack.c.b16 %v2713, %v2712
  %v2723 = vpack.c.b16 %v2715, %v2714
  %2724 = vrot.lane.b32.xlu0 %v2716, 40
  %v2725 = vpop.permute.xlu0 %2724
  %2726 = vrot.lane.b32.xlu0 %v2717, 40
  %v2727 = vpop.permute.xlu0 %2726
  %2728 = vrot.lane.b32.xlu0 %v2718, 40
  %v2729 = vpop.permute.xlu0 %2728
  %2730 = vrot.lane.b32.xlu0 %v2719, 40
  %v2731 = vpop.permute.xlu0 %2730
  %2732 = vrot.lane.b32.xlu0 %v2720, 40
  %v2733 = vpop.permute.xlu0 %2732
  %2734 = vrot.lane.b32.xlu0 %v2721, 40
  %v2735 = vpop.permute.xlu0 %2734
  %2736 = vrot.lane.b32.xlu0 %v2722, 40
  %v2737 = vpop.permute.xlu0 %2736
  %2738 = vrot.lane.b32.xlu0 %v2723, 40
  %v2739 = vpop.permute.xlu0 %2738
  %v2756 = vunpack.c.l.b16 %v1099
  %v2757 = vunpack.c.l.b16 %v1100
  %v2758 = vunpack.c.l.b16 %v1101
  %v2759 = vunpack.c.l.b16 %v1102
  %v2760 = vunpack.c.l.b16 %v1103
  %v2761 = vunpack.c.l.b16 %v1104
  %v2762 = vunpack.c.l.b16 %v1105
  %v2763 = vunpack.c.l.b16 %v1106
  %v2764 = vunpack.c.l.b16 %v1107
  %v2765 = vunpack.c.l.b16 %v1108
  %v2766 = vunpack.c.l.b16 %v1109
  %v2767 = vunpack.c.l.b16 %v1110
  %v2768 = vunpack.c.l.b16 %v1111
  %v2769 = vunpack.c.l.b16 %v1112
  %v2770 = vunpack.c.l.b16 %v1113
  %v2771 = vunpack.c.l.b16 %v1114
  %v2772 = vpack.c.b16 %v2757, %v2756
  %v2773 = vpack.c.b16 %v2759, %v2758
  %v2774 = vpack.c.b16 %v2761, %v2760
  %v2775 = vpack.c.b16 %v2763, %v2762
  %v2776 = vpack.c.b16 %v2765, %v2764
  %v2777 = vpack.c.b16 %v2767, %v2766
  %v2778 = vpack.c.b16 %v2769, %v2768
  %v2779 = vpack.c.b16 %v2771, %v2770
  %2780 = vrot.lane.b32.xlu0 %v2772, 48
  %v2781 = vpop.permute.xlu0 %2780
  %2782 = vrot.lane.b32.xlu0 %v2773, 48
  %v2783 = vpop.permute.xlu0 %2782
  %2784 = vrot.lane.b32.xlu0 %v2774, 48
  %v2785 = vpop.permute.xlu0 %2784
  %2786 = vrot.lane.b32.xlu0 %v2775, 48
  %v2787 = vpop.permute.xlu0 %2786
  %2788 = vrot.lane.b32.xlu0 %v2776, 48
  %v2789 = vpop.permute.xlu0 %2788
  %2790 = vrot.lane.b32.xlu0 %v2777, 48
  %v2791 = vpop.permute.xlu0 %2790
  %2792 = vrot.lane.b32.xlu0 %v2778, 48
  %v2793 = vpop.permute.xlu0 %2792
  %2794 = vrot.lane.b32.xlu0 %v2779, 48
  %v2795 = vpop.permute.xlu0 %2794
  %v2812 = vunpack.c.l.b16 %v1244
  %v2813 = vunpack.c.l.b16 %v1245
  %v2814 = vunpack.c.l.b16 %v1246
  %v2815 = vunpack.c.l.b16 %v1247
  %v2816 = vunpack.c.l.b16 %v1248
  %v2817 = vunpack.c.l.b16 %v1249
  %v2818 = vunpack.c.l.b16 %v1250
  %v2819 = vunpack.c.l.b16 %v1251
  %v2820 = vunpack.c.l.b16 %v1252
  %v2821 = vunpack.c.l.b16 %v1253
  %v2822 = vunpack.c.l.b16 %v1254
  %v2823 = vunpack.c.l.b16 %v1255
  %v2824 = vunpack.c.l.b16 %v1256
  %v2825 = vunpack.c.l.b16 %v1257
  %v2826 = vunpack.c.l.b16 %v1258
  %v2827 = vunpack.c.l.b16 %v1259
  %v2828 = vpack.c.b16 %v2813, %v2812
  %v2829 = vpack.c.b16 %v2815, %v2814
  %v2830 = vpack.c.b16 %v2817, %v2816
  %v2831 = vpack.c.b16 %v2819, %v2818
  %v2832 = vpack.c.b16 %v2821, %v2820
  %v2833 = vpack.c.b16 %v2823, %v2822
  %v2834 = vpack.c.b16 %v2825, %v2824
  %v2835 = vpack.c.b16 %v2827, %v2826
  %2836 = vrot.lane.b32.xlu0 %v2828, 56
  %v2837 = vpop.permute.xlu0 %2836
  %2838 = vrot.lane.b32.xlu0 %v2829, 56
  %v2839 = vpop.permute.xlu0 %2838
  %2840 = vrot.lane.b32.xlu0 %v2830, 56
  %v2841 = vpop.permute.xlu0 %2840
  %2842 = vrot.lane.b32.xlu0 %v2831, 56
  %v2843 = vpop.permute.xlu0 %2842
  %2844 = vrot.lane.b32.xlu0 %v2832, 56
  %v2845 = vpop.permute.xlu0 %2844
  %2846 = vrot.lane.b32.xlu0 %v2833, 56
  %v2847 = vpop.permute.xlu0 %2846
  %2848 = vrot.lane.b32.xlu0 %v2834, 56
  %v2849 = vpop.permute.xlu0 %2848
  %2850 = vrot.lane.b32.xlu0 %v2835, 56
  %v2851 = vpop.permute.xlu0 %2850
  %v2868 = vunpack.c.l.b16 %v1389
  %v2869 = vunpack.c.l.b16 %v1390
  %v2870 = vunpack.c.l.b16 %v1391
  %v2871 = vunpack.c.l.b16 %v1392
  %v2872 = vunpack.c.l.b16 %v1393
  %v2873 = vunpack.c.l.b16 %v1394
  %v2874 = vunpack.c.l.b16 %v1395
  %v2875 = vunpack.c.l.b16 %v1396
  %v2876 = vunpack.c.l.b16 %v1397
  %v2877 = vunpack.c.l.b16 %v1398
  %v2878 = vunpack.c.l.b16 %v1399
  %v2879 = vunpack.c.l.b16 %v1400
  %v2880 = vunpack.c.l.b16 %v1401
  %v2881 = vunpack.c.l.b16 %v1402
  %v2882 = vunpack.c.l.b16 %v1403
  %v2883 = vunpack.c.l.b16 %v1404
  %v2884 = vpack.c.b16 %v2869, %v2868
  %v2885 = vpack.c.b16 %v2871, %v2870
  %v2886 = vpack.c.b16 %v2873, %v2872
  %v2887 = vpack.c.b16 %v2875, %v2874
  %v2888 = vpack.c.b16 %v2877, %v2876
  %v2889 = vpack.c.b16 %v2879, %v2878
  %v2890 = vpack.c.b16 %v2881, %v2880
  %v2891 = vpack.c.b16 %v2883, %v2882
  %2892 = vrot.lane.b32.xlu0 %v2884, 64
  %v2893 = vpop.permute.xlu0 %2892
  %2894 = vrot.lane.b32.xlu0 %v2885, 64
  %v2895 = vpop.permute.xlu0 %2894
  %2896 = vrot.lane.b32.xlu0 %v2886, 64
  %v2897 = vpop.permute.xlu0 %2896
  %2898 = vrot.lane.b32.xlu0 %v2887, 64
  %v2899 = vpop.permute.xlu0 %2898
  %2900 = vrot.lane.b32.xlu0 %v2888, 64
  %v2901 = vpop.permute.xlu0 %2900
  %2902 = vrot.lane.b32.xlu0 %v2889, 64
  %v2903 = vpop.permute.xlu0 %2902
  %2904 = vrot.lane.b32.xlu0 %v2890, 64
  %v2905 = vpop.permute.xlu0 %2904
  %2906 = vrot.lane.b32.xlu0 %v2891, 64
  %v2907 = vpop.permute.xlu0 %2906
  %v2924 = vunpack.c.l.b16 %v1534
  %v2925 = vunpack.c.l.b16 %v1535
  %v2926 = vunpack.c.l.b16 %v1536
  %v2927 = vunpack.c.l.b16 %v1537
  %v2928 = vunpack.c.l.b16 %v1538
  %v2929 = vunpack.c.l.b16 %v1539
  %v2930 = vunpack.c.l.b16 %v1540
  %v2931 = vunpack.c.l.b16 %v1541
  %v2932 = vunpack.c.l.b16 %v1542
  %v2933 = vunpack.c.l.b16 %v1543
  %v2934 = vunpack.c.l.b16 %v1544
  %v2935 = vunpack.c.l.b16 %v1545
  %v2936 = vunpack.c.l.b16 %v1546
  %v2937 = vunpack.c.l.b16 %v1547
  %v2938 = vunpack.c.l.b16 %v1548
  %v2939 = vunpack.c.l.b16 %v1549
  %v2940 = vpack.c.b16 %v2925, %v2924
  %v2941 = vpack.c.b16 %v2927, %v2926
  %v2942 = vpack.c.b16 %v2929, %v2928
  %v2943 = vpack.c.b16 %v2931, %v2930
  %v2944 = vpack.c.b16 %v2933, %v2932
  %v2945 = vpack.c.b16 %v2935, %v2934
  %v2946 = vpack.c.b16 %v2937, %v2936
  %v2947 = vpack.c.b16 %v2939, %v2938
  %2948 = vrot.lane.b32.xlu0 %v2940, 72
  %v2949 = vpop.permute.xlu0 %2948
  %2950 = vrot.lane.b32.xlu0 %v2941, 72
  %v2951 = vpop.permute.xlu0 %2950
  %2952 = vrot.lane.b32.xlu0 %v2942, 72
  %v2953 = vpop.permute.xlu0 %2952
  %2954 = vrot.lane.b32.xlu0 %v2943, 72
  %v2955 = vpop.permute.xlu0 %2954
  %2956 = vrot.lane.b32.xlu0 %v2944, 72
  %v2957 = vpop.permute.xlu0 %2956
  %2958 = vrot.lane.b32.xlu0 %v2945, 72
  %v2959 = vpop.permute.xlu0 %2958
  %2960 = vrot.lane.b32.xlu0 %v2946, 72
  %v2961 = vpop.permute.xlu0 %2960
  %2962 = vrot.lane.b32.xlu0 %v2947, 72
  %v2963 = vpop.permute.xlu0 %2962
  %v2980 = vunpack.c.l.b16 %v1679
  %v2981 = vunpack.c.l.b16 %v1680
  %v2982 = vunpack.c.l.b16 %v1681
  %v2983 = vunpack.c.l.b16 %v1682
  %v2984 = vunpack.c.l.b16 %v1683
  %v2985 = vunpack.c.l.b16 %v1684
  %v2986 = vunpack.c.l.b16 %v1685
  %v2987 = vunpack.c.l.b16 %v1686
  %v2988 = vunpack.c.l.b16 %v1687
  %v2989 = vunpack.c.l.b16 %v1688
  %v2990 = vunpack.c.l.b16 %v1689
  %v2991 = vunpack.c.l.b16 %v1690
  %v2992 = vunpack.c.l.b16 %v1691
  %v2993 = vunpack.c.l.b16 %v1692
  %v2994 = vunpack.c.l.b16 %v1693
  %v2995 = vunpack.c.l.b16 %v1694
  %v2996 = vpack.c.b16 %v2981, %v2980
  %v2997 = vpack.c.b16 %v2983, %v2982
  %v2998 = vpack.c.b16 %v2985, %v2984
  %v2999 = vpack.c.b16 %v2987, %v2986
  %v3000 = vpack.c.b16 %v2989, %v2988
  %v3001 = vpack.c.b16 %v2991, %v2990
  %v3002 = vpack.c.b16 %v2993, %v2992
  %v3003 = vpack.c.b16 %v2995, %v2994
  %3004 = vrot.lane.b32.xlu0 %v2996, 80
  %v3005 = vpop.permute.xlu0 %3004
  %3006 = vrot.lane.b32.xlu0 %v2997, 80
  %v3007 = vpop.permute.xlu0 %3006
  %3008 = vrot.lane.b32.xlu0 %v2998, 80
  %v3009 = vpop.permute.xlu0 %3008
  %3010 = vrot.lane.b32.xlu0 %v2999, 80
  %v3011 = vpop.permute.xlu0 %3010
  %3012 = vrot.lane.b32.xlu0 %v3000, 80
  %v3013 = vpop.permute.xlu0 %3012
  %3014 = vrot.lane.b32.xlu0 %v3001, 80
  %v3015 = vpop.permute.xlu0 %3014
  %3016 = vrot.lane.b32.xlu0 %v3002, 80
  %v3017 = vpop.permute.xlu0 %3016
  %3018 = vrot.lane.b32.xlu0 %v3003, 80
  %v3019 = vpop.permute.xlu0 %3018
  %v3036 = vunpack.c.l.b16 %v1824
  %v3037 = vunpack.c.l.b16 %v1825
  %v3038 = vunpack.c.l.b16 %v1826
  %v3039 = vunpack.c.l.b16 %v1827
  %v3040 = vunpack.c.l.b16 %v1828
  %v3041 = vunpack.c.l.b16 %v1829
  %v3042 = vunpack.c.l.b16 %v1830
  %v3043 = vunpack.c.l.b16 %v1831
  %v3044 = vunpack.c.l.b16 %v1832
  %v3045 = vunpack.c.l.b16 %v1833
  %v3046 = vunpack.c.l.b16 %v1834
  %v3047 = vunpack.c.l.b16 %v1835
  %v3048 = vunpack.c.l.b16 %v1836
  %v3049 = vunpack.c.l.b16 %v1837
  %v3050 = vunpack.c.l.b16 %v1838
  %v3051 = vunpack.c.l.b16 %v1839
  %v3052 = vpack.c.b16 %v3037, %v3036
  %v3053 = vpack.c.b16 %v3039, %v3038
  %v3054 = vpack.c.b16 %v3041, %v3040
  %v3055 = vpack.c.b16 %v3043, %v3042
  %v3056 = vpack.c.b16 %v3045, %v3044
  %v3057 = vpack.c.b16 %v3047, %v3046
  %v3058 = vpack.c.b16 %v3049, %v3048
  %v3059 = vpack.c.b16 %v3051, %v3050
  %3060 = vrot.lane.b32.xlu0 %v3052, 88
  %v3061 = vpop.permute.xlu0 %3060
  %3062 = vrot.lane.b32.xlu0 %v3053, 88
  %v3063 = vpop.permute.xlu0 %3062
  %3064 = vrot.lane.b32.xlu0 %v3054, 88
  %v3065 = vpop.permute.xlu0 %3064
  %3066 = vrot.lane.b32.xlu0 %v3055, 88
  %v3067 = vpop.permute.xlu0 %3066
  %3068 = vrot.lane.b32.xlu0 %v3056, 88
  %v3069 = vpop.permute.xlu0 %3068
  %3070 = vrot.lane.b32.xlu0 %v3057, 88
  %v3071 = vpop.permute.xlu0 %3070
  %3072 = vrot.lane.b32.xlu0 %v3058, 88
  %v3073 = vpop.permute.xlu0 %3072
  %3074 = vrot.lane.b32.xlu0 %v3059, 88
  %v3075 = vpop.permute.xlu0 %3074
  %v3092 = vunpack.c.l.b16 %v1969
  %v3093 = vunpack.c.l.b16 %v1970
  %v3094 = vunpack.c.l.b16 %v1971
  %v3095 = vunpack.c.l.b16 %v1972
  %v3096 = vunpack.c.l.b16 %v1973
  %v3097 = vunpack.c.l.b16 %v1974
  %v3098 = vunpack.c.l.b16 %v1975
  %v3099 = vunpack.c.l.b16 %v1976
  %v3100 = vunpack.c.l.b16 %v1977
  %v3101 = vunpack.c.l.b16 %v1978
  %v3102 = vunpack.c.l.b16 %v1979
  %v3103 = vunpack.c.l.b16 %v1980
  %v3104 = vunpack.c.l.b16 %v1981
  %v3105 = vunpack.c.l.b16 %v1982
  %v3106 = vunpack.c.l.b16 %v1983
  %v3107 = vunpack.c.l.b16 %v1984
  %v3108 = vpack.c.b16 %v3093, %v3092
  %v3109 = vpack.c.b16 %v3095, %v3094
  %v3110 = vpack.c.b16 %v3097, %v3096
  %v3111 = vpack.c.b16 %v3099, %v3098
  %v3112 = vpack.c.b16 %v3101, %v3100
  %v3113 = vpack.c.b16 %v3103, %v3102
  %v3114 = vpack.c.b16 %v3105, %v3104
  %v3115 = vpack.c.b16 %v3107, %v3106
  %3116 = vrot.lane.b32.xlu0 %v3108, 96
  %v3117 = vpop.permute.xlu0 %3116
  %3118 = vrot.lane.b32.xlu0 %v3109, 96
  %v3119 = vpop.permute.xlu0 %3118
  %3120 = vrot.lane.b32.xlu0 %v3110, 96
  %v3121 = vpop.permute.xlu0 %3120
  %3122 = vrot.lane.b32.xlu0 %v3111, 96
  %v3123 = vpop.permute.xlu0 %3122
  %3124 = vrot.lane.b32.xlu0 %v3112, 96
  %v3125 = vpop.permute.xlu0 %3124
  %3126 = vrot.lane.b32.xlu0 %v3113, 96
  %v3127 = vpop.permute.xlu0 %3126
  %3128 = vrot.lane.b32.xlu0 %v3114, 96
  %v3129 = vpop.permute.xlu0 %3128
  %3130 = vrot.lane.b32.xlu0 %v3115, 96
  %v3131 = vpop.permute.xlu0 %3130
  %v3148 = vunpack.c.l.b16 %v2114
  %v3149 = vunpack.c.l.b16 %v2115
  %v3150 = vunpack.c.l.b16 %v2116
  %v3151 = vunpack.c.l.b16 %v2117
  %v3152 = vunpack.c.l.b16 %v2118
  %v3153 = vunpack.c.l.b16 %v2119
  %v3154 = vunpack.c.l.b16 %v2120
  %v3155 = vunpack.c.l.b16 %v2121
  %v3156 = vunpack.c.l.b16 %v2122
  %v3157 = vunpack.c.l.b16 %v2123
  %v3158 = vunpack.c.l.b16 %v2124
  %v3159 = vunpack.c.l.b16 %v2125
  %v3160 = vunpack.c.l.b16 %v2126
  %v3161 = vunpack.c.l.b16 %v2127
  %v3162 = vunpack.c.l.b16 %v2128
  %v3163 = vunpack.c.l.b16 %v2129
  %v3164 = vpack.c.b16 %v3149, %v3148
  %v3165 = vpack.c.b16 %v3151, %v3150
  %v3166 = vpack.c.b16 %v3153, %v3152
  %v3167 = vpack.c.b16 %v3155, %v3154
  %v3168 = vpack.c.b16 %v3157, %v3156
  %v3169 = vpack.c.b16 %v3159, %v3158
  %v3170 = vpack.c.b16 %v3161, %v3160
  %v3171 = vpack.c.b16 %v3163, %v3162
  %3172 = vrot.lane.b32.xlu0 %v3164, 104
  %v3173 = vpop.permute.xlu0 %3172
  %3174 = vrot.lane.b32.xlu0 %v3165, 104
  %v3175 = vpop.permute.xlu0 %3174
  %3176 = vrot.lane.b32.xlu0 %v3166, 104
  %v3177 = vpop.permute.xlu0 %3176
  %3178 = vrot.lane.b32.xlu0 %v3167, 104
  %v3179 = vpop.permute.xlu0 %3178
  %3180 = vrot.lane.b32.xlu0 %v3168, 104
  %v3181 = vpop.permute.xlu0 %3180
  %3182 = vrot.lane.b32.xlu0 %v3169, 104
  %v3183 = vpop.permute.xlu0 %3182
  %3184 = vrot.lane.b32.xlu0 %v3170, 104
  %v3185 = vpop.permute.xlu0 %3184
  %3186 = vrot.lane.b32.xlu0 %v3171, 104
  %v3187 = vpop.permute.xlu0 %3186
  %v3204 = vunpack.c.l.b16 %v2259
  %v3205 = vunpack.c.l.b16 %v2260
  %v3206 = vunpack.c.l.b16 %v2261
  %v3207 = vunpack.c.l.b16 %v2262
  %v3208 = vunpack.c.l.b16 %v2263
  %v3209 = vunpack.c.l.b16 %v2264
  %v3210 = vunpack.c.l.b16 %v2265
  %v3211 = vunpack.c.l.b16 %v2266
  %v3212 = vunpack.c.l.b16 %v2267
  %v3213 = vunpack.c.l.b16 %v2268
  %v3214 = vunpack.c.l.b16 %v2269
  %v3215 = vunpack.c.l.b16 %v2270
  %v3216 = vunpack.c.l.b16 %v2271
  %v3217 = vunpack.c.l.b16 %v2272
  %v3218 = vunpack.c.l.b16 %v2273
  %v3219 = vunpack.c.l.b16 %v2274
  %v3220 = vpack.c.b16 %v3205, %v3204
  %v3221 = vpack.c.b16 %v3207, %v3206
  %v3222 = vpack.c.b16 %v3209, %v3208
  %v3223 = vpack.c.b16 %v3211, %v3210
  %v3224 = vpack.c.b16 %v3213, %v3212
  %v3225 = vpack.c.b16 %v3215, %v3214
  %v3226 = vpack.c.b16 %v3217, %v3216
  %v3227 = vpack.c.b16 %v3219, %v3218
  %3228 = vrot.lane.b32.xlu0 %v3220, 112
  %v3229 = vpop.permute.xlu0 %3228
  %3230 = vrot.lane.b32.xlu0 %v3221, 112
  %v3231 = vpop.permute.xlu0 %3230
  %3232 = vrot.lane.b32.xlu0 %v3222, 112
  %v3233 = vpop.permute.xlu0 %3232
  %3234 = vrot.lane.b32.xlu0 %v3223, 112
  %v3235 = vpop.permute.xlu0 %3234
  %3236 = vrot.lane.b32.xlu0 %v3224, 112
  %v3237 = vpop.permute.xlu0 %3236
  %3238 = vrot.lane.b32.xlu0 %v3225, 112
  %v3239 = vpop.permute.xlu0 %3238
  %3240 = vrot.lane.b32.xlu0 %v3226, 112
  %v3241 = vpop.permute.xlu0 %3240
  %3242 = vrot.lane.b32.xlu0 %v3227, 112
  %v3243 = vpop.permute.xlu0 %3242
  %v3260 = vunpack.c.l.b16 %v2404
  %v3261 = vunpack.c.l.b16 %v2405
  %v3262 = vunpack.c.l.b16 %v2406
  %v3263 = vunpack.c.l.b16 %v2407
  %v3264 = vunpack.c.l.b16 %v2408
  %v3265 = vunpack.c.l.b16 %v2409
  %v3266 = vunpack.c.l.b16 %v2410
  %v3267 = vunpack.c.l.b16 %v2411
  %v3268 = vunpack.c.l.b16 %v2412
  %v3269 = vunpack.c.l.b16 %v2413
  %v3270 = vunpack.c.l.b16 %v2414
  %v3271 = vunpack.c.l.b16 %v2415
  %v3272 = vunpack.c.l.b16 %v2416
  %v3273 = vunpack.c.l.b16 %v2417
  %v3274 = vunpack.c.l.b16 %v2418
  %v3275 = vunpack.c.l.b16 %v2419
  %v3276 = vpack.c.b16 %v3261, %v3260
  %v3277 = vpack.c.b16 %v3263, %v3262
  %v3278 = vpack.c.b16 %v3265, %v3264
  %v3279 = vpack.c.b16 %v3267, %v3266
  %v3280 = vpack.c.b16 %v3269, %v3268
  %v3281 = vpack.c.b16 %v3271, %v3270
  %v3282 = vpack.c.b16 %v3273, %v3272
  %v3283 = vpack.c.b16 %v3275, %v3274
  %3284 = vrot.lane.b32.xlu0 %v3276, 120
  %v3285 = vpop.permute.xlu0 %3284
  %3286 = vrot.lane.b32.xlu0 %v3277, 120
  %v3287 = vpop.permute.xlu0 %3286
  %3288 = vrot.lane.b32.xlu0 %v3278, 120
  %v3289 = vpop.permute.xlu0 %3288
  %3290 = vrot.lane.b32.xlu0 %v3279, 120
  %v3291 = vpop.permute.xlu0 %3290
  %3292 = vrot.lane.b32.xlu0 %v3280, 120
  %v3293 = vpop.permute.xlu0 %3292
  %3294 = vrot.lane.b32.xlu0 %v3281, 120
  %v3295 = vpop.permute.xlu0 %3294
  %3296 = vrot.lane.b32.xlu0 %v3282, 120
  %v3297 = vpop.permute.xlu0 %3296
  %3298 = vrot.lane.b32.xlu0 %v3283, 120
  %v3299 = vpop.permute.xlu0 %3298
  %vm3300 = vcmask 64512
  %v3303 = vsel %vm3300, %v2452, %v2501
  %v3306 = vsel %vm3300, %v2453, %v2503
  %v3309 = vsel %vm3300, %v2454, %v2505
  %v3312 = vsel %vm3300, %v2455, %v2507
  %v3315 = vsel %vm3300, %v2456, %v2509
  %v3318 = vsel %vm3300, %v2457, %v2511
  %v3321 = vsel %vm3300, %v2458, %v2513
  %v3324 = vsel %vm3300, %v2459, %v2515
  %vm3325 = vcmask 130048
  %v3327 = vsel %vm3325, %v3303, %v2557
  %v3329 = vsel %vm3325, %v3306, %v2559
  %v3331 = vsel %vm3325, %v3309, %v2561
  %v3333 = vsel %vm3325, %v3312, %v2563
  %v3335 = vsel %vm3325, %v3315, %v2565
  %v3337 = vsel %vm3325, %v3318, %v2567
  %v3339 = vsel %vm3325, %v3321, %v2569
  %v3341 = vsel %vm3325, %v3324, %v2571
  %vm3342 = vcmask 195584
  %v3344 = vsel %vm3342, %v3327, %v2613
  %v3346 = vsel %vm3342, %v3329, %v2615
  %v3348 = vsel %vm3342, %v3331, %v2617
  %v3350 = vsel %vm3342, %v3333, %v2619
  %v3352 = vsel %vm3342, %v3335, %v2621
  %v3354 = vsel %vm3342, %v3337, %v2623
  %v3356 = vsel %vm3342, %v3339, %v2625
  %v3358 = vsel %vm3342, %v3341, %v2627
  %vm3359 = vcmask 261120
  %v3361 = vsel %vm3359, %v3344, %v2669
  %v3363 = vsel %vm3359, %v3346, %v2671
  %v3365 = vsel %vm3359, %v3348, %v2673
  %v3367 = vsel %vm3359, %v3350, %v2675
  %v3369 = vsel %vm3359, %v3352, %v2677
  %v3371 = vsel %vm3359, %v3354, %v2679
  %v3373 = vsel %vm3359, %v3356, %v2681
  %v3375 = vsel %vm3359, %v3358, %v2683
  %vm3376 = vcmask 326656
  %v3378 = vsel %vm3376, %v3361, %v2725
  %v3380 = vsel %vm3376, %v3363, %v2727
  %v3382 = vsel %vm3376, %v3365, %v2729
  %v3384 = vsel %vm3376, %v3367, %v2731
  %v3386 = vsel %vm3376, %v3369, %v2733
  %v3388 = vsel %vm3376, %v3371, %v2735
  %v3390 = vsel %vm3376, %v3373, %v2737
  %v3392 = vsel %vm3376, %v3375, %v2739
  %vm3393 = vcmask 392192
  %v3395 = vsel %vm3393, %v3378, %v2781
  %v3397 = vsel %vm3393, %v3380, %v2783
  %v3399 = vsel %vm3393, %v3382, %v2785
  %v3401 = vsel %vm3393, %v3384, %v2787
  %v3403 = vsel %vm3393, %v3386, %v2789
  %v3405 = vsel %vm3393, %v3388, %v2791
  %v3407 = vsel %vm3393, %v3390, %v2793
  %v3409 = vsel %vm3393, %v3392, %v2795
  %vm3410 = vcmask 457728
  %v3412 = vsel %vm3410, %v3395, %v2837
  %v3414 = vsel %vm3410, %v3397, %v2839
  %v3416 = vsel %vm3410, %v3399, %v2841
  %v3418 = vsel %vm3410, %v3401, %v2843
  %v3420 = vsel %vm3410, %v3403, %v2845
  %v3422 = vsel %vm3410, %v3405, %v2847
  %v3424 = vsel %vm3410, %v3407, %v2849
  %v3426 = vsel %vm3410, %v3409, %v2851
  %vm3427 = vcmask 523264
  %v3429 = vsel %vm3427, %v3412, %v2893
  %v3431 = vsel %vm3427, %v3414, %v2895
  %v3433 = vsel %vm3427, %v3416, %v2897
  %v3435 = vsel %vm3427, %v3418, %v2899
  %v3437 = vsel %vm3427, %v3420, %v2901
  %v3439 = vsel %vm3427, %v3422, %v2903
  %v3441 = vsel %vm3427, %v3424, %v2905
  %v3443 = vsel %vm3427, %v3426, %v2907
  %vm3444 = vcmask 588800
  %v3446 = vsel %vm3444, %v3429, %v2949
  %v3448 = vsel %vm3444, %v3431, %v2951
  %v3450 = vsel %vm3444, %v3433, %v2953
  %v3452 = vsel %vm3444, %v3435, %v2955
  %v3454 = vsel %vm3444, %v3437, %v2957
  %v3456 = vsel %vm3444, %v3439, %v2959
  %v3458 = vsel %vm3444, %v3441, %v2961
  %v3460 = vsel %vm3444, %v3443, %v2963
  %vm3461 = vcmask 654336
  %v3463 = vsel %vm3461, %v3446, %v3005
  %v3465 = vsel %vm3461, %v3448, %v3007
  %v3467 = vsel %vm3461, %v3450, %v3009
  %v3469 = vsel %vm3461, %v3452, %v3011
  %v3471 = vsel %vm3461, %v3454, %v3013
  %v3473 = vsel %vm3461, %v3456, %v3015
  %v3475 = vsel %vm3461, %v3458, %v3017
  %v3477 = vsel %vm3461, %v3460, %v3019
  %vm3478 = vcmask 719872
  %v3480 = vsel %vm3478, %v3463, %v3061
  %v3482 = vsel %vm3478, %v3465, %v3063
  %v3484 = vsel %vm3478, %v3467, %v3065
  %v3486 = vsel %vm3478, %v3469, %v3067
  %v3488 = vsel %vm3478, %v3471, %v3069
  %v3490 = vsel %vm3478, %v3473, %v3071
  %v3492 = vsel %vm3478, %v3475, %v3073
  %v3494 = vsel %vm3478, %v3477, %v3075
  %vm3495 = vcmask 785408
  %v3497 = vsel %vm3495, %v3480, %v3117
  %v3499 = vsel %vm3495, %v3482, %v3119
  %v3501 = vsel %vm3495, %v3484, %v3121
  %v3503 = vsel %vm3495, %v3486, %v3123
  %v3505 = vsel %vm3495, %v3488, %v3125
  %v3507 = vsel %vm3495, %v3490, %v3127
  %v3509 = vsel %vm3495, %v3492, %v3129
  %v3511 = vsel %vm3495, %v3494, %v3131
  %vm3512 = vcmask 850944
  %v3514 = vsel %vm3512, %v3497, %v3173
  %v3516 = vsel %vm3512, %v3499, %v3175
  %v3518 = vsel %vm3512, %v3501, %v3177
  %v3520 = vsel %vm3512, %v3503, %v3179
  %v3522 = vsel %vm3512, %v3505, %v3181
  %v3524 = vsel %vm3512, %v3507, %v3183
  %v3526 = vsel %vm3512, %v3509, %v3185
  %v3528 = vsel %vm3512, %v3511, %v3187
  %vm3529 = vcmask 916480
  %v3531 = vsel %vm3529, %v3514, %v3229
  %v3533 = vsel %vm3529, %v3516, %v3231
  %v3535 = vsel %vm3529, %v3518, %v3233
  %v3537 = vsel %vm3529, %v3520, %v3235
  %v3539 = vsel %vm3529, %v3522, %v3237
  %v3541 = vsel %vm3529, %v3524, %v3239
  %v3543 = vsel %vm3529, %v3526, %v3241
  %v3545 = vsel %vm3529, %v3528, %v3243
  %vm3546 = vcmask 982016
  %v3548 = vsel %vm3546, %v3531, %v3285
  %v3551 = vsel %vm3546, %v3533, %v3287
  %v3554 = vsel %vm3546, %v3535, %v3289
  %v3557 = vsel %vm3546, %v3537, %v3291
  %v3560 = vsel %vm3546, %v3539, %v3293
  %v3563 = vsel %vm3546, %v3541, %v3295
  %v3566 = vsel %vm3546, %v3543, %v3297
  %v3569 = vsel %vm3546, %v3545, %v3299
  %v3571 = vld [vmem:[%s2] sm:$0xf]
  %v3572 = vld [vmem:[%s2 + $0x4] sm:$0xf]
  %v3573 = vld [vmem:[%s2 + $0x8] sm:$0xf]
  %v3574 = vld [vmem:[%s2 + $0xc] sm:$0xf]
  %v3575 = vld [vmem:[%s2 + $0x10] sm:$0xf]
  %v3576 = vld [vmem:[%s2 + $0x14] sm:$0xf]
  %v3577 = vld [vmem:[%s2 + $0x18] sm:$0xf]
  %v3578 = vld [vmem:[%s2 + $0x1c] sm:$0xf]
  %v3579 = vld [vmem:[%s2 + $0x20] sm:$0xf]
  %v3580 = vld [vmem:[%s2 + $0x24] sm:$0xf]
  %v3581 = vld [vmem:[%s2 + $0x28] sm:$0xf]
  %v3582 = vld [vmem:[%s2 + $0x2c] sm:$0xf]
  %v3583 = vld [vmem:[%s2 + $0x30] sm:$0xf]
  %v3584 = vld [vmem:[%s2 + $0x34] sm:$0xf]
  %v3585 = vld [vmem:[%s2 + $0x38] sm:$0xf]
  %v3586 = vld [vmem:[%s2 + $0x3c] sm:$0xf]
  %v3603 = vunpack.c.l.b16 %v3571
  %v3604 = vunpack.c.l.b16 %v3572
  %v3605 = vunpack.c.l.b16 %v3573
  %v3606 = vunpack.c.l.b16 %v3574
  %v3607 = vunpack.c.l.b16 %v3575
  %v3608 = vunpack.c.l.b16 %v3576
  %v3609 = vunpack.c.l.b16 %v3577
  %v3610 = vunpack.c.l.b16 %v3578
  %v3611 = vunpack.c.l.b16 %v3579
  %v3612 = vunpack.c.l.b16 %v3580
  %v3613 = vunpack.c.l.b16 %v3581
  %v3614 = vunpack.c.l.b16 %v3582
  %v3615 = vunpack.c.l.b16 %v3583
  %v3616 = vunpack.c.l.b16 %v3584
  %v3617 = vunpack.c.l.b16 %v3585
  %v3618 = vunpack.c.l.b16 %v3586
  %v3619 = vpack.c.b16 %v3604, %v3603
  %v3620 = vpack.c.b16 %v3606, %v3605
  %v3621 = vpack.c.b16 %v3608, %v3607
  %v3622 = vpack.c.b16 %v3610, %v3609
  %v3623 = vpack.c.b16 %v3612, %v3611
  %v3624 = vpack.c.b16 %v3614, %v3613
  %v3625 = vpack.c.b16 %v3616, %v3615
  %v3626 = vpack.c.b16 %v3618, %v3617
  %3635 = vmatpush.bf16.msra.mxu0 %v3626
  %3636 = vmatpush.bf16.msra.mxu0 %v3625
  %3637 = vmatpush.bf16.msra.mxu0 %v3624
  %3638 = vmatpush.bf16.msra.mxu0 %v3623
  %3639 = vmatpush.bf16.msra.mxu0 %v3622
  %3640 = vmatpush.bf16.msra.mxu0 %v3621
  %3641 = vmatpush.bf16.msra.mxu0 %v3620
  %3642 = vmatpush.bf16.msra.mxu0 %v3619
  %3643 = vmatmul.bf16.gmra.mxu0 %v3548
  %v3644 = vpop.f32.mrf.mxu0
  %v3645 = vadd.f32 0.0, %v3644
  %v3646 = vpop.f32.mrf.mxu0
  %v3647 = vadd.f32 0.0, %v3646
  %3648 = vmatmul.bf16.gmra.mxu0 %v3551
  %v3649 = vpop.f32.mrf.mxu0
  %v3650 = vadd.f32 0.0, %v3649
  %v3651 = vpop.f32.mrf.mxu0
  %v3652 = vadd.f32 0.0, %v3651
  %3653 = vmatmul.bf16.gmra.mxu0 %v3554
  %v3654 = vpop.f32.mrf.mxu0
  %v3655 = vadd.f32 0.0, %v3654
  %v3656 = vpop.f32.mrf.mxu0
  %v3657 = vadd.f32 0.0, %v3656
  %3658 = vmatmul.bf16.gmra.mxu0 %v3557
  %v3659 = vpop.f32.mrf.mxu0
  %v3660 = vadd.f32 0.0, %v3659
  %v3661 = vpop.f32.mrf.mxu0
  %v3662 = vadd.f32 0.0, %v3661
  %3663 = vmatmul.bf16.gmra.mxu0 %v3560
  %v3664 = vpop.f32.mrf.mxu0
  %v3665 = vadd.f32 0.0, %v3664
  %v3666 = vpop.f32.mrf.mxu0
  %v3667 = vadd.f32 0.0, %v3666
  %3668 = vmatmul.bf16.gmra.mxu0 %v3563
  %v3669 = vpop.f32.mrf.mxu0
  %v3670 = vadd.f32 0.0, %v3669
  %v3671 = vpop.f32.mrf.mxu0
  %v3672 = vadd.f32 0.0, %v3671
  %3673 = vmatmul.bf16.gmra.mxu0 %v3566
  %v3674 = vpop.f32.mrf.mxu0
  %v3675 = vadd.f32 0.0, %v3674
  %v3676 = vpop.f32.mrf.mxu0
  %v3677 = vadd.f32 0.0, %v3676
  %3678 = vmatmul.bf16.gmra.mxu0 %v3569
  %v3679 = vpop.f32.mrf.mxu0
  %v3680 = vadd.f32 0.0, %v3679
  %v3681 = vpop.f32.mrf.mxu0
  %v3682 = vadd.f32 0.0, %v3681
  %3683 = vdwg.mxu0
  %v3684 = vsel %vm3325, %v3645, 0.0
  %v3685 = vsel %vm3325, %v3647, 0.0
  %v3686 = vadd.f32 %v3684, %v3685
  %v3687 = vsel %vm3325, %v3650, 0.0
  %v3688 = vadd.f32 %v3686, %v3687
  %v3689 = vsel %vm3325, %v3652, 0.0
  %v3690 = vadd.f32 %v3688, %v3689
  %v3691 = vsel %vm3325, %v3655, 0.0
  %v3692 = vadd.f32 %v3690, %v3691
  %v3693 = vsel %vm3325, %v3657, 0.0
  %v3694 = vadd.f32 %v3692, %v3693
  %v3695 = vsel %vm3325, %v3660, 0.0
  %v3696 = vadd.f32 %v3694, %v3695
  %v3697 = vsel %vm3325, %v3662, 0.0
  %v3698 = vadd.f32 %v3696, %v3697
  %v3699 = vsel %vm3325, %v3665, 0.0
  %v3700 = vadd.f32 %v3698, %v3699
  %v3701 = vsel %vm3325, %v3667, 0.0
  %v3702 = vadd.f32 %v3700, %v3701
  %v3703 = vsel %vm3325, %v3670, 0.0
  %v3704 = vadd.f32 %v3702, %v3703
  %v3705 = vsel %vm3325, %v3672, 0.0
  %v3706 = vadd.f32 %v3704, %v3705
  %v3707 = vsel %vm3325, %v3675, 0.0
  %v3708 = vadd.f32 %v3706, %v3707
  %v3709 = vsel %vm3325, %v3677, 0.0
  %v3710 = vadd.f32 %v3708, %v3709
  %v3711 = vsel %vm3325, %v3680, 0.0
  %v3712 = vadd.f32 %v3710, %v3711
  %v3713 = vsel %vm3325, %v3682, 0.0
  %v3714 = vadd.f32 %v3712, %v3713
  %v3715 = vrot.slane %v3714, 4
  %v3716 = vadd.f32 %v3714, %v3715
  %v3717 = vrot.slane %v3716, 2
  %v3718 = vadd.f32 %v3716, %v3717
  %v3719 = vrot.slane %v3718, 1
  %v3720 = vadd.f32 %v3718, %v3719
  %v3721 = vmul.f32 %v3720, 0.0078125
  %v3722 = vmul.f32 %v3645, %v3645
  %v3723 = vmul.f32 %v3647, %v3647
  %v3724 = vmul.f32 %v3650, %v3650
  %v3725 = vmul.f32 %v3652, %v3652
  %v3726 = vmul.f32 %v3655, %v3655
  %v3727 = vmul.f32 %v3657, %v3657
  %v3728 = vmul.f32 %v3660, %v3660
  %v3729 = vmul.f32 %v3662, %v3662
  %v3730 = vmul.f32 %v3665, %v3665
  %v3731 = vmul.f32 %v3667, %v3667
  %v3732 = vmul.f32 %v3670, %v3670
  %v3733 = vmul.f32 %v3672, %v3672
  %v3734 = vmul.f32 %v3675, %v3675
  %v3735 = vmul.f32 %v3677, %v3677
  %v3736 = vmul.f32 %v3680, %v3680
  %v3737 = vmul.f32 %v3682, %v3682
  %v3738 = vsel %vm3325, %v3722, 0.0
  %v3739 = vsel %vm3325, %v3723, 0.0
  %v3740 = vadd.f32 %v3738, %v3739
  %v3741 = vsel %vm3325, %v3724, 0.0
  %v3742 = vadd.f32 %v3740, %v3741
  %v3743 = vsel %vm3325, %v3725, 0.0
  %v3744 = vadd.f32 %v3742, %v3743
  %v3745 = vsel %vm3325, %v3726, 0.0
  %v3746 = vadd.f32 %v3744, %v3745
  %v3747 = vsel %vm3325, %v3727, 0.0
  %v3748 = vadd.f32 %v3746, %v3747
  %v3749 = vsel %vm3325, %v3728, 0.0
  %v3750 = vadd.f32 %v3748, %v3749
  %v3751 = vsel %vm3325, %v3729, 0.0
  %v3752 = vadd.f32 %v3750, %v3751
  %v3753 = vsel %vm3325, %v3730, 0.0
  %v3754 = vadd.f32 %v3752, %v3753
  %v3755 = vsel %vm3325, %v3731, 0.0
  %v3756 = vadd.f32 %v3754, %v3755
  %v3757 = vsel %vm3325, %v3732, 0.0
  %v3758 = vadd.f32 %v3756, %v3757
  %v3759 = vsel %vm3325, %v3733, 0.0
  %v3760 = vadd.f32 %v3758, %v3759
  %v3761 = vsel %vm3325, %v3734, 0.0
  %v3762 = vadd.f32 %v3760, %v3761
  %v3763 = vsel %vm3325, %v3735, 0.0
  %v3764 = vadd.f32 %v3762, %v3763
  %v3765 = vsel %vm3325, %v3736, 0.0
  %v3766 = vadd.f32 %v3764, %v3765
  %v3767 = vsel %vm3325, %v3737, 0.0
  %v3768 = vadd.f32 %v3766, %v3767
  %v3769 = vrot.slane %v3768, 4
  %v3770 = vadd.f32 %v3768, %v3769
  %v3771 = vrot.slane %v3770, 2
  %v3772 = vadd.f32 %v3770, %v3771
  %v3773 = vrot.slane %v3772, 1
  %v3774 = vadd.f32 %v3772, %v3773
  %v3775 = vmul.f32 %v3774, 0.0078125
  %v3776 = vmul.f32 %v3721, %v3721
  %v3777 = vsub.f32 %v3775, %v3776
  %v3778 = vmax.f32 %v3777, 0.0
  %v3779 = vld [vmem:[%s3] sm:$0x1]
  %v3780 = vadd.f32 %v3778, 1e-05
  %v3781 = vrsqrt.pop %v3780
  %v3782 = vmul.f32 %v3781, %v3780
  %v3783 = vmul.f32 %v3782, %v3781
  %v3784 = vmul.f32 0.5, %v3783
  %v3785 = vsub.f32 1.5, %v3784
  %v3786 = vmul.f32 %v3781, %v3785
  %vm3787 = vweird.f32 %v3780
  %vm3788 = vweird.f32 %v3781
  %vm3789 = vmor %vm3787, %vm3788
  %v3790 = vsel %vm3789, %v3781, %v3786
  %v3791 = vmul.f32 %v3779, %v3790
  %v3792 = vsub.f32 %v3645, %v3721
  %v3793 = vsub.f32 %v3647, %v3721
  %v3794 = vsub.f32 %v3650, %v3721
  %v3795 = vsub.f32 %v3652, %v3721
  %v3796 = vsub.f32 %v3655, %v3721
  %v3797 = vsub.f32 %v3657, %v3721
  %v3798 = vsub.f32 %v3660, %v3721
  %v3799 = vsub.f32 %v3662, %v3721
  %v3800 = vsub.f32 %v3665, %v3721
  %v3801 = vsub.f32 %v3667, %v3721
  %v3802 = vsub.f32 %v3670, %v3721
  %v3803 = vsub.f32 %v3672, %v3721
  %v3804 = vsub.f32 %v3675, %v3721
  %v3805 = vsub.f32 %v3677, %v3721
  %v3806 = vsub.f32 %v3680, %v3721
  %v3807 = vsub.f32 %v3682, %v3721
  %v3809 = vperm.slane %v3791, 0
  %v3811 = vmul.f32 %v3792, %v3809
  %v3812 = vmul.f32 %v3793, %v3809
  %v3813 = vmul.f32 %v3794, %v3809
  %v3814 = vmul.f32 %v3795, %v3809
  %v3815 = vmul.f32 %v3796, %v3809
  %v3816 = vmul.f32 %v3797, %v3809
  %v3817 = vmul.f32 %v3798, %v3809
  %v3818 = vmul.f32 %v3799, %v3809
  %v3819 = vmul.f32 %v3800, %v3809
  %v3820 = vmul.f32 %v3801, %v3809
  %v3821 = vmul.f32 %v3802, %v3809
  %v3822 = vmul.f32 %v3803, %v3809
  %v3823 = vmul.f32 %v3804, %v3809
  %v3824 = vmul.f32 %v3805, %v3809
  %v3825 = vmul.f32 %v3806, %v3809
  %v3826 = vmul.f32 %v3807, %v3809
  %v3827 = vld [vmem:[%s4] sm:$0x1]
  %v3829 = vperm.slane %v3827, 0
  %v3831 = vadd.f32 %v3811, %v3829
  %v3832 = vadd.f32 %v3812, %v3829
  %v3833 = vadd.f32 %v3813, %v3829
  %v3834 = vadd.f32 %v3814, %v3829
  %v3835 = vadd.f32 %v3815, %v3829
  %v3836 = vadd.f32 %v3816, %v3829
  %v3837 = vadd.f32 %v3817, %v3829
  %v3838 = vadd.f32 %v3818, %v3829
  %v3839 = vadd.f32 %v3819, %v3829
  %v3840 = vadd.f32 %v3820, %v3829
  %v3841 = vadd.f32 %v3821, %v3829
  %v3842 = vadd.f32 %v3822, %v3829
  %v3843 = vadd.f32 %v3823, %v3829
  %v3844 = vadd.f32 %v3824, %v3829
  %v3845 = vadd.f32 %v3825, %v3829
  %v3846 = vadd.f32 %v3826, %v3829
  %v3847 = vmax.f32 %v3831, 0.0
  %v3848 = vmax.f32 %v3832, 0.0
  %v3849 = vmax.f32 %v3833, 0.0
  %v3850 = vmax.f32 %v3834, 0.0
  %v3851 = vmax.f32 %v3835, 0.0
  %v3852 = vmax.f32 %v3836, 0.0
  %v3853 = vmax.f32 %v3837, 0.0
  %v3854 = vmax.f32 %v3838, 0.0
  %v3855 = vmax.f32 %v3839, 0.0
  %v3856 = vmax.f32 %v3840, 0.0
  %v3857 = vmax.f32 %v3841, 0.0
  %v3858 = vmax.f32 %v3842, 0.0
  %v3859 = vmax.f32 %v3843, 0.0
  %v3860 = vmax.f32 %v3844, 0.0
  %v3861 = vmax.f32 %v3845, 0.0
  %v3862 = vmax.f32 %v3846, 0.0
  %v3863 = vpack.c.bf16 %v3848, %v3847
  %v3864 = vpack.c.bf16 %v3850, %v3849
  %v3865 = vpack.c.bf16 %v3852, %v3851
  %v3866 = vpack.c.bf16 %v3854, %v3853
  %v3867 = vpack.c.bf16 %v3856, %v3855
  %v3868 = vpack.c.bf16 %v3858, %v3857
  %v3869 = vpack.c.bf16 %v3860, %v3859
  %v3870 = vpack.c.bf16 %v3862, %v3861
  %v3871 = vld [vmem:[%s5] sm:$0xf]
  %v3872 = vld [vmem:[%s5 + $0x4] sm:$0xf]
  %v3873 = vld [vmem:[%s5 + $0x8] sm:$0xf]
  %v3874 = vld [vmem:[%s5 + $0xc] sm:$0xf]
  %v3879 = vunpack.c.l.b16 %v3871
  %v3880 = vunpack.c.l.b16 %v3872
  %v3881 = vunpack.c.l.b16 %v3873
  %v3882 = vunpack.c.l.b16 %v3874
  %v3883 = vpack.c.b16 %v3880, %v3879
  %v3884 = vpack.c.b16 %v3882, %v3881
  %3887 = vmatpush.bf16.msra.mxu0 %v3870
  %3888 = vmatpush.bf16.msra.mxu0 %v3869
  %3889 = vmatpush.bf16.msra.mxu0 %v3868
  %3890 = vmatpush.bf16.msra.mxu0 %v3867
  %3891 = vmatpush.bf16.msra.mxu0 %v3866
  %3892 = vmatpush.bf16.msra.mxu0 %v3865
  %3893 = vmatpush.bf16.msra.mxu0 %v3864
  %3894 = vmatpush.bf16.msra.mxu0 %v3863
  %3895 = vmatmul.bf16.gmra.mxu0 %v3883
  %v3896 = vpop.f32.mrf.mxu0
  %v3897 = vadd.f32 0.0, %v3896
  %v3898 = vpop.f32.mrf.mxu0
  %v3899 = vadd.f32 0.0, %v3898
  %3900 = vmatmul.bf16.gmra.mxu0 %v3884
  %v3901 = vpop.f32.mrf.mxu0
  %v3902 = vadd.f32 0.0, %v3901
  %v3903 = vpop.f32.mrf.mxu0
  %v3904 = vadd.f32 0.0, %v3903
  %3905 = vdwg.mxu0
  %v3906 = vpack.c.bf16 %v3897, %v3897
  %v3907 = vpack.c.bf16 %v3899, %v3899
  %v3908 = vpack.c.bf16 %v3902, %v3902
  %v3909 = vpack.c.bf16 %v3904, %v3904
  %s3910 = scalar_lea.vmem %s5, 16
  %v3911 = vld [vmem:[%s3910] sm:$0xf]
  %v3912 = vld [vmem:[%s3910 + $0x4] sm:$0xf]
  %v3913 = vld [vmem:[%s3910 + $0x8] sm:$0xf]
  %v3914 = vld [vmem:[%s3910 + $0xc] sm:$0xf]
  %v3919 = vunpack.c.l.b16 %v3911
  %v3920 = vunpack.c.l.b16 %v3912
  %v3921 = vunpack.c.l.b16 %v3913
  %v3922 = vunpack.c.l.b16 %v3914
  %v3923 = vpack.c.b16 %v3920, %v3919
  %v3924 = vpack.c.b16 %v3922, %v3921
  %3927 = vmatpush.bf16.msra.mxu0 %v3870
  %3928 = vmatpush.bf16.msra.mxu0 %v3869
  %3929 = vmatpush.bf16.msra.mxu0 %v3868
  %3930 = vmatpush.bf16.msra.mxu0 %v3867
  %3931 = vmatpush.bf16.msra.mxu0 %v3866
  %3932 = vmatpush.bf16.msra.mxu0 %v3865
  %3933 = vmatpush.bf16.msra.mxu0 %v3864
  %3934 = vmatpush.bf16.msra.mxu0 %v3863
  %3935 = vmatmul.bf16.gmra.mxu0 %v3923
  %v3936 = vpop.f32.mrf.mxu0
  %v3937 = vadd.f32 0.0, %v3936
  %v3938 = vpop.f32.mrf.mxu0
  %v3939 = vadd.f32 0.0, %v3938
  %3940 = vmatmul.bf16.gmra.mxu0 %v3924
  %v3941 = vpop.f32.mrf.mxu0
  %v3942 = vadd.f32 0.0, %v3941
  %v3943 = vpop.f32.mrf.mxu0
  %v3944 = vadd.f32 0.0, %v3943
  %3945 = vdwg.mxu0
  %v3946 = vpack.c.bf16 %v3937, %v3937
  %v3947 = vpack.c.bf16 %v3939, %v3939
  %v3948 = vpack.c.bf16 %v3942, %v3942
  %v3949 = vpack.c.bf16 %v3944, %v3944
  %s3950 = scalar_lea.vmem %s5, 32
  %v3951 = vld [vmem:[%s3950] sm:$0xf]
  %v3952 = vld [vmem:[%s3950 + $0x4] sm:$0xf]
  %v3953 = vld [vmem:[%s3950 + $0x8] sm:$0xf]
  %v3954 = vld [vmem:[%s3950 + $0xc] sm:$0xf]
  %v3959 = vunpack.c.l.b16 %v3951
  %v3960 = vunpack.c.l.b16 %v3952
  %v3961 = vunpack.c.l.b16 %v3953
  %v3962 = vunpack.c.l.b16 %v3954
  %v3963 = vpack.c.b16 %v3960, %v3959
  %v3964 = vpack.c.b16 %v3962, %v3961
  %3967 = vmatpush.bf16.msra.mxu0 %v3870
  %3968 = vmatpush.bf16.msra.mxu0 %v3869
  %3969 = vmatpush.bf16.msra.mxu0 %v3868
  %3970 = vmatpush.bf16.msra.mxu0 %v3867
  %3971 = vmatpush.bf16.msra.mxu0 %v3866
  %3972 = vmatpush.bf16.msra.mxu0 %v3865
  %3973 = vmatpush.bf16.msra.mxu0 %v3864
  %3974 = vmatpush.bf16.msra.mxu0 %v3863
  %3975 = vmatmul.bf16.gmra.mxu0 %v3963
  %v3976 = vpop.f32.mrf.mxu0
  %v3977 = vadd.f32 0.0, %v3976
  %v3978 = vpop.f32.mrf.mxu0
  %v3979 = vadd.f32 0.0, %v3978
  %3980 = vmatmul.bf16.gmra.mxu0 %v3964
  %v3981 = vpop.f32.mrf.mxu0
  %v3982 = vadd.f32 0.0, %v3981
  %v3983 = vpop.f32.mrf.mxu0
  %v3984 = vadd.f32 0.0, %v3983
  %3985 = vdwg.mxu0
  %v3986 = vpack.c.bf16 %v3977, %v3977
  %v3987 = vpack.c.bf16 %v3979, %v3979
  %v3988 = vpack.c.bf16 %v3982, %v3982
  %v3989 = vpack.c.bf16 %v3984, %v3984
  %s3990 = scalar_lea.vmem %s5, 48
  %v3991 = vld [vmem:[%s3990] sm:$0xf]
  %v3992 = vld [vmem:[%s3990 + $0x4] sm:$0xf]
  %v3993 = vld [vmem:[%s3990 + $0x8] sm:$0xf]
  %v3994 = vld [vmem:[%s3990 + $0xc] sm:$0xf]
  %v3999 = vunpack.c.l.b16 %v3991
  %v4000 = vunpack.c.l.b16 %v3992
  %v4001 = vunpack.c.l.b16 %v3993
  %v4002 = vunpack.c.l.b16 %v3994
  %v4003 = vpack.c.b16 %v4000, %v3999
  %v4004 = vpack.c.b16 %v4002, %v4001
  %4007 = vmatpush.bf16.msra.mxu0 %v3870
  %4008 = vmatpush.bf16.msra.mxu0 %v3869
  %4009 = vmatpush.bf16.msra.mxu0 %v3868
  %4010 = vmatpush.bf16.msra.mxu0 %v3867
  %4011 = vmatpush.bf16.msra.mxu0 %v3866
  %4012 = vmatpush.bf16.msra.mxu0 %v3865
  %4013 = vmatpush.bf16.msra.mxu0 %v3864
  %4014 = vmatpush.bf16.msra.mxu0 %v3863
  %4015 = vmatmul.bf16.gmra.mxu0 %v4003
  %v4016 = vpop.f32.mrf.mxu0
  %v4017 = vadd.f32 0.0, %v4016
  %v4018 = vpop.f32.mrf.mxu0
  %v4019 = vadd.f32 0.0, %v4018
  %4020 = vmatmul.bf16.gmra.mxu0 %v4004
  %v4021 = vpop.f32.mrf.mxu0
  %v4022 = vadd.f32 0.0, %v4021
  %v4023 = vpop.f32.mrf.mxu0
  %v4024 = vadd.f32 0.0, %v4023
  %4025 = vdwg.mxu0
  %v4026 = vpack.c.bf16 %v4017, %v4017
  %v4027 = vpack.c.bf16 %v4019, %v4019
  %v4028 = vpack.c.bf16 %v4022, %v4022
  %v4029 = vpack.c.bf16 %v4024, %v4024
  %s4030 = scalar_lea.vmem %s5, 64
  %v4031 = vld [vmem:[%s4030] sm:$0xf]
  %v4032 = vld [vmem:[%s4030 + $0x4] sm:$0xf]
  %v4033 = vld [vmem:[%s4030 + $0x8] sm:$0xf]
  %v4034 = vld [vmem:[%s4030 + $0xc] sm:$0xf]
  %v4039 = vunpack.c.l.b16 %v4031
  %v4040 = vunpack.c.l.b16 %v4032
  %v4041 = vunpack.c.l.b16 %v4033
  %v4042 = vunpack.c.l.b16 %v4034
  %v4043 = vpack.c.b16 %v4040, %v4039
  %v4044 = vpack.c.b16 %v4042, %v4041
  %4047 = vmatpush.bf16.msra.mxu0 %v3870
  %4048 = vmatpush.bf16.msra.mxu0 %v3869
  %4049 = vmatpush.bf16.msra.mxu0 %v3868
  %4050 = vmatpush.bf16.msra.mxu0 %v3867
  %4051 = vmatpush.bf16.msra.mxu0 %v3866
  %4052 = vmatpush.bf16.msra.mxu0 %v3865
  %4053 = vmatpush.bf16.msra.mxu0 %v3864
  %4054 = vmatpush.bf16.msra.mxu0 %v3863
  %4055 = vmatmul.bf16.gmra.mxu0 %v4043
  %v4056 = vpop.f32.mrf.mxu0
  %v4057 = vadd.f32 0.0, %v4056
  %v4058 = vpop.f32.mrf.mxu0
  %v4059 = vadd.f32 0.0, %v4058
  %4060 = vmatmul.bf16.gmra.mxu0 %v4044
  %v4061 = vpop.f32.mrf.mxu0
  %v4062 = vadd.f32 0.0, %v4061
  %v4063 = vpop.f32.mrf.mxu0
  %v4064 = vadd.f32 0.0, %v4063
  %4065 = vdwg.mxu0
  %v4066 = vpack.c.bf16 %v4057, %v4057
  %v4067 = vpack.c.bf16 %v4059, %v4059
  %v4068 = vpack.c.bf16 %v4062, %v4062
  %v4069 = vpack.c.bf16 %v4064, %v4064
  %s4070 = scalar_lea.vmem %s5, 80
  %v4071 = vld [vmem:[%s4070] sm:$0xf]
  %v4072 = vld [vmem:[%s4070 + $0x4] sm:$0xf]
  %v4073 = vld [vmem:[%s4070 + $0x8] sm:$0xf]
  %v4074 = vld [vmem:[%s4070 + $0xc] sm:$0xf]
  %v4079 = vunpack.c.l.b16 %v4071
  %v4080 = vunpack.c.l.b16 %v4072
  %v4081 = vunpack.c.l.b16 %v4073
  %v4082 = vunpack.c.l.b16 %v4074
  %v4083 = vpack.c.b16 %v4080, %v4079
  %v4084 = vpack.c.b16 %v4082, %v4081
  %4087 = vmatpush.bf16.msra.mxu0 %v3870
  %4088 = vmatpush.bf16.msra.mxu0 %v3869
  %4089 = vmatpush.bf16.msra.mxu0 %v3868
  %4090 = vmatpush.bf16.msra.mxu0 %v3867
  %4091 = vmatpush.bf16.msra.mxu0 %v3866
  %4092 = vmatpush.bf16.msra.mxu0 %v3865
  %4093 = vmatpush.bf16.msra.mxu0 %v3864
  %4094 = vmatpush.bf16.msra.mxu0 %v3863
  %4095 = vmatmul.bf16.gmra.mxu0 %v4083
  %v4096 = vpop.f32.mrf.mxu0
  %v4097 = vadd.f32 0.0, %v4096
  %v4098 = vpop.f32.mrf.mxu0
  %v4099 = vadd.f32 0.0, %v4098
  %4100 = vmatmul.bf16.gmra.mxu0 %v4084
  %v4101 = vpop.f32.mrf.mxu0
  %v4102 = vadd.f32 0.0, %v4101
  %v4103 = vpop.f32.mrf.mxu0
  %v4104 = vadd.f32 0.0, %v4103
  %4105 = vdwg.mxu0
  %v4106 = vpack.c.bf16 %v4097, %v4097
  %v4107 = vpack.c.bf16 %v4099, %v4099
  %v4108 = vpack.c.bf16 %v4102, %v4102
  %v4109 = vpack.c.bf16 %v4104, %v4104
  %s4110 = scalar_lea.vmem %s5, 96
  %v4111 = vld [vmem:[%s4110] sm:$0xf]
  %v4112 = vld [vmem:[%s4110 + $0x4] sm:$0xf]
  %v4113 = vld [vmem:[%s4110 + $0x8] sm:$0xf]
  %v4114 = vld [vmem:[%s4110 + $0xc] sm:$0xf]
  %v4119 = vunpack.c.l.b16 %v4111
  %v4120 = vunpack.c.l.b16 %v4112
  %v4121 = vunpack.c.l.b16 %v4113
  %v4122 = vunpack.c.l.b16 %v4114
  %v4123 = vpack.c.b16 %v4120, %v4119
  %v4124 = vpack.c.b16 %v4122, %v4121
  %4127 = vmatpush.bf16.msra.mxu0 %v3870
  %4128 = vmatpush.bf16.msra.mxu0 %v3869
  %4129 = vmatpush.bf16.msra.mxu0 %v3868
  %4130 = vmatpush.bf16.msra.mxu0 %v3867
  %4131 = vmatpush.bf16.msra.mxu0 %v3866
  %4132 = vmatpush.bf16.msra.mxu0 %v3865
  %4133 = vmatpush.bf16.msra.mxu0 %v3864
  %4134 = vmatpush.bf16.msra.mxu0 %v3863
  %4135 = vmatmul.bf16.gmra.mxu0 %v4123
  %v4136 = vpop.f32.mrf.mxu0
  %v4137 = vadd.f32 0.0, %v4136
  %v4138 = vpop.f32.mrf.mxu0
  %v4139 = vadd.f32 0.0, %v4138
  %4140 = vmatmul.bf16.gmra.mxu0 %v4124
  %v4141 = vpop.f32.mrf.mxu0
  %v4142 = vadd.f32 0.0, %v4141
  %v4143 = vpop.f32.mrf.mxu0
  %v4144 = vadd.f32 0.0, %v4143
  %4145 = vdwg.mxu0
  %v4146 = vpack.c.bf16 %v4137, %v4137
  %v4147 = vpack.c.bf16 %v4139, %v4139
  %v4148 = vpack.c.bf16 %v4142, %v4142
  %v4149 = vpack.c.bf16 %v4144, %v4144
  %s4150 = scalar_lea.vmem %s5, 112
  %v4151 = vld [vmem:[%s4150] sm:$0xf]
  %v4152 = vld [vmem:[%s4150 + $0x4] sm:$0xf]
  %v4153 = vld [vmem:[%s4150 + $0x8] sm:$0xf]
  %v4154 = vld [vmem:[%s4150 + $0xc] sm:$0xf]
  %v4159 = vunpack.c.l.b16 %v4151
  %v4160 = vunpack.c.l.b16 %v4152
  %v4161 = vunpack.c.l.b16 %v4153
  %v4162 = vunpack.c.l.b16 %v4154
  %v4163 = vpack.c.b16 %v4160, %v4159
  %v4164 = vpack.c.b16 %v4162, %v4161
  %4167 = vmatpush.bf16.msra.mxu0 %v3870
  %4168 = vmatpush.bf16.msra.mxu0 %v3869
  %4169 = vmatpush.bf16.msra.mxu0 %v3868
  %4170 = vmatpush.bf16.msra.mxu0 %v3867
  %4171 = vmatpush.bf16.msra.mxu0 %v3866
  %4172 = vmatpush.bf16.msra.mxu0 %v3865
  %4173 = vmatpush.bf16.msra.mxu0 %v3864
  %4174 = vmatpush.bf16.msra.mxu0 %v3863
  %4175 = vmatmul.bf16.gmra.mxu0 %v4163
  %v4176 = vpop.f32.mrf.mxu0
  %v4177 = vadd.f32 0.0, %v4176
  %v4178 = vpop.f32.mrf.mxu0
  %v4179 = vadd.f32 0.0, %v4178
  %4180 = vmatmul.bf16.gmra.mxu0 %v4164
  %v4181 = vpop.f32.mrf.mxu0
  %v4182 = vadd.f32 0.0, %v4181
  %v4183 = vpop.f32.mrf.mxu0
  %v4184 = vadd.f32 0.0, %v4183
  %4185 = vdwg.mxu0
  %v4186 = vpack.c.bf16 %v4177, %v4177
  %v4187 = vpack.c.bf16 %v4179, %v4179
  %v4188 = vpack.c.bf16 %v4182, %v4182
  %v4189 = vpack.c.bf16 %v4184, %v4184
  %s4190 = scalar_lea.vmem %s5, 128
  %v4191 = vld [vmem:[%s4190] sm:$0xf]
  %v4192 = vld [vmem:[%s4190 + $0x4] sm:$0xf]
  %v4193 = vld [vmem:[%s4190 + $0x8] sm:$0xf]
  %v4194 = vld [vmem:[%s4190 + $0xc] sm:$0xf]
  %v4199 = vunpack.c.l.b16 %v4191
  %v4200 = vunpack.c.l.b16 %v4192
  %v4201 = vunpack.c.l.b16 %v4193
  %v4202 = vunpack.c.l.b16 %v4194
  %v4203 = vpack.c.b16 %v4200, %v4199
  %v4204 = vpack.c.b16 %v4202, %v4201
  %4207 = vmatpush.bf16.msra.mxu0 %v3870
  %4208 = vmatpush.bf16.msra.mxu0 %v3869
  %4209 = vmatpush.bf16.msra.mxu0 %v3868
  %4210 = vmatpush.bf16.msra.mxu0 %v3867
  %4211 = vmatpush.bf16.msra.mxu0 %v3866
  %4212 = vmatpush.bf16.msra.mxu0 %v3865
  %4213 = vmatpush.bf16.msra.mxu0 %v3864
  %4214 = vmatpush.bf16.msra.mxu0 %v3863
  %4215 = vmatmul.bf16.gmra.mxu0 %v4203
  %v4216 = vpop.f32.mrf.mxu0
  %v4217 = vadd.f32 0.0, %v4216
  %v4218 = vpop.f32.mrf.mxu0
  %v4219 = vadd.f32 0.0, %v4218
  %4220 = vmatmul.bf16.gmra.mxu0 %v4204
  %v4221 = vpop.f32.mrf.mxu0
  %v4222 = vadd.f32 0.0, %v4221
  %v4223 = vpop.f32.mrf.mxu0
  %v4224 = vadd.f32 0.0, %v4223
  %4225 = vdwg.mxu0
  %v4226 = vpack.c.bf16 %v4217, %v4217
  %v4227 = vpack.c.bf16 %v4219, %v4219
  %v4228 = vpack.c.bf16 %v4222, %v4222
  %v4229 = vpack.c.bf16 %v4224, %v4224
  %s4230 = scalar_lea.vmem %s5, 144
  %v4231 = vld [vmem:[%s4230] sm:$0xf]
  %v4232 = vld [vmem:[%s4230 + $0x4] sm:$0xf]
  %v4233 = vld [vmem:[%s4230 + $0x8] sm:$0xf]
  %v4234 = vld [vmem:[%s4230 + $0xc] sm:$0xf]
  %v4239 = vunpack.c.l.b16 %v4231
  %v4240 = vunpack.c.l.b16 %v4232
  %v4241 = vunpack.c.l.b16 %v4233
  %v4242 = vunpack.c.l.b16 %v4234
  %v4243 = vpack.c.b16 %v4240, %v4239
  %v4244 = vpack.c.b16 %v4242, %v4241
  %4247 = vmatpush.bf16.msra.mxu0 %v3870
  %4248 = vmatpush.bf16.msra.mxu0 %v3869
  %4249 = vmatpush.bf16.msra.mxu0 %v3868
  %4250 = vmatpush.bf16.msra.mxu0 %v3867
  %4251 = vmatpush.bf16.msra.mxu0 %v3866
  %4252 = vmatpush.bf16.msra.mxu0 %v3865
  %4253 = vmatpush.bf16.msra.mxu0 %v3864
  %4254 = vmatpush.bf16.msra.mxu0 %v3863
  %4255 = vmatmul.bf16.gmra.mxu0 %v4243
  %v4256 = vpop.f32.mrf.mxu0
  %v4257 = vadd.f32 0.0, %v4256
  %v4258 = vpop.f32.mrf.mxu0
  %v4259 = vadd.f32 0.0, %v4258
  %4260 = vmatmul.bf16.gmra.mxu0 %v4244
  %v4261 = vpop.f32.mrf.mxu0
  %v4262 = vadd.f32 0.0, %v4261
  %v4263 = vpop.f32.mrf.mxu0
  %v4264 = vadd.f32 0.0, %v4263
  %4265 = vdwg.mxu0
  %v4266 = vpack.c.bf16 %v4257, %v4257
  %v4267 = vpack.c.bf16 %v4259, %v4259
  %v4268 = vpack.c.bf16 %v4262, %v4262
  %v4269 = vpack.c.bf16 %v4264, %v4264
  %s4270 = scalar_lea.vmem %s5, 160
  %v4271 = vld [vmem:[%s4270] sm:$0xf]
  %v4272 = vld [vmem:[%s4270 + $0x4] sm:$0xf]
  %v4273 = vld [vmem:[%s4270 + $0x8] sm:$0xf]
  %v4274 = vld [vmem:[%s4270 + $0xc] sm:$0xf]
  %v4279 = vunpack.c.l.b16 %v4271
  %v4280 = vunpack.c.l.b16 %v4272
  %v4281 = vunpack.c.l.b16 %v4273
  %v4282 = vunpack.c.l.b16 %v4274
  %v4283 = vpack.c.b16 %v4280, %v4279
  %v4284 = vpack.c.b16 %v4282, %v4281
  %4287 = vmatpush.bf16.msra.mxu0 %v3870
  %4288 = vmatpush.bf16.msra.mxu0 %v3869
  %4289 = vmatpush.bf16.msra.mxu0 %v3868
  %4290 = vmatpush.bf16.msra.mxu0 %v3867
  %4291 = vmatpush.bf16.msra.mxu0 %v3866
  %4292 = vmatpush.bf16.msra.mxu0 %v3865
  %4293 = vmatpush.bf16.msra.mxu0 %v3864
  %4294 = vmatpush.bf16.msra.mxu0 %v3863
  %4295 = vmatmul.bf16.gmra.mxu0 %v4283
  %v4296 = vpop.f32.mrf.mxu0
  %v4297 = vadd.f32 0.0, %v4296
  %v4298 = vpop.f32.mrf.mxu0
  %v4299 = vadd.f32 0.0, %v4298
  %4300 = vmatmul.bf16.gmra.mxu0 %v4284
  %v4301 = vpop.f32.mrf.mxu0
  %v4302 = vadd.f32 0.0, %v4301
  %v4303 = vpop.f32.mrf.mxu0
  %v4304 = vadd.f32 0.0, %v4303
  %4305 = vdwg.mxu0
  %v4306 = vpack.c.bf16 %v4297, %v4297
  %v4307 = vpack.c.bf16 %v4299, %v4299
  %v4308 = vpack.c.bf16 %v4302, %v4302
  %v4309 = vpack.c.bf16 %v4304, %v4304
  %s4310 = scalar_lea.vmem %s5, 176
  %v4311 = vld [vmem:[%s4310] sm:$0xf]
  %v4312 = vld [vmem:[%s4310 + $0x4] sm:$0xf]
  %v4313 = vld [vmem:[%s4310 + $0x8] sm:$0xf]
  %v4314 = vld [vmem:[%s4310 + $0xc] sm:$0xf]
  %v4319 = vunpack.c.l.b16 %v4311
  %v4320 = vunpack.c.l.b16 %v4312
  %v4321 = vunpack.c.l.b16 %v4313
  %v4322 = vunpack.c.l.b16 %v4314
  %v4323 = vpack.c.b16 %v4320, %v4319
  %v4324 = vpack.c.b16 %v4322, %v4321
  %4327 = vmatpush.bf16.msra.mxu0 %v3870
  %4328 = vmatpush.bf16.msra.mxu0 %v3869
  %4329 = vmatpush.bf16.msra.mxu0 %v3868
  %4330 = vmatpush.bf16.msra.mxu0 %v3867
  %4331 = vmatpush.bf16.msra.mxu0 %v3866
  %4332 = vmatpush.bf16.msra.mxu0 %v3865
  %4333 = vmatpush.bf16.msra.mxu0 %v3864
  %4334 = vmatpush.bf16.msra.mxu0 %v3863
  %4335 = vmatmul.bf16.gmra.mxu0 %v4323
  %v4336 = vpop.f32.mrf.mxu0
  %v4337 = vadd.f32 0.0, %v4336
  %v4338 = vpop.f32.mrf.mxu0
  %v4339 = vadd.f32 0.0, %v4338
  %4340 = vmatmul.bf16.gmra.mxu0 %v4324
  %v4341 = vpop.f32.mrf.mxu0
  %v4342 = vadd.f32 0.0, %v4341
  %v4343 = vpop.f32.mrf.mxu0
  %v4344 = vadd.f32 0.0, %v4343
  %4345 = vdwg.mxu0
  %v4346 = vpack.c.bf16 %v4337, %v4337
  %v4347 = vpack.c.bf16 %v4339, %v4339
  %v4348 = vpack.c.bf16 %v4342, %v4342
  %v4349 = vpack.c.bf16 %v4344, %v4344
  %s4350 = scalar_lea.vmem %s5, 192
  %v4351 = vld [vmem:[%s4350] sm:$0xf]
  %v4352 = vld [vmem:[%s4350 + $0x4] sm:$0xf]
  %v4353 = vld [vmem:[%s4350 + $0x8] sm:$0xf]
  %v4354 = vld [vmem:[%s4350 + $0xc] sm:$0xf]
  %v4359 = vunpack.c.l.b16 %v4351
  %v4360 = vunpack.c.l.b16 %v4352
  %v4361 = vunpack.c.l.b16 %v4353
  %v4362 = vunpack.c.l.b16 %v4354
  %v4363 = vpack.c.b16 %v4360, %v4359
  %v4364 = vpack.c.b16 %v4362, %v4361
  %4367 = vmatpush.bf16.msra.mxu0 %v3870
  %4368 = vmatpush.bf16.msra.mxu0 %v3869
  %4369 = vmatpush.bf16.msra.mxu0 %v3868
  %4370 = vmatpush.bf16.msra.mxu0 %v3867
  %4371 = vmatpush.bf16.msra.mxu0 %v3866
  %4372 = vmatpush.bf16.msra.mxu0 %v3865
  %4373 = vmatpush.bf16.msra.mxu0 %v3864
  %4374 = vmatpush.bf16.msra.mxu0 %v3863
  %4375 = vmatmul.bf16.gmra.mxu0 %v4363
  %v4376 = vpop.f32.mrf.mxu0
  %v4377 = vadd.f32 0.0, %v4376
  %v4378 = vpop.f32.mrf.mxu0
  %v4379 = vadd.f32 0.0, %v4378
  %4380 = vmatmul.bf16.gmra.mxu0 %v4364
  %v4381 = vpop.f32.mrf.mxu0
  %v4382 = vadd.f32 0.0, %v4381
  %v4383 = vpop.f32.mrf.mxu0
  %v4384 = vadd.f32 0.0, %v4383
  %4385 = vdwg.mxu0
  %v4386 = vpack.c.bf16 %v4377, %v4377
  %v4387 = vpack.c.bf16 %v4379, %v4379
  %v4388 = vpack.c.bf16 %v4382, %v4382
  %v4389 = vpack.c.bf16 %v4384, %v4384
  %s4390 = scalar_lea.vmem %s5, 208
  %v4391 = vld [vmem:[%s4390] sm:$0xf]
  %v4392 = vld [vmem:[%s4390 + $0x4] sm:$0xf]
  %v4393 = vld [vmem:[%s4390 + $0x8] sm:$0xf]
  %v4394 = vld [vmem:[%s4390 + $0xc] sm:$0xf]
  %v4399 = vunpack.c.l.b16 %v4391
  %v4400 = vunpack.c.l.b16 %v4392
  %v4401 = vunpack.c.l.b16 %v4393
  %v4402 = vunpack.c.l.b16 %v4394
  %v4403 = vpack.c.b16 %v4400, %v4399
  %v4404 = vpack.c.b16 %v4402, %v4401
  %4407 = vmatpush.bf16.msra.mxu0 %v3870
  %4408 = vmatpush.bf16.msra.mxu0 %v3869
  %4409 = vmatpush.bf16.msra.mxu0 %v3868
  %4410 = vmatpush.bf16.msra.mxu0 %v3867
  %4411 = vmatpush.bf16.msra.mxu0 %v3866
  %4412 = vmatpush.bf16.msra.mxu0 %v3865
  %4413 = vmatpush.bf16.msra.mxu0 %v3864
  %4414 = vmatpush.bf16.msra.mxu0 %v3863
  %4415 = vmatmul.bf16.gmra.mxu0 %v4403
  %v4416 = vpop.f32.mrf.mxu0
  %v4417 = vadd.f32 0.0, %v4416
  %v4418 = vpop.f32.mrf.mxu0
  %v4419 = vadd.f32 0.0, %v4418
  %4420 = vmatmul.bf16.gmra.mxu0 %v4404
  %v4421 = vpop.f32.mrf.mxu0
  %v4422 = vadd.f32 0.0, %v4421
  %v4423 = vpop.f32.mrf.mxu0
  %v4424 = vadd.f32 0.0, %v4423
  %4425 = vdwg.mxu0
  %v4426 = vpack.c.bf16 %v4417, %v4417
  %v4427 = vpack.c.bf16 %v4419, %v4419
  %v4428 = vpack.c.bf16 %v4422, %v4422
  %v4429 = vpack.c.bf16 %v4424, %v4424
  %s4430 = scalar_lea.vmem %s5, 224
  %v4431 = vld [vmem:[%s4430] sm:$0xf]
  %v4432 = vld [vmem:[%s4430 + $0x4] sm:$0xf]
  %v4433 = vld [vmem:[%s4430 + $0x8] sm:$0xf]
  %v4434 = vld [vmem:[%s4430 + $0xc] sm:$0xf]
  %v4439 = vunpack.c.l.b16 %v4431
  %v4440 = vunpack.c.l.b16 %v4432
  %v4441 = vunpack.c.l.b16 %v4433
  %v4442 = vunpack.c.l.b16 %v4434
  %v4443 = vpack.c.b16 %v4440, %v4439
  %v4444 = vpack.c.b16 %v4442, %v4441
  %4447 = vmatpush.bf16.msra.mxu0 %v3870
  %4448 = vmatpush.bf16.msra.mxu0 %v3869
  %4449 = vmatpush.bf16.msra.mxu0 %v3868
  %4450 = vmatpush.bf16.msra.mxu0 %v3867
  %4451 = vmatpush.bf16.msra.mxu0 %v3866
  %4452 = vmatpush.bf16.msra.mxu0 %v3865
  %4453 = vmatpush.bf16.msra.mxu0 %v3864
  %4454 = vmatpush.bf16.msra.mxu0 %v3863
  %4455 = vmatmul.bf16.gmra.mxu0 %v4443
  %v4456 = vpop.f32.mrf.mxu0
  %v4457 = vadd.f32 0.0, %v4456
  %v4458 = vpop.f32.mrf.mxu0
  %v4459 = vadd.f32 0.0, %v4458
  %4460 = vmatmul.bf16.gmra.mxu0 %v4444
  %v4461 = vpop.f32.mrf.mxu0
  %v4462 = vadd.f32 0.0, %v4461
  %v4463 = vpop.f32.mrf.mxu0
  %v4464 = vadd.f32 0.0, %v4463
  %4465 = vdwg.mxu0
  %v4466 = vpack.c.bf16 %v4457, %v4457
  %v4467 = vpack.c.bf16 %v4459, %v4459
  %v4468 = vpack.c.bf16 %v4462, %v4462
  %v4469 = vpack.c.bf16 %v4464, %v4464
  %s4470 = scalar_lea.vmem %s5, 240
  %v4471 = vld [vmem:[%s4470] sm:$0xf]
  %v4472 = vld [vmem:[%s4470 + $0x4] sm:$0xf]
  %v4473 = vld [vmem:[%s4470 + $0x8] sm:$0xf]
  %v4474 = vld [vmem:[%s4470 + $0xc] sm:$0xf]
  %v4479 = vunpack.c.l.b16 %v4471
  %v4480 = vunpack.c.l.b16 %v4472
  %v4481 = vunpack.c.l.b16 %v4473
  %v4482 = vunpack.c.l.b16 %v4474
  %v4483 = vpack.c.b16 %v4480, %v4479
  %v4484 = vpack.c.b16 %v4482, %v4481
  %4487 = vmatpush.bf16.msra.mxu0 %v3870
  %4488 = vmatpush.bf16.msra.mxu0 %v3869
  %4489 = vmatpush.bf16.msra.mxu0 %v3868
  %4490 = vmatpush.bf16.msra.mxu0 %v3867
  %4491 = vmatpush.bf16.msra.mxu0 %v3866
  %4492 = vmatpush.bf16.msra.mxu0 %v3865
  %4493 = vmatpush.bf16.msra.mxu0 %v3864
  %4494 = vmatpush.bf16.msra.mxu0 %v3863
  %4495 = vmatmul.bf16.gmra.mxu0 %v4483
  %v4496 = vpop.f32.mrf.mxu0
  %v4497 = vadd.f32 0.0, %v4496
  %v4498 = vpop.f32.mrf.mxu0
  %v4499 = vadd.f32 0.0, %v4498
  %4500 = vmatmul.bf16.gmra.mxu0 %v4484
  %v4501 = vpop.f32.mrf.mxu0
  %v4502 = vadd.f32 0.0, %v4501
  %v4503 = vpop.f32.mrf.mxu0
  %v4504 = vadd.f32 0.0, %v4503
  %4505 = vdwg.mxu0
  %v4506 = vpack.c.bf16 %v4497, %v4497
  %v4507 = vpack.c.bf16 %v4499, %v4499
  %v4508 = vpack.c.bf16 %v4502, %v4502
  %v4509 = vpack.c.bf16 %v4504, %v4504
  %v4514 = vunpack.c.l.b16 %v3906
  %v4515 = vunpack.c.l.b16 %v3907
  %v4516 = vunpack.c.l.b16 %v3908
  %v4517 = vunpack.c.l.b16 %v3909
  %v4518 = vpack.c.b16 %v4515, %v4514
  %v4519 = vpack.c.b16 %v4517, %v4516
  %v4524 = vunpack.c.l.b16 %v3946
  %v4525 = vunpack.c.l.b16 %v3947
  %v4526 = vunpack.c.l.b16 %v3948
  %v4527 = vunpack.c.l.b16 %v3949
  %v4528 = vpack.c.b16 %v4525, %v4524
  %v4529 = vpack.c.b16 %v4527, %v4526
  %4530 = vrot.lane.b32.xlu0 %v4528, 16
  %v4531 = vpop.permute.xlu0 %4530
  %4532 = vrot.lane.b32.xlu0 %v4529, 16
  %v4533 = vpop.permute.xlu0 %4532
  %v4538 = vunpack.c.l.b16 %v3986
  %v4539 = vunpack.c.l.b16 %v3987
  %v4540 = vunpack.c.l.b16 %v3988
  %v4541 = vunpack.c.l.b16 %v3989
  %v4542 = vpack.c.b16 %v4539, %v4538
  %v4543 = vpack.c.b16 %v4541, %v4540
  %4544 = vrot.lane.b32.xlu0 %v4542, 32
  %v4545 = vpop.permute.xlu0 %4544
  %4546 = vrot.lane.b32.xlu0 %v4543, 32
  %v4547 = vpop.permute.xlu0 %4546
  %v4552 = vunpack.c.l.b16 %v4026
  %v4553 = vunpack.c.l.b16 %v4027
  %v4554 = vunpack.c.l.b16 %v4028
  %v4555 = vunpack.c.l.b16 %v4029
  %v4556 = vpack.c.b16 %v4553, %v4552
  %v4557 = vpack.c.b16 %v4555, %v4554
  %4558 = vrot.lane.b32.xlu0 %v4556, 48
  %v4559 = vpop.permute.xlu0 %4558
  %4560 = vrot.lane.b32.xlu0 %v4557, 48
  %v4561 = vpop.permute.xlu0 %4560
  %v4566 = vunpack.c.l.b16 %v4066
  %v4567 = vunpack.c.l.b16 %v4067
  %v4568 = vunpack.c.l.b16 %v4068
  %v4569 = vunpack.c.l.b16 %v4069
  %v4570 = vpack.c.b16 %v4567, %v4566
  %v4571 = vpack.c.b16 %v4569, %v4568
  %4572 = vrot.lane.b32.xlu0 %v4570, 64
  %v4573 = vpop.permute.xlu0 %4572
  %4574 = vrot.lane.b32.xlu0 %v4571, 64
  %v4575 = vpop.permute.xlu0 %4574
  %v4580 = vunpack.c.l.b16 %v4106
  %v4581 = vunpack.c.l.b16 %v4107
  %v4582 = vunpack.c.l.b16 %v4108
  %v4583 = vunpack.c.l.b16 %v4109
  %v4584 = vpack.c.b16 %v4581, %v4580
  %v4585 = vpack.c.b16 %v4583, %v4582
  %4586 = vrot.lane.b32.xlu0 %v4584, 80
  %v4587 = vpop.permute.xlu0 %4586
  %4588 = vrot.lane.b32.xlu0 %v4585, 80
  %v4589 = vpop.permute.xlu0 %4588
  %v4594 = vunpack.c.l.b16 %v4146
  %v4595 = vunpack.c.l.b16 %v4147
  %v4596 = vunpack.c.l.b16 %v4148
  %v4597 = vunpack.c.l.b16 %v4149
  %v4598 = vpack.c.b16 %v4595, %v4594
  %v4599 = vpack.c.b16 %v4597, %v4596
  %4600 = vrot.lane.b32.xlu0 %v4598, 96
  %v4601 = vpop.permute.xlu0 %4600
  %4602 = vrot.lane.b32.xlu0 %v4599, 96
  %v4603 = vpop.permute.xlu0 %4602
  %v4608 = vunpack.c.l.b16 %v4186
  %v4609 = vunpack.c.l.b16 %v4187
  %v4610 = vunpack.c.l.b16 %v4188
  %v4611 = vunpack.c.l.b16 %v4189
  %v4612 = vpack.c.b16 %v4609, %v4608
  %v4613 = vpack.c.b16 %v4611, %v4610
  %4614 = vrot.lane.b32.xlu0 %v4612, 112
  %v4615 = vpop.permute.xlu0 %4614
  %4616 = vrot.lane.b32.xlu0 %v4613, 112
  %v4617 = vpop.permute.xlu0 %4616
  %v4622 = vunpack.c.l.b16 %v4226
  %v4623 = vunpack.c.l.b16 %v4227
  %v4624 = vunpack.c.l.b16 %v4228
  %v4625 = vunpack.c.l.b16 %v4229
  %v4626 = vpack.c.b16 %v4623, %v4622
  %v4627 = vpack.c.b16 %v4625, %v4624
  %v4632 = vunpack.c.l.b16 %v4266
  %v4633 = vunpack.c.l.b16 %v4267
  %v4634 = vunpack.c.l.b16 %v4268
  %v4635 = vunpack.c.l.b16 %v4269
  %v4636 = vpack.c.b16 %v4633, %v4632
  %v4637 = vpack.c.b16 %v4635, %v4634
  %4638 = vrot.lane.b32.xlu0 %v4636, 16
  %v4639 = vpop.permute.xlu0 %4638
  %4640 = vrot.lane.b32.xlu0 %v4637, 16
  %v4641 = vpop.permute.xlu0 %4640
  %v4646 = vunpack.c.l.b16 %v4306
  %v4647 = vunpack.c.l.b16 %v4307
  %v4648 = vunpack.c.l.b16 %v4308
  %v4649 = vunpack.c.l.b16 %v4309
  %v4650 = vpack.c.b16 %v4647, %v4646
  %v4651 = vpack.c.b16 %v4649, %v4648
  %4652 = vrot.lane.b32.xlu0 %v4650, 32
  %v4653 = vpop.permute.xlu0 %4652
  %4654 = vrot.lane.b32.xlu0 %v4651, 32
  %v4655 = vpop.permute.xlu0 %4654
  %v4660 = vunpack.c.l.b16 %v4346
  %v4661 = vunpack.c.l.b16 %v4347
  %v4662 = vunpack.c.l.b16 %v4348
  %v4663 = vunpack.c.l.b16 %v4349
  %v4664 = vpack.c.b16 %v4661, %v4660
  %v4665 = vpack.c.b16 %v4663, %v4662
  %4666 = vrot.lane.b32.xlu0 %v4664, 48
  %v4667 = vpop.permute.xlu0 %4666
  %4668 = vrot.lane.b32.xlu0 %v4665, 48
  %v4669 = vpop.permute.xlu0 %4668
  %v4674 = vunpack.c.l.b16 %v4386
  %v4675 = vunpack.c.l.b16 %v4387
  %v4676 = vunpack.c.l.b16 %v4388
  %v4677 = vunpack.c.l.b16 %v4389
  %v4678 = vpack.c.b16 %v4675, %v4674
  %v4679 = vpack.c.b16 %v4677, %v4676
  %4680 = vrot.lane.b32.xlu0 %v4678, 64
  %v4681 = vpop.permute.xlu0 %4680
  %4682 = vrot.lane.b32.xlu0 %v4679, 64
  %v4683 = vpop.permute.xlu0 %4682
  %v4688 = vunpack.c.l.b16 %v4426
  %v4689 = vunpack.c.l.b16 %v4427
  %v4690 = vunpack.c.l.b16 %v4428
  %v4691 = vunpack.c.l.b16 %v4429
  %v4692 = vpack.c.b16 %v4689, %v4688
  %v4693 = vpack.c.b16 %v4691, %v4690
  %4694 = vrot.lane.b32.xlu0 %v4692, 80
  %v4695 = vpop.permute.xlu0 %4694
  %4696 = vrot.lane.b32.xlu0 %v4693, 80
  %v4697 = vpop.permute.xlu0 %4696
  %v4702 = vunpack.c.l.b16 %v4466
  %v4703 = vunpack.c.l.b16 %v4467
  %v4704 = vunpack.c.l.b16 %v4468
  %v4705 = vunpack.c.l.b16 %v4469
  %v4706 = vpack.c.b16 %v4703, %v4702
  %v4707 = vpack.c.b16 %v4705, %v4704
  %4708 = vrot.lane.b32.xlu0 %v4706, 96
  %v4709 = vpop.permute.xlu0 %4708
  %4710 = vrot.lane.b32.xlu0 %v4707, 96
  %v4711 = vpop.permute.xlu0 %4710
  %v4716 = vunpack.c.l.b16 %v4506
  %v4717 = vunpack.c.l.b16 %v4507
  %v4718 = vunpack.c.l.b16 %v4508
  %v4719 = vunpack.c.l.b16 %v4509
  %v4720 = vpack.c.b16 %v4717, %v4716
  %v4721 = vpack.c.b16 %v4719, %v4718
  %4722 = vrot.lane.b32.xlu0 %v4720, 112
  %v4723 = vpop.permute.xlu0 %4722
  %4724 = vrot.lane.b32.xlu0 %v4721, 112
  %v4725 = vpop.permute.xlu0 %4724
  %v4728 = vsel %vm3325, %v4518, %v4531
  %v4731 = vsel %vm3325, %v4519, %v4533
  %v4733 = vsel %vm3359, %v4728, %v4545
  %v4735 = vsel %vm3359, %v4731, %v4547
  %v4737 = vsel %vm3393, %v4733, %v4559
  %v4739 = vsel %vm3393, %v4735, %v4561
  %v4741 = vsel %vm3427, %v4737, %v4573
  %v4743 = vsel %vm3427, %v4739, %v4575
  %v4745 = vsel %vm3461, %v4741, %v4587
  %v4747 = vsel %vm3461, %v4743, %v4589
  %v4749 = vsel %vm3495, %v4745, %v4601
  %v4751 = vsel %vm3495, %v4747, %v4603
  %v4753 = vsel %vm3529, %v4749, %v4615
  %v4756 = vsel %vm3529, %v4751, %v4617
  %v4760 = vsel %vm3325, %v4626, %v4639
  %v4763 = vsel %vm3325, %v4627, %v4641
  %v4765 = vsel %vm3359, %v4760, %v4653
  %v4767 = vsel %vm3359, %v4763, %v4655
  %v4769 = vsel %vm3393, %v4765, %v4667
  %v4771 = vsel %vm3393, %v4767, %v4669
  %v4773 = vsel %vm3427, %v4769, %v4681
  %v4775 = vsel %vm3427, %v4771, %v4683
  %v4777 = vsel %vm3461, %v4773, %v4695
  %v4779 = vsel %vm3461, %v4775, %v4697
  %v4781 = vsel %vm3495, %v4777, %v4709
  %v4783 = vsel %vm3495, %v4779, %v4711
  %v4785 = vsel %vm3529, %v4781, %v4723
  %v4788 = vsel %vm3529, %v4783, %v4725
  %v4790 = vld [vmem:[%s6] sm:$0xf]
  %v4791 = vld [vmem:[%s6 + $0x4] sm:$0xf]
  %v4792 = vld [vmem:[%s6 + $0x8] sm:$0xf]
  %v4793 = vld [vmem:[%s6 + $0xc] sm:$0xf]
  %v4794 = vld [vmem:[%s6 + $0x10] sm:$0xf]
  %v4795 = vld [vmem:[%s6 + $0x14] sm:$0xf]
  %v4796 = vld [vmem:[%s6 + $0x18] sm:$0xf]
  %v4797 = vld [vmem:[%s6 + $0x1c] sm:$0xf]
  %v4798 = vld [vmem:[%s6 + $0x20] sm:$0xf]
  %v4799 = vld [vmem:[%s6 + $0x24] sm:$0xf]
  %v4800 = vld [vmem:[%s6 + $0x28] sm:$0xf]
  %v4801 = vld [vmem:[%s6 + $0x2c] sm:$0xf]
  %v4802 = vld [vmem:[%s6 + $0x30] sm:$0xf]
  %v4803 = vld [vmem:[%s6 + $0x34] sm:$0xf]
  %v4804 = vld [vmem:[%s6 + $0x38] sm:$0xf]
  %v4805 = vld [vmem:[%s6 + $0x3c] sm:$0xf]
  %v4806 = vld [vmem:[%s6 + $0x40] sm:$0xf]
  %v4807 = vld [vmem:[%s6 + $0x44] sm:$0xf]
  %v4808 = vld [vmem:[%s6 + $0x48] sm:$0xf]
  %v4809 = vld [vmem:[%s6 + $0x4c] sm:$0xf]
  %v4810 = vld [vmem:[%s6 + $0x50] sm:$0xf]
  %v4811 = vld [vmem:[%s6 + $0x54] sm:$0xf]
  %v4812 = vld [vmem:[%s6 + $0x58] sm:$0xf]
  %v4813 = vld [vmem:[%s6 + $0x5c] sm:$0xf]
  %v4814 = vld [vmem:[%s6 + $0x60] sm:$0xf]
  %v4815 = vld [vmem:[%s6 + $0x64] sm:$0xf]
  %v4816 = vld [vmem:[%s6 + $0x68] sm:$0xf]
  %v4817 = vld [vmem:[%s6 + $0x6c] sm:$0xf]
  %v4818 = vld [vmem:[%s6 + $0x70] sm:$0xf]
  %v4819 = vld [vmem:[%s6 + $0x74] sm:$0xf]
  %v4820 = vld [vmem:[%s6 + $0x78] sm:$0xf]
  %v4821 = vld [vmem:[%s6 + $0x7c] sm:$0xf]
  %v4854 = vunpack.c.l.b16 %v4790
  %v4855 = vunpack.c.l.b16 %v4791
  %v4856 = vunpack.c.l.b16 %v4792
  %v4857 = vunpack.c.l.b16 %v4793
  %v4858 = vunpack.c.l.b16 %v4794
  %v4859 = vunpack.c.l.b16 %v4795
  %v4860 = vunpack.c.l.b16 %v4796
  %v4861 = vunpack.c.l.b16 %v4797
  %v4862 = vunpack.c.l.b16 %v4798
  %v4863 = vunpack.c.l.b16 %v4799
  %v4864 = vunpack.c.l.b16 %v4800
  %v4865 = vunpack.c.l.b16 %v4801
  %v4866 = vunpack.c.l.b16 %v4802
  %v4867 = vunpack.c.l.b16 %v4803
  %v4868 = vunpack.c.l.b16 %v4804
  %v4869 = vunpack.c.l.b16 %v4805
  %v4870 = vunpack.c.l.b16 %v4806
  %v4871 = vunpack.c.l.b16 %v4807
  %v4872 = vunpack.c.l.b16 %v4808
  %v4873 = vunpack.c.l.b16 %v4809
  %v4874 = vunpack.c.l.b16 %v4810
  %v4875 = vunpack.c.l.b16 %v4811
  %v4876 = vunpack.c.l.b16 %v4812
  %v4877 = vunpack.c.l.b16 %v4813
  %v4878 = vunpack.c.l.b16 %v4814
  %v4879 = vunpack.c.l.b16 %v4815
  %v4880 = vunpack.c.l.b16 %v4816
  %v4881 = vunpack.c.l.b16 %v4817
  %v4882 = vunpack.c.l.b16 %v4818
  %v4883 = vunpack.c.l.b16 %v4819
  %v4884 = vunpack.c.l.b16 %v4820
  %v4885 = vunpack.c.l.b16 %v4821
  %v4886 = vpack.c.b16 %v4855, %v4854
  %v4887 = vpack.c.b16 %v4857, %v4856
  %v4888 = vpack.c.b16 %v4859, %v4858
  %v4889 = vpack.c.b16 %v4861, %v4860
  %v4890 = vpack.c.b16 %v4863, %v4862
  %v4891 = vpack.c.b16 %v4865, %v4864
  %v4892 = vpack.c.b16 %v4867, %v4866
  %v4893 = vpack.c.b16 %v4869, %v4868
  %v4894 = vpack.c.b16 %v4871, %v4870
  %v4895 = vpack.c.b16 %v4873, %v4872
  %v4896 = vpack.c.b16 %v4875, %v4874
  %v4897 = vpack.c.b16 %v4877, %v4876
  %v4898 = vpack.c.b16 %v4879, %v4878
  %v4899 = vpack.c.b16 %v4881, %v4880
  %v4900 = vpack.c.b16 %v4883, %v4882
  %v4901 = vpack.c.b16 %v4885, %v4884
  %4918 = vmatpush.bf16.msra.mxu0 %v4893
  %4919 = vmatpush.bf16.msra.mxu0 %v4892
  %4920 = vmatpush.bf16.msra.mxu0 %v4891
  %4921 = vmatpush.bf16.msra.mxu0 %v4890
  %4922 = vmatpush.bf16.msra.mxu0 %v4889
  %4923 = vmatpush.bf16.msra.mxu0 %v4888
  %4924 = vmatpush.bf16.msra.mxu0 %v4887
  %4925 = vmatpush.bf16.msra.mxu0 %v4886
  %4926 = vmatmul.bf16.gmra.mxu0 %v4753
  %v4927 = vpop.f32.mrf.mxu0
  %v4928 = vadd.f32 0.0, %v4927
  %v4929 = vpop.f32.mrf.mxu0
  %v4930 = vadd.f32 0.0, %v4929
  %4931 = vmatmul.bf16.gmra.mxu0 %v4756
  %v4932 = vpop.f32.mrf.mxu0
  %v4933 = vadd.f32 0.0, %v4932
  %v4934 = vpop.f32.mrf.mxu0
  %v4935 = vadd.f32 0.0, %v4934
  %4936 = vdwg.mxu0
  %4937 = vmatpush.bf16.msra.mxu0 %v4901
  %4938 = vmatpush.bf16.msra.mxu0 %v4900
  %4939 = vmatpush.bf16.msra.mxu0 %v4899
  %4940 = vmatpush.bf16.msra.mxu0 %v4898
  %4941 = vmatpush.bf16.msra.mxu0 %v4897
  %4942 = vmatpush.bf16.msra.mxu0 %v4896
  %4943 = vmatpush.bf16.msra.mxu0 %v4895
  %4944 = vmatpush.bf16.msra.mxu0 %v4894
  %4945 = vmatmul.bf16.gmra.mxu0 %v4785
  %v4946 = vpop.f32.mrf.mxu0
  %v4947 = vadd.f32 %v4928, %v4946
  %v4948 = vpop.f32.mrf.mxu0
  %v4949 = vadd.f32 %v4930, %v4948
  %4950 = vmatmul.bf16.gmra.mxu0 %v4788
  %v4951 = vpop.f32.mrf.mxu0
  %v4952 = vadd.f32 %v4933, %v4951
  %v4953 = vpop.f32.mrf.mxu0
  %v4954 = vadd.f32 %v4935, %v4953
  %4955 = vdwg.mxu0
  %v4956 = vsel %vm3359, %v4947, 0.0
  %v4957 = vsel %vm3359, %v4949, 0.0
  %v4958 = vadd.f32 %v4956, %v4957
  %v4959 = vsel %vm3359, %v4952, 0.0
  %v4960 = vadd.f32 %v4958, %v4959
  %v4961 = vsel %vm3359, %v4954, 0.0
  %v4962 = vadd.f32 %v4960, %v4961
  %v4963 = vrot.slane %v4962, 4
  %v4964 = vadd.f32 %v4962, %v4963
  %v4965 = vrot.slane %v4964, 2
  %v4966 = vadd.f32 %v4964, %v4965
  %v4967 = vrot.slane %v4966, 1
  %v4968 = vadd.f32 %v4966, %v4967
  %v4969 = vmul.f32 %v4968, 0.03125
  %v4970 = vmul.f32 %v4947, %v4947
  %v4971 = vmul.f32 %v4949, %v4949
  %v4972 = vmul.f32 %v4952, %v4952
  %v4973 = vmul.f32 %v4954, %v4954
  %v4974 = vsel %vm3359, %v4970, 0.0
  %v4975 = vsel %vm3359, %v4971, 0.0
  %v4976 = vadd.f32 %v4974, %v4975
  %v4977 = vsel %vm3359, %v4972, 0.0
  %v4978 = vadd.f32 %v4976, %v4977
  %v4979 = vsel %vm3359, %v4973, 0.0
  %v4980 = vadd.f32 %v4978, %v4979
  %v4981 = vrot.slane %v4980, 4
  %v4982 = vadd.f32 %v4980, %v4981
  %v4983 = vrot.slane %v4982, 2
  %v4984 = vadd.f32 %v4982, %v4983
  %v4985 = vrot.slane %v4984, 1
  %v4986 = vadd.f32 %v4984, %v4985
  %v4987 = vmul.f32 %v4986, 0.03125
  %v4988 = vmul.f32 %v4969, %v4969
  %v4989 = vsub.f32 %v4987, %v4988
  %v4990 = vmax.f32 %v4989, 0.0
  %v4991 = vld [vmem:[%s7] sm:$0x1]
  %v4992 = vadd.f32 %v4990, 1e-05
  %v4993 = vrsqrt.pop %v4992
  %v4994 = vmul.f32 %v4993, %v4992
  %v4995 = vmul.f32 %v4994, %v4993
  %v4996 = vmul.f32 0.5, %v4995
  %v4997 = vsub.f32 1.5, %v4996
  %v4998 = vmul.f32 %v4993, %v4997
  %vm4999 = vweird.f32 %v4992
  %vm5000 = vweird.f32 %v4993
  %vm5001 = vmor %vm4999, %vm5000
  %v5002 = vsel %vm5001, %v4993, %v4998
  %v5003 = vmul.f32 %v4991, %v5002
  %v5004 = vsub.f32 %v4947, %v4969
  %v5005 = vsub.f32 %v4949, %v4969
  %v5006 = vsub.f32 %v4952, %v4969
  %v5007 = vsub.f32 %v4954, %v4969
  %v5009 = vperm.slane %v5003, 0
  %v5011 = vmul.f32 %v5004, %v5009
  %v5012 = vmul.f32 %v5005, %v5009
  %v5013 = vmul.f32 %v5006, %v5009
  %v5014 = vmul.f32 %v5007, %v5009
  %v5015 = vld [vmem:[%s8] sm:$0x1]
  %v5017 = vperm.slane %v5015, 0
  %v5019 = vadd.f32 %v5011, %v5017
  %v5020 = vadd.f32 %v5012, %v5017
  %v5021 = vadd.f32 %v5013, %v5017
  %v5022 = vadd.f32 %v5014, %v5017
  %v5023 = vmax.f32 %v5019, 0.0
  %v5024 = vmax.f32 %v5020, 0.0
  %v5025 = vmax.f32 %v5021, 0.0
  %v5026 = vmax.f32 %v5022, 0.0
  %v5027 = vpack.c.bf16 %v5023, %v5023
  %v5028 = vpack.c.bf16 %v5024, %v5024
  %v5029 = vpack.c.bf16 %v5025, %v5025
  %v5030 = vpack.c.bf16 %v5026, %v5026
  %v5031 = vld [vmem:[%s9] sm:$0xf]
  %v5032 = vld [vmem:[%s9 + $0x4] sm:$0xf]
  %v5033 = vld [vmem:[%s9 + $0x8] sm:$0xf]
  %v5034 = vld [vmem:[%s9 + $0xc] sm:$0xf]
  %s5035 = scalar_lea.vmem %s9, 16
  %v5036 = vld [vmem:[%s5035] sm:$0xf]
  %v5037 = vld [vmem:[%s5035 + $0x4] sm:$0xf]
  %v5038 = vld [vmem:[%s5035 + $0x8] sm:$0xf]
  %v5039 = vld [vmem:[%s5035 + $0xc] sm:$0xf]
  %v5041 = vunpack.c.l.b16 %v5027
  %v5042 = vpack.c.b16 %v5041, %v5041
  %v5043 = vrot.slane %v5042, 1
  %v5048 = vunpack.c.l.b16 %v5036
  %v5049 = vunpack.c.l.b16 %v5037
  %v5050 = vunpack.c.l.b16 %v5038
  %v5051 = vunpack.c.l.b16 %v5039
  %v5052 = vpack.c.b16 %v5049, %v5048
  %v5053 = vpack.c.b16 %v5051, %v5050
  %v5057 = vsel %vm3359, %v5043, 0
  %5059 = vmatpush.bf16.msra.mxu0 0
  %5060 = vmatpush.bf16.msra.mxu0 0
  %5061 = vmatpush.bf16.msra.mxu0 0
  %5062 = vmatpush.bf16.msra.mxu0 0
  %5063 = vmatpush.bf16.msra.mxu0 0
  %5064 = vmatpush.bf16.msra.mxu0 0
  %5065 = vmatpush.bf16.msra.mxu0 %v5053
  %5066 = vmatpush.bf16.msra.mxu0 %v5052
  %5067 = vmatmul.bf16.gmra.mxu0 %v5057
  %v5068 = vpop.f32.mrf.mxu0
  %v5069 = vadd.f32 0.0, %v5068
  %v5070 = vpop.f32.mrf.mxu0
  %5071 = vdwg.mxu0
  %v5076 = vunpack.c.l.b16 %v5031
  %v5077 = vunpack.c.l.b16 %v5032
  %v5078 = vunpack.c.l.b16 %v5033
  %v5079 = vunpack.c.l.b16 %v5034
  %v5080 = vpack.c.b16 %v5077, %v5076
  %v5081 = vpack.c.b16 %v5079, %v5078
  %v5085 = vsel %vm3359, %v5027, 0
  %5087 = vmatpush.bf16.msra.mxu0 0
  %5088 = vmatpush.bf16.msra.mxu0 0
  %5089 = vmatpush.bf16.msra.mxu0 0
  %5090 = vmatpush.bf16.msra.mxu0 0
  %5091 = vmatpush.bf16.msra.mxu0 0
  %5092 = vmatpush.bf16.msra.mxu0 0
  %5093 = vmatpush.bf16.msra.mxu0 %v5081
  %5094 = vmatpush.bf16.msra.mxu0 %v5080
  %5095 = vmatmul.bf16.gmra.mxu0 %v5085
  %v5096 = vpop.f32.mrf.mxu0
  %v5097 = vadd.f32 %v5069, %v5096
  %v5098 = vpop.f32.mrf.mxu0
  %5099 = vdwg.mxu0
  %s5100 = scalar_lea.vmem %s9, 32
  %v5101 = vld [vmem:[%s5100] sm:$0xf]
  %v5102 = vld [vmem:[%s5100 + $0x4] sm:$0xf]
  %v5103 = vld [vmem:[%s5100 + $0x8] sm:$0xf]
  %v5104 = vld [vmem:[%s5100 + $0xc] sm:$0xf]
  %v5105 = vrot.slane %v5042, 2
  %v5110 = vunpack.c.l.b16 %v5101
  %v5111 = vunpack.c.l.b16 %v5102
  %v5112 = vunpack.c.l.b16 %v5103
  %v5113 = vunpack.c.l.b16 %v5104
  %v5114 = vpack.c.b16 %v5111, %v5110
  %v5115 = vpack.c.b16 %v5113, %v5112
  %v5119 = vsel %vm3359, %v5105, 0
  %5121 = vmatpush.bf16.msra.mxu0 0
  %5122 = vmatpush.bf16.msra.mxu0 0
  %5123 = vmatpush.bf16.msra.mxu0 0
  %5124 = vmatpush.bf16.msra.mxu0 0
  %5125 = vmatpush.bf16.msra.mxu0 0
  %5126 = vmatpush.bf16.msra.mxu0 0
  %5127 = vmatpush.bf16.msra.mxu0 %v5115
  %5128 = vmatpush.bf16.msra.mxu0 %v5114
  %5129 = vmatmul.bf16.gmra.mxu0 %v5119
  %v5130 = vpop.f32.mrf.mxu0
  %v5131 = vadd.f32 0.0, %v5130
  %v5132 = vpop.f32.mrf.mxu0
  %5133 = vdwg.mxu0
  %v5134 = vadd.f32 %v5097, %v5131
  %s5135 = scalar_lea.vmem %s9, 48
  %v5136 = vld [vmem:[%s5135] sm:$0xf]
  %v5137 = vld [vmem:[%s5135 + $0x4] sm:$0xf]
  %v5138 = vld [vmem:[%s5135 + $0x8] sm:$0xf]
  %v5139 = vld [vmem:[%s5135 + $0xc] sm:$0xf]
  %v5140 = vrot.slane %v5042, 3
  %v5145 = vunpack.c.l.b16 %v5136
  %v5146 = vunpack.c.l.b16 %v5137
  %v5147 = vunpack.c.l.b16 %v5138
  %v5148 = vunpack.c.l.b16 %v5139
  %v5149 = vpack.c.b16 %v5146, %v5145
  %v5150 = vpack.c.b16 %v5148, %v5147
  %v5154 = vsel %vm3359, %v5140, 0
  %5156 = vmatpush.bf16.msra.mxu0 0
  %5157 = vmatpush.bf16.msra.mxu0 0
  %5158 = vmatpush.bf16.msra.mxu0 0
  %5159 = vmatpush.bf16.msra.mxu0 0
  %5160 = vmatpush.bf16.msra.mxu0 0
  %5161 = vmatpush.bf16.msra.mxu0 0
  %5162 = vmatpush.bf16.msra.mxu0 %v5150
  %5163 = vmatpush.bf16.msra.mxu0 %v5149
  %5164 = vmatmul.bf16.gmra.mxu0 %v5154
  %v5165 = vpop.f32.mrf.mxu0
  %v5166 = vadd.f32 0.0, %v5165
  %v5167 = vpop.f32.mrf.mxu0
  %5168 = vdwg.mxu0
  %v5169 = vadd.f32 %v5134, %v5166
  %s5170 = scalar_lea.vmem %s9, 64
  %v5171 = vld [vmem:[%s5170] sm:$0xf]
  %v5172 = vld [vmem:[%s5170 + $0x4] sm:$0xf]
  %v5173 = vld [vmem:[%s5170 + $0x8] sm:$0xf]
  %v5174 = vld [vmem:[%s5170 + $0xc] sm:$0xf]
  %v5179 = vunpack.c.l.b16 %v5171
  %v5180 = vunpack.c.l.b16 %v5172
  %v5181 = vunpack.c.l.b16 %v5173
  %v5182 = vunpack.c.l.b16 %v5174
  %v5183 = vpack.c.b16 %v5180, %v5179
  %v5184 = vpack.c.b16 %v5182, %v5181
  %v5188 = vsel %vm3359, %v5028, 0
  %5190 = vmatpush.bf16.msra.mxu0 0
  %5191 = vmatpush.bf16.msra.mxu0 0
  %5192 = vmatpush.bf16.msra.mxu0 0
  %5193 = vmatpush.bf16.msra.mxu0 0
  %5194 = vmatpush.bf16.msra.mxu0 0
  %5195 = vmatpush.bf16.msra.mxu0 0
  %5196 = vmatpush.bf16.msra.mxu0 %v5184
  %5197 = vmatpush.bf16.msra.mxu0 %v5183
  %5198 = vmatmul.bf16.gmra.mxu0 %v5188
  %v5199 = vpop.f32.mrf.mxu0
  %v5200 = vadd.f32 0.0, %v5199
  %v5201 = vpop.f32.mrf.mxu0
  %5202 = vdwg.mxu0
  %v5203 = vadd.f32 %v5169, %v5200
  %s5204 = scalar_lea.vmem %s9, 80
  %v5205 = vld [vmem:[%s5204] sm:$0xf]
  %v5206 = vld [vmem:[%s5204 + $0x4] sm:$0xf]
  %v5207 = vld [vmem:[%s5204 + $0x8] sm:$0xf]
  %v5208 = vld [vmem:[%s5204 + $0xc] sm:$0xf]
  %v5210 = vunpack.c.l.b16 %v5028
  %v5211 = vpack.c.b16 %v5210, %v5210
  %v5212 = vrot.slane %v5211, 1
  %v5217 = vunpack.c.l.b16 %v5205
  %v5218 = vunpack.c.l.b16 %v5206
  %v5219 = vunpack.c.l.b16 %v5207
  %v5220 = vunpack.c.l.b16 %v5208
  %v5221 = vpack.c.b16 %v5218, %v5217
  %v5222 = vpack.c.b16 %v5220, %v5219
  %v5226 = vsel %vm3359, %v5212, 0
  %5228 = vmatpush.bf16.msra.mxu0 0
  %5229 = vmatpush.bf16.msra.mxu0 0
  %5230 = vmatpush.bf16.msra.mxu0 0
  %5231 = vmatpush.bf16.msra.mxu0 0
  %5232 = vmatpush.bf16.msra.mxu0 0
  %5233 = vmatpush.bf16.msra.mxu0 0
  %5234 = vmatpush.bf16.msra.mxu0 %v5222
  %5235 = vmatpush.bf16.msra.mxu0 %v5221
  %5236 = vmatmul.bf16.gmra.mxu0 %v5226
  %v5237 = vpop.f32.mrf.mxu0
  %v5238 = vadd.f32 0.0, %v5237
  %v5239 = vpop.f32.mrf.mxu0
  %5240 = vdwg.mxu0
  %v5241 = vadd.f32 %v5203, %v5238
  %s5242 = scalar_lea.vmem %s9, 96
  %v5243 = vld [vmem:[%s5242] sm:$0xf]
  %v5244 = vld [vmem:[%s5242 + $0x4] sm:$0xf]
  %v5245 = vld [vmem:[%s5242 + $0x8] sm:$0xf]
  %v5246 = vld [vmem:[%s5242 + $0xc] sm:$0xf]
  %v5247 = vrot.slane %v5211, 2
  %v5252 = vunpack.c.l.b16 %v5243
  %v5253 = vunpack.c.l.b16 %v5244
  %v5254 = vunpack.c.l.b16 %v5245
  %v5255 = vunpack.c.l.b16 %v5246
  %v5256 = vpack.c.b16 %v5253, %v5252
  %v5257 = vpack.c.b16 %v5255, %v5254
  %v5261 = vsel %vm3359, %v5247, 0
  %5263 = vmatpush.bf16.msra.mxu0 0
  %5264 = vmatpush.bf16.msra.mxu0 0
  %5265 = vmatpush.bf16.msra.mxu0 0
  %5266 = vmatpush.bf16.msra.mxu0 0
  %5267 = vmatpush.bf16.msra.mxu0 0
  %5268 = vmatpush.bf16.msra.mxu0 0
  %5269 = vmatpush.bf16.msra.mxu0 %v5257
  %5270 = vmatpush.bf16.msra.mxu0 %v5256
  %5271 = vmatmul.bf16.gmra.mxu0 %v5261
  %v5272 = vpop.f32.mrf.mxu0
  %v5273 = vadd.f32 0.0, %v5272
  %v5274 = vpop.f32.mrf.mxu0
  %5275 = vdwg.mxu0
  %v5276 = vadd.f32 %v5241, %v5273
  %s5277 = scalar_lea.vmem %s9, 112
  %v5278 = vld [vmem:[%s5277] sm:$0xf]
  %v5279 = vld [vmem:[%s5277 + $0x4] sm:$0xf]
  %v5280 = vld [vmem:[%s5277 + $0x8] sm:$0xf]
  %v5281 = vld [vmem:[%s5277 + $0xc] sm:$0xf]
  %v5282 = vrot.slane %v5211, 3
  %v5287 = vunpack.c.l.b16 %v5278
  %v5288 = vunpack.c.l.b16 %v5279
  %v5289 = vunpack.c.l.b16 %v5280
  %v5290 = vunpack.c.l.b16 %v5281
  %v5291 = vpack.c.b16 %v5288, %v5287
  %v5292 = vpack.c.b16 %v5290, %v5289
  %v5296 = vsel %vm3359, %v5282, 0
  %5298 = vmatpush.bf16.msra.mxu0 0
  %5299 = vmatpush.bf16.msra.mxu0 0
  %5300 = vmatpush.bf16.msra.mxu0 0
  %5301 = vmatpush.bf16.msra.mxu0 0
  %5302 = vmatpush.bf16.msra.mxu0 0
  %5303 = vmatpush.bf16.msra.mxu0 0
  %5304 = vmatpush.bf16.msra.mxu0 %v5292
  %5305 = vmatpush.bf16.msra.mxu0 %v5291
  %5306 = vmatmul.bf16.gmra.mxu0 %v5296
  %v5307 = vpop.f32.mrf.mxu0
  %v5308 = vadd.f32 0.0, %v5307
  %v5309 = vpop.f32.mrf.mxu0
  %5310 = vdwg.mxu0
  %v5311 = vadd.f32 %v5276, %v5308
  %s5312 = scalar_lea.vmem %s9, 128
  %v5313 = vld [vmem:[%s5312] sm:$0xf]
  %v5314 = vld [vmem:[%s5312 + $0x4] sm:$0xf]
  %v5315 = vld [vmem:[%s5312 + $0x8] sm:$0xf]
  %v5316 = vld [vmem:[%s5312 + $0xc] sm:$0xf]
  %v5321 = vunpack.c.l.b16 %v5313
  %v5322 = vunpack.c.l.b16 %v5314
  %v5323 = vunpack.c.l.b16 %v5315
  %v5324 = vunpack.c.l.b16 %v5316
  %v5325 = vpack.c.b16 %v5322, %v5321
  %v5326 = vpack.c.b16 %v5324, %v5323
  %v5330 = vsel %vm3359, %v5029, 0
  %5332 = vmatpush.bf16.msra.mxu0 0
  %5333 = vmatpush.bf16.msra.mxu0 0
  %5334 = vmatpush.bf16.msra.mxu0 0
  %5335 = vmatpush.bf16.msra.mxu0 0
  %5336 = vmatpush.bf16.msra.mxu0 0
  %5337 = vmatpush.bf16.msra.mxu0 0
  %5338 = vmatpush.bf16.msra.mxu0 %v5326
  %5339 = vmatpush.bf16.msra.mxu0 %v5325
  %5340 = vmatmul.bf16.gmra.mxu0 %v5330
  %v5341 = vpop.f32.mrf.mxu0
  %v5342 = vadd.f32 0.0, %v5341
  %v5343 = vpop.f32.mrf.mxu0
  %5344 = vdwg.mxu0
  %v5345 = vadd.f32 %v5311, %v5342
  %s5346 = scalar_lea.vmem %s9, 144
  %v5347 = vld [vmem:[%s5346] sm:$0xf]
  %v5348 = vld [vmem:[%s5346 + $0x4] sm:$0xf]
  %v5349 = vld [vmem:[%s5346 + $0x8] sm:$0xf]
  %v5350 = vld [vmem:[%s5346 + $0xc] sm:$0xf]
  %v5352 = vunpack.c.l.b16 %v5029
  %v5353 = vpack.c.b16 %v5352, %v5352
  %v5354 = vrot.slane %v5353, 1
  %v5359 = vunpack.c.l.b16 %v5347
  %v5360 = vunpack.c.l.b16 %v5348
  %v5361 = vunpack.c.l.b16 %v5349
  %v5362 = vunpack.c.l.b16 %v5350
  %v5363 = vpack.c.b16 %v5360, %v5359
  %v5364 = vpack.c.b16 %v5362, %v5361
  %v5368 = vsel %vm3359, %v5354, 0
  %5370 = vmatpush.bf16.msra.mxu0 0
  %5371 = vmatpush.bf16.msra.mxu0 0
  %5372 = vmatpush.bf16.msra.mxu0 0
  %5373 = vmatpush.bf16.msra.mxu0 0
  %5374 = vmatpush.bf16.msra.mxu0 0
  %5375 = vmatpush.bf16.msra.mxu0 0
  %5376 = vmatpush.bf16.msra.mxu0 %v5364
  %5377 = vmatpush.bf16.msra.mxu0 %v5363
  %5378 = vmatmul.bf16.gmra.mxu0 %v5368
  %v5379 = vpop.f32.mrf.mxu0
  %v5380 = vadd.f32 0.0, %v5379
  %v5381 = vpop.f32.mrf.mxu0
  %5382 = vdwg.mxu0
  %v5383 = vadd.f32 %v5345, %v5380
  %s5384 = scalar_lea.vmem %s9, 160
  %v5385 = vld [vmem:[%s5384] sm:$0xf]
  %v5386 = vld [vmem:[%s5384 + $0x4] sm:$0xf]
  %v5387 = vld [vmem:[%s5384 + $0x8] sm:$0xf]
  %v5388 = vld [vmem:[%s5384 + $0xc] sm:$0xf]
  %v5389 = vrot.slane %v5353, 2
  %v5394 = vunpack.c.l.b16 %v5385
  %v5395 = vunpack.c.l.b16 %v5386
  %v5396 = vunpack.c.l.b16 %v5387
  %v5397 = vunpack.c.l.b16 %v5388
  %v5398 = vpack.c.b16 %v5395, %v5394
  %v5399 = vpack.c.b16 %v5397, %v5396
  %v5403 = vsel %vm3359, %v5389, 0
  %5405 = vmatpush.bf16.msra.mxu0 0
  %5406 = vmatpush.bf16.msra.mxu0 0
  %5407 = vmatpush.bf16.msra.mxu0 0
  %5408 = vmatpush.bf16.msra.mxu0 0
  %5409 = vmatpush.bf16.msra.mxu0 0
  %5410 = vmatpush.bf16.msra.mxu0 0
  %5411 = vmatpush.bf16.msra.mxu0 %v5399
  %5412 = vmatpush.bf16.msra.mxu0 %v5398
  %5413 = vmatmul.bf16.gmra.mxu0 %v5403
  %v5414 = vpop.f32.mrf.mxu0
  %v5415 = vadd.f32 0.0, %v5414
  %v5416 = vpop.f32.mrf.mxu0
  %5417 = vdwg.mxu0
  %v5418 = vadd.f32 %v5383, %v5415
  %s5419 = scalar_lea.vmem %s9, 176
  %v5420 = vld [vmem:[%s5419] sm:$0xf]
  %v5421 = vld [vmem:[%s5419 + $0x4] sm:$0xf]
  %v5422 = vld [vmem:[%s5419 + $0x8] sm:$0xf]
  %v5423 = vld [vmem:[%s5419 + $0xc] sm:$0xf]
  %v5424 = vrot.slane %v5353, 3
  %v5429 = vunpack.c.l.b16 %v5420
  %v5430 = vunpack.c.l.b16 %v5421
  %v5431 = vunpack.c.l.b16 %v5422
  %v5432 = vunpack.c.l.b16 %v5423
  %v5433 = vpack.c.b16 %v5430, %v5429
  %v5434 = vpack.c.b16 %v5432, %v5431
  %v5438 = vsel %vm3359, %v5424, 0
  %5440 = vmatpush.bf16.msra.mxu0 0
  %5441 = vmatpush.bf16.msra.mxu0 0
  %5442 = vmatpush.bf16.msra.mxu0 0
  %5443 = vmatpush.bf16.msra.mxu0 0
  %5444 = vmatpush.bf16.msra.mxu0 0
  %5445 = vmatpush.bf16.msra.mxu0 0
  %5446 = vmatpush.bf16.msra.mxu0 %v5434
  %5447 = vmatpush.bf16.msra.mxu0 %v5433
  %5448 = vmatmul.bf16.gmra.mxu0 %v5438
  %v5449 = vpop.f32.mrf.mxu0
  %v5450 = vadd.f32 0.0, %v5449
  %v5451 = vpop.f32.mrf.mxu0
  %5452 = vdwg.mxu0
  %v5453 = vadd.f32 %v5418, %v5450
  %s5454 = scalar_lea.vmem %s9, 192
  %v5455 = vld [vmem:[%s5454] sm:$0xf]
  %v5456 = vld [vmem:[%s5454 + $0x4] sm:$0xf]
  %v5457 = vld [vmem:[%s5454 + $0x8] sm:$0xf]
  %v5458 = vld [vmem:[%s5454 + $0xc] sm:$0xf]
  %v5463 = vunpack.c.l.b16 %v5455
  %v5464 = vunpack.c.l.b16 %v5456
  %v5465 = vunpack.c.l.b16 %v5457
  %v5466 = vunpack.c.l.b16 %v5458
  %v5467 = vpack.c.b16 %v5464, %v5463
  %v5468 = vpack.c.b16 %v5466, %v5465
  %v5472 = vsel %vm3359, %v5030, 0
  %5474 = vmatpush.bf16.msra.mxu0 0
  %5475 = vmatpush.bf16.msra.mxu0 0
  %5476 = vmatpush.bf16.msra.mxu0 0
  %5477 = vmatpush.bf16.msra.mxu0 0
  %5478 = vmatpush.bf16.msra.mxu0 0
  %5479 = vmatpush.bf16.msra.mxu0 0
  %5480 = vmatpush.bf16.msra.mxu0 %v5468
  %5481 = vmatpush.bf16.msra.mxu0 %v5467
  %5482 = vmatmul.bf16.gmra.mxu0 %v5472
  %v5483 = vpop.f32.mrf.mxu0
  %v5484 = vadd.f32 0.0, %v5483
  %v5485 = vpop.f32.mrf.mxu0
  %5486 = vdwg.mxu0
  %v5487 = vadd.f32 %v5453, %v5484
  %s5488 = scalar_lea.vmem %s9, 208
  %v5489 = vld [vmem:[%s5488] sm:$0xf]
  %v5490 = vld [vmem:[%s5488 + $0x4] sm:$0xf]
  %v5491 = vld [vmem:[%s5488 + $0x8] sm:$0xf]
  %v5492 = vld [vmem:[%s5488 + $0xc] sm:$0xf]
  %v5494 = vunpack.c.l.b16 %v5030
  %v5495 = vpack.c.b16 %v5494, %v5494
  %v5496 = vrot.slane %v5495, 1
  %v5501 = vunpack.c.l.b16 %v5489
  %v5502 = vunpack.c.l.b16 %v5490
  %v5503 = vunpack.c.l.b16 %v5491
  %v5504 = vunpack.c.l.b16 %v5492
  %v5505 = vpack.c.b16 %v5502, %v5501
  %v5506 = vpack.c.b16 %v5504, %v5503
  %v5510 = vsel %vm3359, %v5496, 0
  %5512 = vmatpush.bf16.msra.mxu0 0
  %5513 = vmatpush.bf16.msra.mxu0 0
  %5514 = vmatpush.bf16.msra.mxu0 0
  %5515 = vmatpush.bf16.msra.mxu0 0
  %5516 = vmatpush.bf16.msra.mxu0 0
  %5517 = vmatpush.bf16.msra.mxu0 0
  %5518 = vmatpush.bf16.msra.mxu0 %v5506
  %5519 = vmatpush.bf16.msra.mxu0 %v5505
  %5520 = vmatmul.bf16.gmra.mxu0 %v5510
  %v5521 = vpop.f32.mrf.mxu0
  %v5522 = vadd.f32 0.0, %v5521
  %v5523 = vpop.f32.mrf.mxu0
  %5524 = vdwg.mxu0
  %v5525 = vadd.f32 %v5487, %v5522
  %s5526 = scalar_lea.vmem %s9, 224
  %v5527 = vld [vmem:[%s5526] sm:$0xf]
  %v5528 = vld [vmem:[%s5526 + $0x4] sm:$0xf]
  %v5529 = vld [vmem:[%s5526 + $0x8] sm:$0xf]
  %v5530 = vld [vmem:[%s5526 + $0xc] sm:$0xf]
  %v5531 = vrot.slane %v5495, 2
  %v5536 = vunpack.c.l.b16 %v5527
  %v5537 = vunpack.c.l.b16 %v5528
  %v5538 = vunpack.c.l.b16 %v5529
  %v5539 = vunpack.c.l.b16 %v5530
  %v5540 = vpack.c.b16 %v5537, %v5536
  %v5541 = vpack.c.b16 %v5539, %v5538
  %v5545 = vsel %vm3359, %v5531, 0
  %5547 = vmatpush.bf16.msra.mxu0 0
  %5548 = vmatpush.bf16.msra.mxu0 0
  %5549 = vmatpush.bf16.msra.mxu0 0
  %5550 = vmatpush.bf16.msra.mxu0 0
  %5551 = vmatpush.bf16.msra.mxu0 0
  %5552 = vmatpush.bf16.msra.mxu0 0
  %5553 = vmatpush.bf16.msra.mxu0 %v5541
  %5554 = vmatpush.bf16.msra.mxu0 %v5540
  %5555 = vmatmul.bf16.gmra.mxu0 %v5545
  %v5556 = vpop.f32.mrf.mxu0
  %v5557 = vadd.f32 0.0, %v5556
  %v5558 = vpop.f32.mrf.mxu0
  %5559 = vdwg.mxu0
  %v5560 = vadd.f32 %v5525, %v5557
  %s5561 = scalar_lea.vmem %s9, 240
  %v5562 = vld [vmem:[%s5561] sm:$0xf]
  %v5563 = vld [vmem:[%s5561 + $0x4] sm:$0xf]
  %v5564 = vld [vmem:[%s5561 + $0x8] sm:$0xf]
  %v5565 = vld [vmem:[%s5561 + $0xc] sm:$0xf]
  %v5566 = vrot.slane %v5495, 3
  %v5571 = vunpack.c.l.b16 %v5562
  %v5572 = vunpack.c.l.b16 %v5563
  %v5573 = vunpack.c.l.b16 %v5564
  %v5574 = vunpack.c.l.b16 %v5565
  %v5575 = vpack.c.b16 %v5572, %v5571
  %v5576 = vpack.c.b16 %v5574, %v5573
  %v5580 = vsel %vm3359, %v5566, 0
  %5582 = vmatpush.bf16.msra.mxu0 0
  %5583 = vmatpush.bf16.msra.mxu0 0
  %5584 = vmatpush.bf16.msra.mxu0 0
  %5585 = vmatpush.bf16.msra.mxu0 0
  %5586 = vmatpush.bf16.msra.mxu0 0
  %5587 = vmatpush.bf16.msra.mxu0 0
  %5588 = vmatpush.bf16.msra.mxu0 %v5576
  %5589 = vmatpush.bf16.msra.mxu0 %v5575
  %5590 = vmatmul.bf16.gmra.mxu0 %v5580
  %v5591 = vpop.f32.mrf.mxu0
  %v5592 = vadd.f32 0.0, %v5591
  %v5593 = vpop.f32.mrf.mxu0
  %5594 = vdwg.mxu0
  %v5595 = vadd.f32 %v5560, %v5592
  %vm5596 = vcmask 254976
  %5597 = vst.msk [vmem:[%s10] sm:$0x3] %vm5596, %v5595
  // Predicated region
  $region42: #{encoder32_vae_forward.1} parent=0 // pred_check
    _
  $region43: #{encoder32_vae_forward.1} parent=0 // pred_check_branch
    %5599 = sbr.rel (0) target = $region45
  $region44: #{encoder32_vae_forward.1} parent=0 // pred_region
    _
  $region45: #{encoder32_vae_forward.1} parent=0 // pred_fallthru
    _
  // Predicated region
  $region46: #{encoder32_vae_forward.1} parent=0 // pred_check
    _
  $region47: #{encoder32_vae_forward.1} parent=0 // pred_check_branch
    %5601 = sbr.rel (0) target = $region49
  $region48: #{encoder32_vae_forward.1} parent=0 // pred_region
    _
  $region49: #{encoder32_vae_forward.1} parent=0 // pred_fallthru
    _

</llo_original>
